<compile_context>
chip_gen: v5e
topology: v5e:2x2
jax: 0.10.0
libtpu: 0.0.40
codegen_flags: <defaults>
</compile_context>

<pallas_src>
import jax
import jax.numpy as jnp
from jax import lax
from jax.experimental import pallas as pl
from jax.experimental.pallas import tpu as pltpu

NUM_CLASSES = 100
OUT_PAD = 128            # lane-dense classifier output width (>= NUM_CLASSES)
FEAT_CHANNELS = 1920     # densenet201 classifier in_features
STEM_CHANNELS = 64
POOL = 7                 # self.avgpool_size
HW = POOL * POOL         # 49 pooled spatial positions
B_BLOCK = 8              # batch elements per grid step (392 = 8*49 rows, 8-aligned)


# --------------------------------------------------------------------------
# Fused Pallas kernel: per B_BLOCK batch elements
#   1x1 conv (64->1920) -> ReLU -> 7x7 avg-pool (MXU) -> Linear(1920 -> 128 pad)
# --------------------------------------------------------------------------
def _fused_head_kernel(x_ref, pw_ref, pb_ref, avg_ref, fw_ref, fb_ref, o_ref):
    # x_ref:   (B_BLOCK*HW, C_in)     bf16 stem activations, channels last
    # pw_ref:  (C_in, C_out)          bf16 1x1-conv weight
    # pb_ref:  (1, C_out)             f32  1x1-conv bias
    # avg_ref: (B_BLOCK, B_BLOCK*HW)  f32  block-diagonal 1/49 averaging matrix
    # fw_ref:  (C_out, OUT_PAD)       bf16 classifier weight (zero-padded cols)
    # fb_ref:  (1, OUT_PAD)           f32  classifier bias (zero-padded)
    # o_ref:   (B_BLOCK, OUT_PAD)     f32  logits
    feat = jnp.dot(x_ref[...], pw_ref[...],
                   preferred_element_type=jnp.float32)         # (B*HW, C_out)
    feat = jnp.maximum(feat + pb_ref[...], 0.0)                # bias + ReLU (f32)
    # F.avg_pool2d(kernel=7): block-diagonal MXU matmul, no reshape/XLU reduce.
    pooled = jnp.dot(avg_ref[...], feat,
                     preferred_element_type=jnp.float32)       # (B, C_out)
    # Classifier matmul, lane-dense 128-wide output (unmasked vst).
    logits = jnp.dot(pooled.astype(jnp.bfloat16), fw_ref[...],
                     preferred_element_type=jnp.float32) + fb_ref[...]
    o_ref[...] = logits


def fused_head(stem_out, proj_w, proj_b, fc_w, fc_b, *, b_block=B_BLOCK):
    """stem_out: (N, HW, STEM_CHANNELS) bf16, channels last."""
    n = stem_out.shape[0]
    n_pad = pl.cdiv(n, b_block) * b_block
    grid = n_pad // b_block

    # Activations: flatten to (n_pad*HW, C_in); zero-pad extra batch rows
    # (padded rows only affect the discarded padded output rows because the
    # averaging matrix is block diagonal per batch element).
    x = stem_out.reshape(n * HW, STEM_CHANNELS)
    if n_pad != n:
        x = jnp.pad(x, ((0, (n_pad - n) * HW), (0, 0)))

    # 1x1-conv weight (OIHW) -> (C_in, C_out), bf16 for the MXU.
    pw = jnp.transpose(
        proj_w.reshape(FEAT_CHANNELS, STEM_CHANNELS)).astype(jnp.bfloat16)
    pb = proj_b.reshape(1, FEAT_CHANNELS).astype(jnp.float32)
    # Classifier weight (out, in) -> (in, out), zero-padded to 128 lanes, bf16.
    fw = jnp.pad(jnp.transpose(fc_w),
                 ((0, 0), (0, OUT_PAD - NUM_CLASSES))).astype(jnp.bfloat16)
    fb = jnp.pad(fc_b, (0, OUT_PAD - NUM_CLASSES)).reshape(1, OUT_PAD)
    fb = fb.astype(jnp.float32)
    # Block-diagonal averaging matrix: row r averages cols [r*HW, (r+1)*HW).
    row = lax.broadcasted_iota(jnp.int32, (b_block, b_block * HW), 0)
    col = lax.broadcasted_iota(jnp.int32, (b_block, b_block * HW), 1)
    avg = jnp.where(col // HW == row, 1.0 / HW, 0.0).astype(jnp.float32)

    flops = (2 * n_pad * HW * (STEM_CHANNELS + b_block) * FEAT_CHANNELS
             + 2 * n_pad * FEAT_CHANNELS * OUT_PAD)
    bytes_accessed = (x.size * 2 + pw.size * 2 + pb.size * 4 + avg.size * 4
                      + fw.size * 2 + fb.size * 4 + n_pad * OUT_PAD * 4)

    out = pl.pallas_call(
        _fused_head_kernel,
        grid=(grid,),
        out_shape=jax.ShapeDtypeStruct((n_pad, OUT_PAD), jnp.float32),
        in_specs=[
            pl.BlockSpec((b_block * HW, STEM_CHANNELS), lambda b: (b, 0)),
            # Constant-index blocks below are DMA'd once and stay resident.
            pl.BlockSpec((STEM_CHANNELS, FEAT_CHANNELS), lambda b: (0, 0)),
            pl.BlockSpec((1, FEAT_CHANNELS), lambda b: (0, 0)),
            pl.BlockSpec((b_block, b_block * HW), lambda b: (0, 0)),
            pl.BlockSpec((FEAT_CHANNELS, OUT_PAD), lambda b: (0, 0)),
            pl.BlockSpec((1, OUT_PAD), lambda b: (0, 0)),
        ],
        out_specs=pl.BlockSpec((b_block, OUT_PAD), lambda b: (b, 0)),
        compiler_params=pltpu.CompilerParams(
            dimension_semantics=("parallel",),
            vmem_limit_bytes=16 * 1024 * 1024),
        cost_estimate=pl.CostEstimate(
            flops=flops, transcendentals=0, bytes_accessed=bytes_accessed),
    )(x, pw, pb, avg, fw, fb)
    return out[:n, :NUM_CLASSES]


# --------------------------------------------------------------------------
# Deterministic parameters + stand-in stem (plain JAX glue, emits NHWC bf16).
# --------------------------------------------------------------------------
def init_params(key):
    k1, k2, k3, k4, k5 = jax.random.split(key, 5)
    return {
        # stand-in stem
        "conv1_w": jax.random.normal(k1, (STEM_CHANNELS, 3, 7, 7), jnp.float32)
                   * (1.0 / (3 * 49) ** 0.5),
        "conv1_b": jnp.zeros((STEM_CHANNELS,), jnp.float32),
        "proj_w": jax.random.normal(
            k2, (FEAT_CHANNELS, STEM_CHANNELS, 1, 1), jnp.float32)
            * (1.0 / STEM_CHANNELS ** 0.5),
        "proj_b": jax.random.normal(k3, (FEAT_CHANNELS,), jnp.float32) * 0.01,
        # classifier nn.Linear(1920, num_classes) -- PyTorch (out, in) layout.
        "fc_w": jax.random.normal(k4, (NUM_CLASSES, FEAT_CHANNELS), jnp.float32)
                * (1.0 / FEAT_CHANNELS ** 0.5),
        "fc_b": jax.random.normal(k5, (NUM_CLASSES,), jnp.float32) * 0.01,
    }


def stem_standin(x, params, out_dtype=jnp.bfloat16):
    """conv7x7 s2 p3 -> ReLU -> maxpool3x3 s2 p1, output channels last.

    28x28 input -> (N, 7, 7, 64) -> flattened to (N, 49, 64).  The final 1x1
    conv of the stand-in backbone lives inside the fused Pallas kernel.  The
    stem emits bf16 so the kernel's streaming activation DMA is half-width.
    """
    y = lax.conv_general_dilated(
        x, params["conv1_w"], window_strides=(2, 2),
        padding=[(3, 3), (3, 3)],
        dimension_numbers=("NCHW", "OIHW", "NHWC"))          # (N, 14, 14, 64)
    y = jnp.maximum(y + params["conv1_b"].reshape(1, 1, 1, -1), 0.0)
    y = lax.reduce_window(
        y, -jnp.inf, lax.max,
        window_dimensions=(1, 3, 3, 1), window_strides=(1, 2, 2, 1),
        padding=[(0, 0), (1, 1), (1, 1), (0, 0)])            # (N, 7, 7, 64)
    n = y.shape[0]
    return y.reshape(n, HW, STEM_CHANNELS).astype(out_dtype)


def modified_densenet201_forward(x, params):
    stem = stem_standin(x, params)                           # "self.features"
    return fused_head(stem, params["proj_w"], params["proj_b"],
                      params["fc_w"], params["fc_b"])


# --------------------------------------------------------------------------
def _reference_forward(x, params):
    """Plain-JAX (f32) reference of the same forward."""
    stem = stem_standin(x, params, out_dtype=jnp.float32)    # (N, 49, 64)
    pw = jnp.transpose(params["proj_w"].reshape(FEAT_CHANNELS, STEM_CHANNELS))
    feat = stem @ pw + params["proj_b"].reshape(1, 1, FEAT_CHANNELS)
    feat = jnp.maximum(feat, 0.0)                            # F.relu
    pooled = jnp.mean(feat, axis=1)                          # avg_pool2d(7).view
    return pooled @ params["fc_w"].T + params["fc_b"]        # classifier


if __name__ == "__main__":
    key = jax.random.PRNGKey(0)
    pkey, xkey, xkey2 = jax.random.split(key, 3)
    params = init_params(pkey)

    # Small image input; the stand-in stem downsamples 28 -> 7 so the 7x7
    # avg-pool matches the module's avgpool_size exactly.
    x = jax.random.normal(xkey, (2, 3, 28, 28), jnp.float32)
    fwd = jax.jit(modified_densenet201_forward)
    out = jax.block_until_ready(fwd(x, params))
    assert out.shape == (2, NUM_CLASSES)
    ref = _reference_forward(x, params)
    assert jnp.allclose(out, ref, rtol=2e-2, atol=2e-2), "mismatch vs reference"

    # Second run exercising batch padding + multiple grid steps (9 -> 16 pad,
    # grid=(2,) so both v7x TensorCores get a step).
    x2 = jax.random.normal(xkey2, (9, 3, 28, 28), jnp.float32)
    out2 = jax.block_until_ready(jax.jit(modified_densenet201_forward)(x2, params))
    ref2 = _reference_forward(x2, params)
    assert out2.shape == (9, NUM_CLASSES)
    assert jnp.allclose(out2, ref2, rtol=2e-2, atol=2e-2), "mismatch vs reference (padded batch)"

    print("KERNEL_OK")
</pallas_src>

<mosaic_0001>
module attributes {stable_mosaic.version = 11 : i64} {
  func.func @_fused_head_kernel(%arg0: i32, %arg1: memref<392x64xbf16, #tpu.memory_space<vmem>>, %arg2: memref<64x1920xbf16, #tpu.memory_space<vmem>>, %arg3: memref<1x1920xf32, #tpu.memory_space<vmem>>, %arg4: memref<8x392xf32, #tpu.memory_space<vmem>>, %arg5: memref<1920x128xbf16, #tpu.memory_space<vmem>>, %arg6: memref<1x128xf32, #tpu.memory_space<vmem>>, %arg7: memref<8x128xf32, #tpu.memory_space<vmem>>) attributes {dimension_semantics = [#tpu.dimension_semantics<parallel>], iteration_bounds = array<i64: 1>, scalar_prefetch = 0 : i64, scratch_operands = 0 : i64, tpu.core_type = #tpu.core_type<tc>, window_params = [{transform_indices = @transform_0, window_bounds = array<i64: 392, 64>}, {pipeline_mode = #tpu.pipeline_mode<synchronous>, transform_indices = @transform_1, window_bounds = array<i64: 64, 1920>}, {pipeline_mode = #tpu.pipeline_mode<synchronous>, transform_indices = @transform_2, window_bounds = array<i64: 1, 1920>}, {pipeline_mode = #tpu.pipeline_mode<synchronous>, transform_indices = @transform_3, window_bounds = array<i64: 8, 392>}, {pipeline_mode = #tpu.pipeline_mode<synchronous>, transform_indices = @transform_4, window_bounds = array<i64: 1920, 128>}, {pipeline_mode = #tpu.pipeline_mode<synchronous>, transform_indices = @transform_5, window_bounds = array<i64: 1, 128>}, {transform_indices = @transform_6, window_bounds = array<i64: 8, 128>}]} {
    %c0 = arith.constant 0 : index
    %c0_0 = arith.constant 0 : index
    %0 = vector.load %arg1[%c0, %c0_0] : memref<392x64xbf16, #tpu.memory_space<vmem>>, vector<392x64xbf16>
    %c0_1 = arith.constant 0 : index
    %c0_2 = arith.constant 0 : index
    %1 = vector.load %arg2[%c0_1, %c0_2] : memref<64x1920xbf16, #tpu.memory_space<vmem>>, vector<64x1920xbf16>
    %cst = arith.constant dense<0.000000e+00> : vector<392x1920xf32>
    %2 = tpu.matmul %0, %1, %cst {dimension_numbers = #tpu.dot_dimension_numbers<[1], [0], [0], [1], [0, 0, 1, 1], [], []>} : vector<392x64xbf16>, vector<64x1920xbf16>, vector<392x1920xf32> -> vector<392x1920xf32>
    %c0_3 = arith.constant 0 : index
    %c0_4 = arith.constant 0 : index
    %3 = vector.load %arg3[%c0_3, %c0_4] : memref<1x1920xf32, #tpu.memory_space<vmem>>, vector<1x1920xf32>
    %4 = vector.broadcast %3 : vector<1x1920xf32> to vector<392x1920xf32>
    %5 = arith.addf %2, %4 : vector<392x1920xf32>
    %cst_5 = arith.constant 0.000000e+00 : f32
    %6 = vector.broadcast %cst_5 : f32 to vector<392x1920xf32>
    %7 = arith.maximumf %5, %6 : vector<392x1920xf32>
    %c0_6 = arith.constant 0 : index
    %c0_7 = arith.constant 0 : index
    %8 = vector.load %arg4[%c0_6, %c0_7] : memref<8x392xf32, #tpu.memory_space<vmem>>, vector<8x392xf32>
    %cst_8 = arith.constant dense<0.000000e+00> : vector<8x1920xf32>
    %9 = tpu.matmul %8, %7, %cst_8 {dimension_numbers = #tpu.dot_dimension_numbers<[1], [0], [0], [1], [0, 0, 1, 1], [], []>} : vector<8x392xf32>, vector<392x1920xf32>, vector<8x1920xf32> -> vector<8x1920xf32>
    %10 = arith.truncf %9 : vector<8x1920xf32> to vector<8x1920xbf16>
    %c0_9 = arith.constant 0 : index
    %c0_10 = arith.constant 0 : index
    %11 = vector.load %arg5[%c0_9, %c0_10] : memref<1920x128xbf16, #tpu.memory_space<vmem>>, vector<1920x128xbf16>
    %cst_11 = arith.constant dense<0.000000e+00> : vector<8x128xf32>
    %12 = tpu.matmul %10, %11, %cst_11 {dimension_numbers = #tpu.dot_dimension_numbers<[1], [0], [0], [1], [0, 0, 1, 1], [], []>} : vector<8x1920xbf16>, vector<1920x128xbf16>, vector<8x128xf32> -> vector<8x128xf32>
    %c0_12 = arith.constant 0 : index
    %c0_13 = arith.constant 0 : index
    %13 = vector.load %arg6[%c0_12, %c0_13] : memref<1x128xf32, #tpu.memory_space<vmem>>, vector<1x128xf32>
    %14 = vector.broadcast %13 : vector<1x128xf32> to vector<8x128xf32>
    %15 = arith.addf %12, %14 : vector<8x128xf32>
    %c0_14 = arith.constant 0 : index
    %c0_15 = arith.constant 0 : index
    %16 = vector.load %arg7[%c0_14, %c0_15] : memref<8x128xf32, #tpu.memory_space<vmem>>, vector<8x128xf32>
    tpu.vector_store %arg7[%c0_14, %c0_15], %15 {strides = array<i32>} : memref<8x128xf32, #tpu.memory_space<vmem>>, vector<8x128xf32>,
    return
  }
  func.func @transform_0(%arg0: i32) -> (i32, i32) {
    %c0_i32 = arith.constant 0 : i32
    %c0_i32_0 = arith.constant 0 : i32
    return %arg0, %c0_i32 : i32, i32
  }
  func.func @transform_1(%arg0: i32) -> (i32, i32) {
    %c0_i32 = arith.constant 0 : i32
    %c0_i32_0 = arith.constant 0 : i32
    %c0_i32_1 = arith.constant 0 : i32
    return %c0_i32, %c0_i32_0 : i32, i32
  }
  func.func @transform_2(%arg0: i32) -> (i32, i32) {
    %c0_i32 = arith.constant 0 : i32
    %c0_i32_0 = arith.constant 0 : i32
    %c0_i32_1 = arith.constant 0 : i32
    return %c0_i32, %c0_i32_0 : i32, i32
  }
  func.func @transform_3(%arg0: i32) -> (i32, i32) {
    %c0_i32 = arith.constant 0 : i32
    %c0_i32_0 = arith.constant 0 : i32
    %c0_i32_1 = arith.constant 0 : i32
    return %c0_i32, %c0_i32_0 : i32, i32
  }
  func.func @transform_4(%arg0: i32) -> (i32, i32) {
    %c0_i32 = arith.constant 0 : i32
    %c0_i32_0 = arith.constant 0 : i32
    %c0_i32_1 = arith.constant 0 : i32
    return %c0_i32, %c0_i32_0 : i32, i32
  }
  func.func @transform_5(%arg0: i32) -> (i32, i32) {
    %c0_i32 = arith.constant 0 : i32
    %c0_i32_0 = arith.constant 0 : i32
    %c0_i32_1 = arith.constant 0 : i32
    return %c0_i32, %c0_i32_0 : i32, i32
  }
  func.func @transform_6(%arg0: i32) -> (i32, i32) {
    %c0_i32 = arith.constant 0 : i32
    %c0_i32_0 = arith.constant 0 : i32
    return %arg0, %c0_i32 : i32, i32
  }
}

</mosaic_0001>

<llo_original>
// kernel: modified_densenet201_forward.1
$region0: #{modified_densenet201_forward.1}
  #allocation0 [shape = 'u32[]', space=smem, size = 0x4, offset = 0x4, fixed_abs, tag = 'smem constant byte address 0x4 - core index']
  #allocation1 [shape = 'u32[72,128]{1,0:T(1,128)}', space=vmem, size = 0x9000, scoped, tag = 'internal scratch']
  %s0 = inlined_call_operand.vmem [shape: bf16[392,64], index: 0, kind: input, shape index: {}]
  %s1 = inlined_call_operand.vmem [shape: bf16[64,1920], index: 1, kind: input, shape index: {}]
  %s2 = inlined_call_operand.vmem [shape: f32[1,1920], index: 2, kind: input, shape index: {}]
  %s3 = inlined_call_operand.vmem [shape: f32[8,392], index: 3, kind: input, shape index: {}]
  %s4 = inlined_call_operand.vmem [shape: bf16[1920,128], index: 4, kind: input, shape index: {}]
  %s5 = inlined_call_operand.vmem [shape: f32[1,128], index: 5, kind: input, shape index: {}]
  %s6 = inlined_call_operand.vmem [shape: f32[8,128], index: 6, kind: output, shape index: {}]
  %s7 = sld [smem:[#allocation0]]
  $region34: #{modified_densenet201_forward.1} parent=0
    _
  %s9 = ssub.s32 1, %s7
  %s10 = scalar_select 0, %s9, %s7
  // Predicated region
  $region2: #{modified_densenet201_forward.1} parent=0 // pred_check
    _
  $region3: #{modified_densenet201_forward.1} parent=0 // pred_check_branch
    %12 = sbr.rel (0) target = $region5
  $region4: #{modified_densenet201_forward.1} parent=0 // pred_region
    _
  $region5: #{modified_densenet201_forward.1} parent=0 // pred_fallthru
    _
  // Predicated region
  $region6: #{modified_densenet201_forward.1} parent=0 // pred_check
    _
  $region7: #{modified_densenet201_forward.1} parent=0 // pred_check_branch
    %14 = sbr.rel (0) target = $region9
  $region8: #{modified_densenet201_forward.1} parent=0 // pred_region
    _
  $region9: #{modified_densenet201_forward.1} parent=0 // pred_fallthru
    _
  // Predicated region
  $region10: #{modified_densenet201_forward.1} parent=0 // pred_check
    _
  $region11: #{modified_densenet201_forward.1} parent=0 // pred_check_branch
    %16 = sbr.rel (0) target = $region13
  $region12: #{modified_densenet201_forward.1} parent=0 // pred_region
    _
  $region13: #{modified_densenet201_forward.1} parent=0 // pred_fallthru
    _
  // Predicated region
  $region14: #{modified_densenet201_forward.1} parent=0 // pred_check
    _
  $region15: #{modified_densenet201_forward.1} parent=0 // pred_check_branch
    %18 = sbr.rel (0) target = $region17
  $region16: #{modified_densenet201_forward.1} parent=0 // pred_region
    _
  $region17: #{modified_densenet201_forward.1} parent=0 // pred_fallthru
    _
  // Predicated region
  $region18: #{modified_densenet201_forward.1} parent=0 // pred_check
    _
  $region19: #{modified_densenet201_forward.1} parent=0 // pred_check_branch
    %20 = sbr.rel (0) target = $region21
  $region20: #{modified_densenet201_forward.1} parent=0 // pred_region
    _
  $region21: #{modified_densenet201_forward.1} parent=0 // pred_fallthru
    _
  // Predicated region
  $region22: #{modified_densenet201_forward.1} parent=0 // pred_check
    _
  $region23: #{modified_densenet201_forward.1} parent=0 // pred_check_branch
    %22 = sbr.rel (0) target = $region25
  $region24: #{modified_densenet201_forward.1} parent=0 // pred_region
    _
  $region25: #{modified_densenet201_forward.1} parent=0 // pred_fallthru
    _
  %v24 = vld [vmem:[%s0] sm:$0xf]
  %v25 = vld [vmem:[%s0 + $0x4] sm:$0xf]
  %v26 = vld [vmem:[%s0 + $0x8] sm:$0xf]
  %v27 = vld [vmem:[%s0 + $0xc] sm:$0xf]
  %v28 = vld [vmem:[%s0 + $0x10] sm:$0xf]
  %v29 = vld [vmem:[%s0 + $0x14] sm:$0xf]
  %v30 = vld [vmem:[%s0 + $0x18] sm:$0xf]
  %v31 = vld [vmem:[%s0 + $0x1c] sm:$0xf]
  %v32 = vld [vmem:[%s0 + $0x20] sm:$0xf]
  %v33 = vld [vmem:[%s0 + $0x24] sm:$0xf]
  %v34 = vld [vmem:[%s0 + $0x28] sm:$0xf]
  %v35 = vld [vmem:[%s0 + $0x2c] sm:$0xf]
  %v36 = vld [vmem:[%s0 + $0x30] sm:$0xf]
  %v37 = vld [vmem:[%s0 + $0x34] sm:$0xf]
  %v38 = vld [vmem:[%s0 + $0x38] sm:$0xf]
  %v39 = vld [vmem:[%s0 + $0x3c] sm:$0xf]
  %v40 = vld [vmem:[%s0 + $0x40] sm:$0xf]
  %v41 = vld [vmem:[%s0 + $0x44] sm:$0xf]
  %v42 = vld [vmem:[%s0 + $0x48] sm:$0xf]
  %v43 = vld [vmem:[%s0 + $0x4c] sm:$0xf]
  %v44 = vld [vmem:[%s0 + $0x50] sm:$0xf]
  %v45 = vld [vmem:[%s0 + $0x54] sm:$0xf]
  %v46 = vld [vmem:[%s0 + $0x58] sm:$0xf]
  %v47 = vld [vmem:[%s0 + $0x5c] sm:$0xf]
  %v48 = vld [vmem:[%s0 + $0x60] sm:$0xf]
  %v49 = vld [vmem:[%s0 + $0x64] sm:$0xf]
  %v50 = vld [vmem:[%s0 + $0x68] sm:$0xf]
  %v51 = vld [vmem:[%s0 + $0x6c] sm:$0xf]
  %v52 = vld [vmem:[%s0 + $0x70] sm:$0xf]
  %v53 = vld [vmem:[%s0 + $0x74] sm:$0xf]
  %v54 = vld [vmem:[%s0 + $0x78] sm:$0xf]
  %v55 = vld [vmem:[%s0 + $0x7c] sm:$0xf]
  %v56 = vld [vmem:[%s0 + $0x80] sm:$0xf]
  %v57 = vld [vmem:[%s0 + $0x84] sm:$0xf]
  %v58 = vld [vmem:[%s0 + $0x88] sm:$0xf]
  %v59 = vld [vmem:[%s0 + $0x8c] sm:$0xf]
  %v60 = vld [vmem:[%s0 + $0x90] sm:$0xf]
  %v61 = vld [vmem:[%s0 + $0x94] sm:$0xf]
  %v62 = vld [vmem:[%s0 + $0x98] sm:$0xf]
  %v63 = vld [vmem:[%s0 + $0x9c] sm:$0xf]
  %v64 = vld [vmem:[%s0 + $0xa0] sm:$0xf]
  %v65 = vld [vmem:[%s0 + $0xa4] sm:$0xf]
  %v66 = vld [vmem:[%s0 + $0xa8] sm:$0xf]
  %v67 = vld [vmem:[%s0 + $0xac] sm:$0xf]
  %v68 = vld [vmem:[%s0 + $0xb0] sm:$0xf]
  %v69 = vld [vmem:[%s0 + $0xb4] sm:$0xf]
  %v70 = vld [vmem:[%s0 + $0xb8] sm:$0xf]
  %v71 = vld [vmem:[%s0 + $0xbc] sm:$0xf]
  %v72 = vld [vmem:[%s0 + $0xc0] sm:$0xf]
  %v73 = vld [vmem:[%s1] sm:$0xff]
  %v74 = vld [vmem:[%s1 + $0x8] sm:$0xff]
  %v75 = vld [vmem:[%s1 + $0x10] sm:$0xff]
  %v76 = vld [vmem:[%s1 + $0x18] sm:$0xff]
  %v77 = vld [vmem:[%s1 + $0x20] sm:$0xff]
  %v78 = vld [vmem:[%s1 + $0x28] sm:$0xff]
  %v79 = vld [vmem:[%s1 + $0x30] sm:$0xff]
  %v80 = vld [vmem:[%s1 + $0x38] sm:$0xf]
  %v81 = vld [vmem:[%s1 + $0x3c] sm:$0xff]
  %v82 = vld [vmem:[%s1 + $0x44] sm:$0xff]
  %v83 = vld [vmem:[%s1 + $0x4c] sm:$0xff]
  %v84 = vld [vmem:[%s1 + $0x54] sm:$0xff]
  %v85 = vld [vmem:[%s1 + $0x5c] sm:$0xff]
  %v86 = vld [vmem:[%s1 + $0x64] sm:$0xff]
  %v87 = vld [vmem:[%s1 + $0x6c] sm:$0xff]
  %v88 = vld [vmem:[%s1 + $0x74] sm:$0xf]
  %v89 = vld [vmem:[%s1 + $0x78] sm:$0xff]
  %v90 = vld [vmem:[%s1 + $0x80] sm:$0xff]
  %v91 = vld [vmem:[%s1 + $0x88] sm:$0xff]
  %v92 = vld [vmem:[%s1 + $0x90] sm:$0xff]
  %v93 = vld [vmem:[%s1 + $0x98] sm:$0xff]
  %v94 = vld [vmem:[%s1 + $0xa0] sm:$0xff]
  %v95 = vld [vmem:[%s1 + $0xa8] sm:$0xff]
  %v96 = vld [vmem:[%s1 + $0xb0] sm:$0xf]
  %v97 = vld [vmem:[%s1 + $0xb4] sm:$0xff]
  %v98 = vld [vmem:[%s1 + $0xbc] sm:$0xff]
  %v99 = vld [vmem:[%s1 + $0xc4] sm:$0xff]
  %v100 = vld [vmem:[%s1 + $0xcc] sm:$0xff]
  %v101 = vld [vmem:[%s1 + $0xd4] sm:$0xff]
  %v102 = vld [vmem:[%s1 + $0xdc] sm:$0xff]
  %v103 = vld [vmem:[%s1 + $0xe4] sm:$0xff]
  %v104 = vld [vmem:[%s1 + $0xec] sm:$0xf]
  %v105 = vld [vmem:[%s1 + $0xf0] sm:$0xff]
  %v106 = vld [vmem:[%s1 + $0xf8] sm:$0xff]
  %v107 = vld [vmem:[%s1 + $0x100] sm:$0xff]
  %v108 = vld [vmem:[%s1 + $0x108] sm:$0xff]
  %v109 = vld [vmem:[%s1 + $0x110] sm:$0xff]
  %v110 = vld [vmem:[%s1 + $0x118] sm:$0xff]
  %v111 = vld [vmem:[%s1 + $0x120] sm:$0xff]
  %v112 = vld [vmem:[%s1 + $0x128] sm:$0xf]
  %v113 = vld [vmem:[%s1 + $0x12c] sm:$0xff]
  %v114 = vld [vmem:[%s1 + $0x134] sm:$0xff]
  %v115 = vld [vmem:[%s1 + $0x13c] sm:$0xff]
  %v116 = vld [vmem:[%s1 + $0x144] sm:$0xff]
  %v117 = vld [vmem:[%s1 + $0x14c] sm:$0xff]
  %v118 = vld [vmem:[%s1 + $0x154] sm:$0xff]
  %v119 = vld [vmem:[%s1 + $0x15c] sm:$0xff]
  %v120 = vld [vmem:[%s1 + $0x164] sm:$0xf]
  %v121 = vld [vmem:[%s1 + $0x168] sm:$0xff]
  %v122 = vld [vmem:[%s1 + $0x170] sm:$0xff]
  %v123 = vld [vmem:[%s1 + $0x178] sm:$0xff]
  %v124 = vld [vmem:[%s1 + $0x180] sm:$0xff]
  %v125 = vld [vmem:[%s1 + $0x188] sm:$0xff]
  %v126 = vld [vmem:[%s1 + $0x190] sm:$0xff]
  %v127 = vld [vmem:[%s1 + $0x198] sm:$0xff]
  %v128 = vld [vmem:[%s1 + $0x1a0] sm:$0xf]
  %v129 = vld [vmem:[%s1 + $0x1a4] sm:$0xff]
  %v130 = vld [vmem:[%s1 + $0x1ac] sm:$0xff]
  %v131 = vld [vmem:[%s1 + $0x1b4] sm:$0xff]
  %v132 = vld [vmem:[%s1 + $0x1bc] sm:$0xff]
  %v133 = vld [vmem:[%s1 + $0x1c4] sm:$0xff]
  %v134 = vld [vmem:[%s1 + $0x1cc] sm:$0xff]
  %v135 = vld [vmem:[%s1 + $0x1d4] sm:$0xff]
  %v136 = vld [vmem:[%s1 + $0x1dc] sm:$0xf]
  %v137 = vld [vmem:[%s2] sm:$0xff]
  %v138 = vld [vmem:[%s2 + $0x8] sm:$0xff]
  %v141 = vperm.slane %v137, 0
  %v142 = vperm.slane %v137, 1
  %v143 = vperm.slane %v137, 2
  %v144 = vperm.slane %v137, 3
  %v145 = vperm.slane %v137, 4
  %v146 = vperm.slane %v137, 5
  %v147 = vperm.slane %v137, 6
  %v148 = vperm.slane %v137, 7
  %v149 = vperm.slane %v138, 0
  %v150 = vperm.slane %v138, 1
  %v151 = vperm.slane %v138, 2
  %v152 = vperm.slane %v138, 3
  %v153 = vperm.slane %v138, 4
  %v154 = vperm.slane %v138, 5
  %v155 = vperm.slane %v138, 6
  %v220 = vunpack.c.l.b16 %v24
  %v221 = vunpack.c.l.b16 %v25
  %v222 = vunpack.c.l.b16 %v26
  %v223 = vunpack.c.l.b16 %v27
  %v224 = vunpack.c.l.b16 %v28
  %v225 = vunpack.c.l.b16 %v29
  %v226 = vunpack.c.l.b16 %v30
  %v227 = vunpack.c.l.b16 %v31
  %v228 = vunpack.c.l.b16 %v32
  %v229 = vunpack.c.l.b16 %v33
  %v230 = vunpack.c.l.b16 %v34
  %v231 = vunpack.c.l.b16 %v35
  %v232 = vunpack.c.l.b16 %v36
  %v233 = vunpack.c.l.b16 %v37
  %v234 = vunpack.c.l.b16 %v38
  %v235 = vunpack.c.l.b16 %v39
  %v236 = vunpack.c.l.b16 %v40
  %v237 = vunpack.c.l.b16 %v41
  %v238 = vunpack.c.l.b16 %v42
  %v239 = vunpack.c.l.b16 %v43
  %v240 = vunpack.c.l.b16 %v44
  %v241 = vunpack.c.l.b16 %v45
  %v242 = vunpack.c.l.b16 %v46
  %v243 = vunpack.c.l.b16 %v47
  %v244 = vunpack.c.l.b16 %v48
  %v245 = vunpack.c.l.b16 %v49
  %v246 = vunpack.c.l.b16 %v50
  %v247 = vunpack.c.l.b16 %v51
  %v248 = vunpack.c.l.b16 %v52
  %v249 = vunpack.c.l.b16 %v53
  %v250 = vunpack.c.l.b16 %v54
  %v251 = vunpack.c.l.b16 %v55
  %v252 = vunpack.c.l.b16 %v56
  %v253 = vunpack.c.l.b16 %v57
  %v254 = vunpack.c.l.b16 %v58
  %v255 = vunpack.c.l.b16 %v59
  %v256 = vunpack.c.l.b16 %v60
  %v257 = vunpack.c.l.b16 %v61
  %v258 = vunpack.c.l.b16 %v62
  %v259 = vunpack.c.l.b16 %v63
  %v260 = vunpack.c.l.b16 %v64
  %v261 = vunpack.c.l.b16 %v65
  %v262 = vunpack.c.l.b16 %v66
  %v263 = vunpack.c.l.b16 %v67
  %v264 = vunpack.c.l.b16 %v68
  %v265 = vunpack.c.l.b16 %v69
  %v266 = vunpack.c.l.b16 %v70
  %v267 = vunpack.c.l.b16 %v71
  %v268 = vunpack.c.l.b16 %v72
  %v269 = vpack.c.b16 %v221, %v220
  %v270 = vpack.c.b16 %v223, %v222
  %v271 = vpack.c.b16 %v225, %v224
  %v272 = vpack.c.b16 %v227, %v226
  %v273 = vpack.c.b16 %v229, %v228
  %v274 = vpack.c.b16 %v231, %v230
  %v275 = vpack.c.b16 %v233, %v232
  %v276 = vpack.c.b16 %v235, %v234
  %v277 = vpack.c.b16 %v237, %v236
  %v278 = vpack.c.b16 %v239, %v238
  %v279 = vpack.c.b16 %v241, %v240
  %v280 = vpack.c.b16 %v243, %v242
  %v281 = vpack.c.b16 %v245, %v244
  %v282 = vpack.c.b16 %v247, %v246
  %v283 = vpack.c.b16 %v249, %v248
  %v284 = vpack.c.b16 %v251, %v250
  %v285 = vpack.c.b16 %v253, %v252
  %v286 = vpack.c.b16 %v255, %v254
  %v287 = vpack.c.b16 %v257, %v256
  %v288 = vpack.c.b16 %v259, %v258
  %v289 = vpack.c.b16 %v261, %v260
  %v290 = vpack.c.b16 %v263, %v262
  %v291 = vpack.c.b16 %v265, %v264
  %v292 = vpack.c.b16 %v267, %v266
  %v293 = vpack.c.b16 %v268, %v268
  %v358 = vunpack.c.l.b16 %v73
  %v359 = vunpack.c.h.b16 %v73
  %v360 = vunpack.c.l.b16 %v74
  %v361 = vunpack.c.h.b16 %v74
  %v362 = vunpack.c.l.b16 %v75
  %v363 = vunpack.c.h.b16 %v75
  %v364 = vunpack.c.l.b16 %v76
  %v365 = vunpack.c.h.b16 %v76
  %v366 = vunpack.c.l.b16 %v77
  %v367 = vunpack.c.h.b16 %v77
  %v368 = vunpack.c.l.b16 %v78
  %v369 = vunpack.c.h.b16 %v78
  %v370 = vunpack.c.l.b16 %v79
  %v371 = vunpack.c.h.b16 %v79
  %v372 = vunpack.c.l.b16 %v80
  %v373 = vunpack.c.l.b16 %v81
  %v374 = vunpack.c.h.b16 %v81
  %v375 = vunpack.c.l.b16 %v82
  %v376 = vunpack.c.h.b16 %v82
  %v377 = vunpack.c.l.b16 %v83
  %v378 = vunpack.c.h.b16 %v83
  %v379 = vunpack.c.l.b16 %v84
  %v380 = vunpack.c.h.b16 %v84
  %v381 = vunpack.c.l.b16 %v85
  %v382 = vunpack.c.h.b16 %v85
  %v383 = vunpack.c.l.b16 %v86
  %v384 = vunpack.c.h.b16 %v86
  %v385 = vunpack.c.l.b16 %v87
  %v386 = vunpack.c.h.b16 %v87
  %v387 = vunpack.c.l.b16 %v88
  %v388 = vunpack.c.l.b16 %v89
  %v389 = vunpack.c.h.b16 %v89
  %v390 = vunpack.c.l.b16 %v90
  %v391 = vunpack.c.h.b16 %v90
  %v392 = vunpack.c.l.b16 %v91
  %v393 = vunpack.c.h.b16 %v91
  %v394 = vunpack.c.l.b16 %v92
  %v395 = vunpack.c.h.b16 %v92
  %v396 = vunpack.c.l.b16 %v93
  %v397 = vunpack.c.h.b16 %v93
  %v398 = vunpack.c.l.b16 %v94
  %v399 = vunpack.c.h.b16 %v94
  %v400 = vunpack.c.l.b16 %v95
  %v401 = vunpack.c.h.b16 %v95
  %v402 = vunpack.c.l.b16 %v96
  %v403 = vunpack.c.l.b16 %v97
  %v404 = vunpack.c.h.b16 %v97
  %v405 = vunpack.c.l.b16 %v98
  %v406 = vunpack.c.h.b16 %v98
  %v407 = vunpack.c.l.b16 %v99
  %v408 = vunpack.c.h.b16 %v99
  %v409 = vunpack.c.l.b16 %v100
  %v410 = vunpack.c.h.b16 %v100
  %v411 = vunpack.c.l.b16 %v101
  %v412 = vunpack.c.h.b16 %v101
  %v413 = vunpack.c.l.b16 %v102
  %v414 = vunpack.c.h.b16 %v102
  %v415 = vunpack.c.l.b16 %v103
  %v416 = vunpack.c.h.b16 %v103
  %v417 = vunpack.c.l.b16 %v104
  %v418 = vunpack.c.l.b16 %v105
  %v419 = vunpack.c.h.b16 %v105
  %v420 = vunpack.c.l.b16 %v106
  %v421 = vunpack.c.h.b16 %v106
  %v422 = vunpack.c.l.b16 %v107
  %v423 = vunpack.c.h.b16 %v107
  %v424 = vunpack.c.l.b16 %v108
  %v425 = vunpack.c.h.b16 %v108
  %v426 = vunpack.c.l.b16 %v109
  %v427 = vunpack.c.h.b16 %v109
  %v428 = vunpack.c.l.b16 %v110
  %v429 = vunpack.c.h.b16 %v110
  %v430 = vunpack.c.l.b16 %v111
  %v431 = vunpack.c.h.b16 %v111
  %v432 = vunpack.c.l.b16 %v112
  %v433 = vunpack.c.l.b16 %v113
  %v434 = vunpack.c.h.b16 %v113
  %v435 = vunpack.c.l.b16 %v114
  %v436 = vunpack.c.h.b16 %v114
  %v437 = vunpack.c.l.b16 %v115
  %v438 = vunpack.c.h.b16 %v115
  %v439 = vunpack.c.l.b16 %v116
  %v440 = vunpack.c.h.b16 %v116
  %v441 = vunpack.c.l.b16 %v117
  %v442 = vunpack.c.h.b16 %v117
  %v443 = vunpack.c.l.b16 %v118
  %v444 = vunpack.c.h.b16 %v118
  %v445 = vunpack.c.l.b16 %v119
  %v446 = vunpack.c.h.b16 %v119
  %v447 = vunpack.c.l.b16 %v120
  %v448 = vunpack.c.l.b16 %v121
  %v449 = vunpack.c.h.b16 %v121
  %v450 = vunpack.c.l.b16 %v122
  %v451 = vunpack.c.h.b16 %v122
  %v452 = vunpack.c.l.b16 %v123
  %v453 = vunpack.c.h.b16 %v123
  %v454 = vunpack.c.l.b16 %v124
  %v455 = vunpack.c.h.b16 %v124
  %v456 = vunpack.c.l.b16 %v125
  %v457 = vunpack.c.h.b16 %v125
  %v458 = vunpack.c.l.b16 %v126
  %v459 = vunpack.c.h.b16 %v126
  %v460 = vunpack.c.l.b16 %v127
  %v461 = vunpack.c.h.b16 %v127
  %v462 = vunpack.c.l.b16 %v128
  %v463 = vunpack.c.l.b16 %v129
  %v464 = vunpack.c.h.b16 %v129
  %v465 = vunpack.c.l.b16 %v130
  %v466 = vunpack.c.h.b16 %v130
  %v467 = vunpack.c.l.b16 %v131
  %v468 = vunpack.c.h.b16 %v131
  %v469 = vunpack.c.l.b16 %v132
  %v470 = vunpack.c.h.b16 %v132
  %v471 = vunpack.c.l.b16 %v133
  %v472 = vunpack.c.h.b16 %v133
  %v473 = vunpack.c.l.b16 %v134
  %v474 = vunpack.c.h.b16 %v134
  %v475 = vunpack.c.l.b16 %v135
  %v476 = vunpack.c.h.b16 %v135
  %v477 = vunpack.c.l.b16 %v136
  %v478 = vpack.c.b16 %v373, %v358
  %v479 = vpack.c.b16 %v374, %v359
  %v480 = vpack.c.b16 %v375, %v360
  %v481 = vpack.c.b16 %v376, %v361
  %v482 = vpack.c.b16 %v377, %v362
  %v483 = vpack.c.b16 %v378, %v363
  %v484 = vpack.c.b16 %v379, %v364
  %v485 = vpack.c.b16 %v380, %v365
  %v486 = vpack.c.b16 %v381, %v366
  %v487 = vpack.c.b16 %v382, %v367
  %v488 = vpack.c.b16 %v383, %v368
  %v489 = vpack.c.b16 %v384, %v369
  %v490 = vpack.c.b16 %v385, %v370
  %v491 = vpack.c.b16 %v386, %v371
  %v492 = vpack.c.b16 %v387, %v372
  %v493 = vpack.c.b16 %v403, %v388
  %v494 = vpack.c.b16 %v404, %v389
  %v495 = vpack.c.b16 %v405, %v390
  %v496 = vpack.c.b16 %v406, %v391
  %v497 = vpack.c.b16 %v407, %v392
  %v498 = vpack.c.b16 %v408, %v393
  %v499 = vpack.c.b16 %v409, %v394
  %v500 = vpack.c.b16 %v410, %v395
  %v501 = vpack.c.b16 %v411, %v396
  %v502 = vpack.c.b16 %v412, %v397
  %v503 = vpack.c.b16 %v413, %v398
  %v504 = vpack.c.b16 %v414, %v399
  %v505 = vpack.c.b16 %v415, %v400
  %v506 = vpack.c.b16 %v416, %v401
  %v507 = vpack.c.b16 %v417, %v402
  %v508 = vpack.c.b16 %v433, %v418
  %v509 = vpack.c.b16 %v434, %v419
  %v510 = vpack.c.b16 %v435, %v420
  %v511 = vpack.c.b16 %v436, %v421
  %v512 = vpack.c.b16 %v437, %v422
  %v513 = vpack.c.b16 %v438, %v423
  %v514 = vpack.c.b16 %v439, %v424
  %v515 = vpack.c.b16 %v440, %v425
  %v516 = vpack.c.b16 %v441, %v426
  %v517 = vpack.c.b16 %v442, %v427
  %v518 = vpack.c.b16 %v443, %v428
  %v519 = vpack.c.b16 %v444, %v429
  %v520 = vpack.c.b16 %v445, %v430
  %v521 = vpack.c.b16 %v446, %v431
  %v522 = vpack.c.b16 %v447, %v432
  %v523 = vpack.c.b16 %v463, %v448
  %v524 = vpack.c.b16 %v464, %v449
  %v525 = vpack.c.b16 %v465, %v450
  %v526 = vpack.c.b16 %v466, %v451
  %v527 = vpack.c.b16 %v467, %v452
  %v528 = vpack.c.b16 %v468, %v453
  %v529 = vpack.c.b16 %v469, %v454
  %v530 = vpack.c.b16 %v470, %v455
  %v531 = vpack.c.b16 %v471, %v456
  %v532 = vpack.c.b16 %v472, %v457
  %v533 = vpack.c.b16 %v473, %v458
  %v534 = vpack.c.b16 %v474, %v459
  %v535 = vpack.c.b16 %v475, %v460
  %v536 = vpack.c.b16 %v476, %v461
  %v537 = vpack.c.b16 %v477, %v462
  %vm598 = vcmask 523264
  %v600 = vsel %vm598, %v269, 0
  %v603 = vsel %vm598, %v270, 0
  %v606 = vsel %vm598, %v271, 0
  %v609 = vsel %vm598, %v272, 0
  %v612 = vsel %vm598, %v273, 0
  %v615 = vsel %vm598, %v274, 0
  %v618 = vsel %vm598, %v275, 0
  %v621 = vsel %vm598, %v276, 0
  %v624 = vsel %vm598, %v277, 0
  %v627 = vsel %vm598, %v278, 0
  %v630 = vsel %vm598, %v279, 0
  %v633 = vsel %vm598, %v280, 0
  %v636 = vsel %vm598, %v281, 0
  %v639 = vsel %vm598, %v282, 0
  %v642 = vsel %vm598, %v283, 0
  %v645 = vsel %vm598, %v284, 0
  %v648 = vsel %vm598, %v285, 0
  %v651 = vsel %vm598, %v286, 0
  %v654 = vsel %vm598, %v287, 0
  %v657 = vsel %vm598, %v288, 0
  %v660 = vsel %vm598, %v289, 0
  %v663 = vsel %vm598, %v290, 0
  %v666 = vsel %vm598, %v291, 0
  %v669 = vsel %vm598, %v292, 0
  %v672 = vsel %vm598, %v293, 0
  %674 = vmatpush.bf16.msra.mxu0 0
  %675 = vmatpush.bf16.msra.mxu0 0
  %676 = vmatpush.bf16.msra.mxu0 0
  %677 = vmatpush.bf16.msra.mxu0 0
  %678 = vmatpush.bf16.msra.mxu0 %v523
  %679 = vmatpush.bf16.msra.mxu0 %v508
  %680 = vmatpush.bf16.msra.mxu0 %v493
  %681 = vmatpush.bf16.msra.mxu0 %v478
  %682 = vmatmul.bf16.gmra.mxu0 %v600
  %v683 = vpop.f32.mrf.mxu0
  %v684 = vadd.f32 %v141, %v683
  %v685 = vpop.f32.mrf.mxu0
  %v686 = vadd.f32 %v141, %v685
  %687 = vmatmul.bf16.gmra.mxu0 %v603
  %v688 = vpop.f32.mrf.mxu0
  %v689 = vadd.f32 %v141, %v688
  %v690 = vpop.f32.mrf.mxu0
  %v691 = vadd.f32 %v141, %v690
  %692 = vmatmul.bf16.gmra.mxu0 %v606
  %v693 = vpop.f32.mrf.mxu0
  %v694 = vadd.f32 %v141, %v693
  %v695 = vpop.f32.mrf.mxu0
  %v696 = vadd.f32 %v141, %v695
  %697 = vmatmul.bf16.gmra.mxu0 %v609
  %v698 = vpop.f32.mrf.mxu0
  %v699 = vadd.f32 %v141, %v698
  %v700 = vpop.f32.mrf.mxu0
  %v701 = vadd.f32 %v141, %v700
  %702 = vmatmul.bf16.gmra.mxu0 %v612
  %v703 = vpop.f32.mrf.mxu0
  %v704 = vadd.f32 %v141, %v703
  %v705 = vpop.f32.mrf.mxu0
  %v706 = vadd.f32 %v141, %v705
  %707 = vmatmul.bf16.gmra.mxu0 %v615
  %v708 = vpop.f32.mrf.mxu0
  %v709 = vadd.f32 %v141, %v708
  %v710 = vpop.f32.mrf.mxu0
  %v711 = vadd.f32 %v141, %v710
  %712 = vmatmul.bf16.gmra.mxu0 %v618
  %v713 = vpop.f32.mrf.mxu0
  %v714 = vadd.f32 %v141, %v713
  %v715 = vpop.f32.mrf.mxu0
  %v716 = vadd.f32 %v141, %v715
  %717 = vmatmul.bf16.gmra.mxu0 %v621
  %v718 = vpop.f32.mrf.mxu0
  %v719 = vadd.f32 %v141, %v718
  %v720 = vpop.f32.mrf.mxu0
  %v721 = vadd.f32 %v141, %v720
  %722 = vmatmul.bf16.gmra.mxu0 %v624
  %v723 = vpop.f32.mrf.mxu0
  %v724 = vadd.f32 %v141, %v723
  %v725 = vpop.f32.mrf.mxu0
  %v726 = vadd.f32 %v141, %v725
  %727 = vmatmul.bf16.gmra.mxu0 %v627
  %v728 = vpop.f32.mrf.mxu0
  %v729 = vadd.f32 %v141, %v728
  %v730 = vpop.f32.mrf.mxu0
  %v731 = vadd.f32 %v141, %v730
  %732 = vmatmul.bf16.gmra.mxu0 %v630
  %v733 = vpop.f32.mrf.mxu0
  %v734 = vadd.f32 %v141, %v733
  %v735 = vpop.f32.mrf.mxu0
  %v736 = vadd.f32 %v141, %v735
  %737 = vmatmul.bf16.gmra.mxu0 %v633
  %v738 = vpop.f32.mrf.mxu0
  %v739 = vadd.f32 %v141, %v738
  %v740 = vpop.f32.mrf.mxu0
  %v741 = vadd.f32 %v141, %v740
  %742 = vmatmul.bf16.gmra.mxu0 %v636
  %v743 = vpop.f32.mrf.mxu0
  %v744 = vadd.f32 %v141, %v743
  %v745 = vpop.f32.mrf.mxu0
  %v746 = vadd.f32 %v141, %v745
  %747 = vmatmul.bf16.gmra.mxu0 %v639
  %v748 = vpop.f32.mrf.mxu0
  %v749 = vadd.f32 %v141, %v748
  %v750 = vpop.f32.mrf.mxu0
  %v751 = vadd.f32 %v141, %v750
  %752 = vmatmul.bf16.gmra.mxu0 %v642
  %v753 = vpop.f32.mrf.mxu0
  %v754 = vadd.f32 %v141, %v753
  %v755 = vpop.f32.mrf.mxu0
  %v756 = vadd.f32 %v141, %v755
  %757 = vmatmul.bf16.gmra.mxu0 %v645
  %v758 = vpop.f32.mrf.mxu0
  %v759 = vadd.f32 %v141, %v758
  %v760 = vpop.f32.mrf.mxu0
  %v761 = vadd.f32 %v141, %v760
  %762 = vmatmul.bf16.gmra.mxu0 %v648
  %v763 = vpop.f32.mrf.mxu0
  %v764 = vadd.f32 %v141, %v763
  %v765 = vpop.f32.mrf.mxu0
  %v766 = vadd.f32 %v141, %v765
  %767 = vmatmul.bf16.gmra.mxu0 %v651
  %v768 = vpop.f32.mrf.mxu0
  %v769 = vadd.f32 %v141, %v768
  %v770 = vpop.f32.mrf.mxu0
  %v771 = vadd.f32 %v141, %v770
  %772 = vmatmul.bf16.gmra.mxu0 %v654
  %v773 = vpop.f32.mrf.mxu0
  %v774 = vadd.f32 %v141, %v773
  %v775 = vpop.f32.mrf.mxu0
  %v776 = vadd.f32 %v141, %v775
  %777 = vmatmul.bf16.gmra.mxu0 %v657
  %v778 = vpop.f32.mrf.mxu0
  %v779 = vadd.f32 %v141, %v778
  %v780 = vpop.f32.mrf.mxu0
  %v781 = vadd.f32 %v141, %v780
  %782 = vmatmul.bf16.gmra.mxu0 %v660
  %v783 = vpop.f32.mrf.mxu0
  %v784 = vadd.f32 %v141, %v783
  %v785 = vpop.f32.mrf.mxu0
  %v786 = vadd.f32 %v141, %v785
  %787 = vmatmul.bf16.gmra.mxu0 %v663
  %v788 = vpop.f32.mrf.mxu0
  %v789 = vadd.f32 %v141, %v788
  %v790 = vpop.f32.mrf.mxu0
  %v791 = vadd.f32 %v141, %v790
  %792 = vmatmul.bf16.gmra.mxu0 %v666
  %v793 = vpop.f32.mrf.mxu0
  %v794 = vadd.f32 %v141, %v793
  %v795 = vpop.f32.mrf.mxu0
  %v796 = vadd.f32 %v141, %v795
  %797 = vmatmul.bf16.gmra.mxu0 %v669
  %v798 = vpop.f32.mrf.mxu0
  %v799 = vadd.f32 %v141, %v798
  %v800 = vpop.f32.mrf.mxu0
  %v801 = vadd.f32 %v141, %v800
  %802 = vmatmul.bf16.gmra.mxu0 %v672
  %v803 = vpop.f32.mrf.mxu0
  %v804 = vadd.f32 %v141, %v803
  %v805 = vpop.f32.mrf.mxu0
  %806 = vdwg.mxu0
  %807 = vmatpush.bf16.msra.mxu0 0
  %808 = vmatpush.bf16.msra.mxu0 0
  %809 = vmatpush.bf16.msra.mxu0 0
  %810 = vmatpush.bf16.msra.mxu0 0
  %811 = vmatpush.bf16.msra.mxu0 %v524
  %812 = vmatpush.bf16.msra.mxu0 %v509
  %813 = vmatpush.bf16.msra.mxu0 %v494
  %814 = vmatpush.bf16.msra.mxu0 %v479
  %815 = vmatmul.bf16.gmra.mxu0 %v600
  %v816 = vpop.f32.mrf.mxu0
  %v817 = vadd.f32 %v142, %v816
  %v818 = vpop.f32.mrf.mxu0
  %v819 = vadd.f32 %v142, %v818
  %820 = vmatmul.bf16.gmra.mxu0 %v603
  %v821 = vpop.f32.mrf.mxu0
  %v822 = vadd.f32 %v142, %v821
  %v823 = vpop.f32.mrf.mxu0
  %v824 = vadd.f32 %v142, %v823
  %825 = vmatmul.bf16.gmra.mxu0 %v606
  %v826 = vpop.f32.mrf.mxu0
  %v827 = vadd.f32 %v142, %v826
  %v828 = vpop.f32.mrf.mxu0
  %v829 = vadd.f32 %v142, %v828
  %830 = vmatmul.bf16.gmra.mxu0 %v609
  %v831 = vpop.f32.mrf.mxu0
  %v832 = vadd.f32 %v142, %v831
  %v833 = vpop.f32.mrf.mxu0
  %v834 = vadd.f32 %v142, %v833
  %835 = vmatmul.bf16.gmra.mxu0 %v612
  %v836 = vpop.f32.mrf.mxu0
  %v837 = vadd.f32 %v142, %v836
  %v838 = vpop.f32.mrf.mxu0
  %v839 = vadd.f32 %v142, %v838
  %840 = vmatmul.bf16.gmra.mxu0 %v615
  %v841 = vpop.f32.mrf.mxu0
  %v842 = vadd.f32 %v142, %v841
  %v843 = vpop.f32.mrf.mxu0
  %v844 = vadd.f32 %v142, %v843
  %845 = vmatmul.bf16.gmra.mxu0 %v618
  %v846 = vpop.f32.mrf.mxu0
  %v847 = vadd.f32 %v142, %v846
  %v848 = vpop.f32.mrf.mxu0
  %v849 = vadd.f32 %v142, %v848
  %850 = vmatmul.bf16.gmra.mxu0 %v621
  %v851 = vpop.f32.mrf.mxu0
  %v852 = vadd.f32 %v142, %v851
  %v853 = vpop.f32.mrf.mxu0
  %v854 = vadd.f32 %v142, %v853
  %855 = vmatmul.bf16.gmra.mxu0 %v624
  %v856 = vpop.f32.mrf.mxu0
  %v857 = vadd.f32 %v142, %v856
  %v858 = vpop.f32.mrf.mxu0
  %v859 = vadd.f32 %v142, %v858
  %860 = vmatmul.bf16.gmra.mxu0 %v627
  %v861 = vpop.f32.mrf.mxu0
  %v862 = vadd.f32 %v142, %v861
  %v863 = vpop.f32.mrf.mxu0
  %v864 = vadd.f32 %v142, %v863
  %865 = vmatmul.bf16.gmra.mxu0 %v630
  %v866 = vpop.f32.mrf.mxu0
  %v867 = vadd.f32 %v142, %v866
  %v868 = vpop.f32.mrf.mxu0
  %v869 = vadd.f32 %v142, %v868
  %870 = vmatmul.bf16.gmra.mxu0 %v633
  %v871 = vpop.f32.mrf.mxu0
  %v872 = vadd.f32 %v142, %v871
  %v873 = vpop.f32.mrf.mxu0
  %v874 = vadd.f32 %v142, %v873
  %875 = vmatmul.bf16.gmra.mxu0 %v636
  %v876 = vpop.f32.mrf.mxu0
  %v877 = vadd.f32 %v142, %v876
  %v878 = vpop.f32.mrf.mxu0
  %v879 = vadd.f32 %v142, %v878
  %880 = vmatmul.bf16.gmra.mxu0 %v639
  %v881 = vpop.f32.mrf.mxu0
  %v882 = vadd.f32 %v142, %v881
  %v883 = vpop.f32.mrf.mxu0
  %v884 = vadd.f32 %v142, %v883
  %885 = vmatmul.bf16.gmra.mxu0 %v642
  %v886 = vpop.f32.mrf.mxu0
  %v887 = vadd.f32 %v142, %v886
  %v888 = vpop.f32.mrf.mxu0
  %v889 = vadd.f32 %v142, %v888
  %890 = vmatmul.bf16.gmra.mxu0 %v645
  %v891 = vpop.f32.mrf.mxu0
  %v892 = vadd.f32 %v142, %v891
  %v893 = vpop.f32.mrf.mxu0
  %v894 = vadd.f32 %v142, %v893
  %895 = vmatmul.bf16.gmra.mxu0 %v648
  %v896 = vpop.f32.mrf.mxu0
  %v897 = vadd.f32 %v142, %v896
  %v898 = vpop.f32.mrf.mxu0
  %v899 = vadd.f32 %v142, %v898
  %900 = vmatmul.bf16.gmra.mxu0 %v651
  %v901 = vpop.f32.mrf.mxu0
  %v902 = vadd.f32 %v142, %v901
  %v903 = vpop.f32.mrf.mxu0
  %v904 = vadd.f32 %v142, %v903
  %905 = vmatmul.bf16.gmra.mxu0 %v654
  %v906 = vpop.f32.mrf.mxu0
  %v907 = vadd.f32 %v142, %v906
  %v908 = vpop.f32.mrf.mxu0
  %v909 = vadd.f32 %v142, %v908
  %910 = vmatmul.bf16.gmra.mxu0 %v657
  %v911 = vpop.f32.mrf.mxu0
  %v912 = vadd.f32 %v142, %v911
  %v913 = vpop.f32.mrf.mxu0
  %v914 = vadd.f32 %v142, %v913
  %915 = vmatmul.bf16.gmra.mxu0 %v660
  %v916 = vpop.f32.mrf.mxu0
  %v917 = vadd.f32 %v142, %v916
  %v918 = vpop.f32.mrf.mxu0
  %v919 = vadd.f32 %v142, %v918
  %920 = vmatmul.bf16.gmra.mxu0 %v663
  %v921 = vpop.f32.mrf.mxu0
  %v922 = vadd.f32 %v142, %v921
  %v923 = vpop.f32.mrf.mxu0
  %v924 = vadd.f32 %v142, %v923
  %925 = vmatmul.bf16.gmra.mxu0 %v666
  %v926 = vpop.f32.mrf.mxu0
  %v927 = vadd.f32 %v142, %v926
  %v928 = vpop.f32.mrf.mxu0
  %v929 = vadd.f32 %v142, %v928
  %930 = vmatmul.bf16.gmra.mxu0 %v669
  %v931 = vpop.f32.mrf.mxu0
  %v932 = vadd.f32 %v142, %v931
  %v933 = vpop.f32.mrf.mxu0
  %v934 = vadd.f32 %v142, %v933
  %935 = vmatmul.bf16.gmra.mxu0 %v672
  %v936 = vpop.f32.mrf.mxu0
  %v937 = vadd.f32 %v142, %v936
  %v938 = vpop.f32.mrf.mxu0
  %939 = vdwg.mxu0
  %940 = vmatpush.bf16.msra.mxu0 0
  %941 = vmatpush.bf16.msra.mxu0 0
  %942 = vmatpush.bf16.msra.mxu0 0
  %943 = vmatpush.bf16.msra.mxu0 0
  %944 = vmatpush.bf16.msra.mxu0 %v525
  %945 = vmatpush.bf16.msra.mxu0 %v510
  %946 = vmatpush.bf16.msra.mxu0 %v495
  %947 = vmatpush.bf16.msra.mxu0 %v480
  %948 = vmatmul.bf16.gmra.mxu0 %v600
  %v949 = vpop.f32.mrf.mxu0
  %v950 = vadd.f32 %v143, %v949
  %v951 = vpop.f32.mrf.mxu0
  %v952 = vadd.f32 %v143, %v951
  %953 = vmatmul.bf16.gmra.mxu0 %v603
  %v954 = vpop.f32.mrf.mxu0
  %v955 = vadd.f32 %v143, %v954
  %v956 = vpop.f32.mrf.mxu0
  %v957 = vadd.f32 %v143, %v956
  %958 = vmatmul.bf16.gmra.mxu0 %v606
  %v959 = vpop.f32.mrf.mxu0
  %v960 = vadd.f32 %v143, %v959
  %v961 = vpop.f32.mrf.mxu0
  %v962 = vadd.f32 %v143, %v961
  %963 = vmatmul.bf16.gmra.mxu0 %v609
  %v964 = vpop.f32.mrf.mxu0
  %v965 = vadd.f32 %v143, %v964
  %v966 = vpop.f32.mrf.mxu0
  %v967 = vadd.f32 %v143, %v966
  %968 = vmatmul.bf16.gmra.mxu0 %v612
  %v969 = vpop.f32.mrf.mxu0
  %v970 = vadd.f32 %v143, %v969
  %v971 = vpop.f32.mrf.mxu0
  %v972 = vadd.f32 %v143, %v971
  %973 = vmatmul.bf16.gmra.mxu0 %v615
  %v974 = vpop.f32.mrf.mxu0
  %v975 = vadd.f32 %v143, %v974
  %v976 = vpop.f32.mrf.mxu0
  %v977 = vadd.f32 %v143, %v976
  %978 = vmatmul.bf16.gmra.mxu0 %v618
  %v979 = vpop.f32.mrf.mxu0
  %v980 = vadd.f32 %v143, %v979
  %v981 = vpop.f32.mrf.mxu0
  %v982 = vadd.f32 %v143, %v981
  %983 = vmatmul.bf16.gmra.mxu0 %v621
  %v984 = vpop.f32.mrf.mxu0
  %v985 = vadd.f32 %v143, %v984
  %v986 = vpop.f32.mrf.mxu0
  %v987 = vadd.f32 %v143, %v986
  %988 = vmatmul.bf16.gmra.mxu0 %v624
  %v989 = vpop.f32.mrf.mxu0
  %v990 = vadd.f32 %v143, %v989
  %v991 = vpop.f32.mrf.mxu0
  %v992 = vadd.f32 %v143, %v991
  %993 = vmatmul.bf16.gmra.mxu0 %v627
  %v994 = vpop.f32.mrf.mxu0
  %v995 = vadd.f32 %v143, %v994
  %v996 = vpop.f32.mrf.mxu0
  %v997 = vadd.f32 %v143, %v996
  %998 = vmatmul.bf16.gmra.mxu0 %v630
  %v999 = vpop.f32.mrf.mxu0
  %v1000 = vadd.f32 %v143, %v999
  %v1001 = vpop.f32.mrf.mxu0
  %v1002 = vadd.f32 %v143, %v1001
  %1003 = vmatmul.bf16.gmra.mxu0 %v633
  %v1004 = vpop.f32.mrf.mxu0
  %v1005 = vadd.f32 %v143, %v1004
  %v1006 = vpop.f32.mrf.mxu0
  %v1007 = vadd.f32 %v143, %v1006
  %1008 = vmatmul.bf16.gmra.mxu0 %v636
  %v1009 = vpop.f32.mrf.mxu0
  %v1010 = vadd.f32 %v143, %v1009
  %v1011 = vpop.f32.mrf.mxu0
  %v1012 = vadd.f32 %v143, %v1011
  %1013 = vmatmul.bf16.gmra.mxu0 %v639
  %v1014 = vpop.f32.mrf.mxu0
  %v1015 = vadd.f32 %v143, %v1014
  %v1016 = vpop.f32.mrf.mxu0
  %v1017 = vadd.f32 %v143, %v1016
  %1018 = vmatmul.bf16.gmra.mxu0 %v642
  %v1019 = vpop.f32.mrf.mxu0
  %v1020 = vadd.f32 %v143, %v1019
  %v1021 = vpop.f32.mrf.mxu0
  %v1022 = vadd.f32 %v143, %v1021
  %1023 = vmatmul.bf16.gmra.mxu0 %v645
  %v1024 = vpop.f32.mrf.mxu0
  %v1025 = vadd.f32 %v143, %v1024
  %v1026 = vpop.f32.mrf.mxu0
  %v1027 = vadd.f32 %v143, %v1026
  %1028 = vmatmul.bf16.gmra.mxu0 %v648
  %v1029 = vpop.f32.mrf.mxu0
  %v1030 = vadd.f32 %v143, %v1029
  %v1031 = vpop.f32.mrf.mxu0
  %v1032 = vadd.f32 %v143, %v1031
  %1033 = vmatmul.bf16.gmra.mxu0 %v651
  %v1034 = vpop.f32.mrf.mxu0
  %v1035 = vadd.f32 %v143, %v1034
  %v1036 = vpop.f32.mrf.mxu0
  %v1037 = vadd.f32 %v143, %v1036
  %1038 = vmatmul.bf16.gmra.mxu0 %v654
  %v1039 = vpop.f32.mrf.mxu0
  %v1040 = vadd.f32 %v143, %v1039
  %v1041 = vpop.f32.mrf.mxu0
  %v1042 = vadd.f32 %v143, %v1041
  %1043 = vmatmul.bf16.gmra.mxu0 %v657
  %v1044 = vpop.f32.mrf.mxu0
  %v1045 = vadd.f32 %v143, %v1044
  %v1046 = vpop.f32.mrf.mxu0
  %v1047 = vadd.f32 %v143, %v1046
  %1048 = vmatmul.bf16.gmra.mxu0 %v660
  %v1049 = vpop.f32.mrf.mxu0
  %v1050 = vadd.f32 %v143, %v1049
  %v1051 = vpop.f32.mrf.mxu0
  %v1052 = vadd.f32 %v143, %v1051
  %1053 = vmatmul.bf16.gmra.mxu0 %v663
  %v1054 = vpop.f32.mrf.mxu0
  %v1055 = vadd.f32 %v143, %v1054
  %v1056 = vpop.f32.mrf.mxu0
  %v1057 = vadd.f32 %v143, %v1056
  %1058 = vmatmul.bf16.gmra.mxu0 %v666
  %v1059 = vpop.f32.mrf.mxu0
  %v1060 = vadd.f32 %v143, %v1059
  %v1061 = vpop.f32.mrf.mxu0
  %v1062 = vadd.f32 %v143, %v1061
  %1063 = vmatmul.bf16.gmra.mxu0 %v669
  %v1064 = vpop.f32.mrf.mxu0
  %v1065 = vadd.f32 %v143, %v1064
  %v1066 = vpop.f32.mrf.mxu0
  %v1067 = vadd.f32 %v143, %v1066
  %1068 = vmatmul.bf16.gmra.mxu0 %v672
  %v1069 = vpop.f32.mrf.mxu0
  %v1070 = vadd.f32 %v143, %v1069
  %v1071 = vpop.f32.mrf.mxu0
  %1072 = vdwg.mxu0
  %1073 = vmatpush.bf16.msra.mxu0 0
  %1074 = vmatpush.bf16.msra.mxu0 0
  %1075 = vmatpush.bf16.msra.mxu0 0
  %1076 = vmatpush.bf16.msra.mxu0 0
  %1077 = vmatpush.bf16.msra.mxu0 %v526
  %1078 = vmatpush.bf16.msra.mxu0 %v511
  %1079 = vmatpush.bf16.msra.mxu0 %v496
  %1080 = vmatpush.bf16.msra.mxu0 %v481
  %1081 = vmatmul.bf16.gmra.mxu0 %v600
  %v1082 = vpop.f32.mrf.mxu0
  %v1083 = vadd.f32 %v144, %v1082
  %v1084 = vpop.f32.mrf.mxu0
  %v1085 = vadd.f32 %v144, %v1084
  %1086 = vmatmul.bf16.gmra.mxu0 %v603
  %v1087 = vpop.f32.mrf.mxu0
  %v1088 = vadd.f32 %v144, %v1087
  %v1089 = vpop.f32.mrf.mxu0
  %v1090 = vadd.f32 %v144, %v1089
  %1091 = vmatmul.bf16.gmra.mxu0 %v606
  %v1092 = vpop.f32.mrf.mxu0
  %v1093 = vadd.f32 %v144, %v1092
  %v1094 = vpop.f32.mrf.mxu0
  %v1095 = vadd.f32 %v144, %v1094
  %1096 = vmatmul.bf16.gmra.mxu0 %v609
  %v1097 = vpop.f32.mrf.mxu0
  %v1098 = vadd.f32 %v144, %v1097
  %v1099 = vpop.f32.mrf.mxu0
  %v1100 = vadd.f32 %v144, %v1099
  %1101 = vmatmul.bf16.gmra.mxu0 %v612
  %v1102 = vpop.f32.mrf.mxu0
  %v1103 = vadd.f32 %v144, %v1102
  %v1104 = vpop.f32.mrf.mxu0
  %v1105 = vadd.f32 %v144, %v1104
  %1106 = vmatmul.bf16.gmra.mxu0 %v615
  %v1107 = vpop.f32.mrf.mxu0
  %v1108 = vadd.f32 %v144, %v1107
  %v1109 = vpop.f32.mrf.mxu0
  %v1110 = vadd.f32 %v144, %v1109
  %1111 = vmatmul.bf16.gmra.mxu0 %v618
  %v1112 = vpop.f32.mrf.mxu0
  %v1113 = vadd.f32 %v144, %v1112
  %v1114 = vpop.f32.mrf.mxu0
  %v1115 = vadd.f32 %v144, %v1114
  %1116 = vmatmul.bf16.gmra.mxu0 %v621
  %v1117 = vpop.f32.mrf.mxu0
  %v1118 = vadd.f32 %v144, %v1117
  %v1119 = vpop.f32.mrf.mxu0
  %v1120 = vadd.f32 %v144, %v1119
  %1121 = vmatmul.bf16.gmra.mxu0 %v624
  %v1122 = vpop.f32.mrf.mxu0
  %v1123 = vadd.f32 %v144, %v1122
  %v1124 = vpop.f32.mrf.mxu0
  %v1125 = vadd.f32 %v144, %v1124
  %1126 = vmatmul.bf16.gmra.mxu0 %v627
  %v1127 = vpop.f32.mrf.mxu0
  %v1128 = vadd.f32 %v144, %v1127
  %v1129 = vpop.f32.mrf.mxu0
  %v1130 = vadd.f32 %v144, %v1129
  %1131 = vmatmul.bf16.gmra.mxu0 %v630
  %v1132 = vpop.f32.mrf.mxu0
  %v1133 = vadd.f32 %v144, %v1132
  %v1134 = vpop.f32.mrf.mxu0
  %v1135 = vadd.f32 %v144, %v1134
  %1136 = vmatmul.bf16.gmra.mxu0 %v633
  %v1137 = vpop.f32.mrf.mxu0
  %v1138 = vadd.f32 %v144, %v1137
  %v1139 = vpop.f32.mrf.mxu0
  %v1140 = vadd.f32 %v144, %v1139
  %1141 = vmatmul.bf16.gmra.mxu0 %v636
  %v1142 = vpop.f32.mrf.mxu0
  %v1143 = vadd.f32 %v144, %v1142
  %v1144 = vpop.f32.mrf.mxu0
  %v1145 = vadd.f32 %v144, %v1144
  %1146 = vmatmul.bf16.gmra.mxu0 %v639
  %v1147 = vpop.f32.mrf.mxu0
  %v1148 = vadd.f32 %v144, %v1147
  %v1149 = vpop.f32.mrf.mxu0
  %v1150 = vadd.f32 %v144, %v1149
  %1151 = vmatmul.bf16.gmra.mxu0 %v642
  %v1152 = vpop.f32.mrf.mxu0
  %v1153 = vadd.f32 %v144, %v1152
  %v1154 = vpop.f32.mrf.mxu0
  %v1155 = vadd.f32 %v144, %v1154
  %1156 = vmatmul.bf16.gmra.mxu0 %v645
  %v1157 = vpop.f32.mrf.mxu0
  %v1158 = vadd.f32 %v144, %v1157
  %v1159 = vpop.f32.mrf.mxu0
  %v1160 = vadd.f32 %v144, %v1159
  %1161 = vmatmul.bf16.gmra.mxu0 %v648
  %v1162 = vpop.f32.mrf.mxu0
  %v1163 = vadd.f32 %v144, %v1162
  %v1164 = vpop.f32.mrf.mxu0
  %v1165 = vadd.f32 %v144, %v1164
  %1166 = vmatmul.bf16.gmra.mxu0 %v651
  %v1167 = vpop.f32.mrf.mxu0
  %v1168 = vadd.f32 %v144, %v1167
  %v1169 = vpop.f32.mrf.mxu0
  %v1170 = vadd.f32 %v144, %v1169
  %1171 = vmatmul.bf16.gmra.mxu0 %v654
  %v1172 = vpop.f32.mrf.mxu0
  %v1173 = vadd.f32 %v144, %v1172
  %v1174 = vpop.f32.mrf.mxu0
  %v1175 = vadd.f32 %v144, %v1174
  %1176 = vmatmul.bf16.gmra.mxu0 %v657
  %v1177 = vpop.f32.mrf.mxu0
  %v1178 = vadd.f32 %v144, %v1177
  %v1179 = vpop.f32.mrf.mxu0
  %v1180 = vadd.f32 %v144, %v1179
  %1181 = vmatmul.bf16.gmra.mxu0 %v660
  %v1182 = vpop.f32.mrf.mxu0
  %v1183 = vadd.f32 %v144, %v1182
  %v1184 = vpop.f32.mrf.mxu0
  %v1185 = vadd.f32 %v144, %v1184
  %1186 = vmatmul.bf16.gmra.mxu0 %v663
  %v1187 = vpop.f32.mrf.mxu0
  %v1188 = vadd.f32 %v144, %v1187
  %v1189 = vpop.f32.mrf.mxu0
  %v1190 = vadd.f32 %v144, %v1189
  %1191 = vmatmul.bf16.gmra.mxu0 %v666
  %v1192 = vpop.f32.mrf.mxu0
  %v1193 = vadd.f32 %v144, %v1192
  %v1194 = vpop.f32.mrf.mxu0
  %v1195 = vadd.f32 %v144, %v1194
  %1196 = vmatmul.bf16.gmra.mxu0 %v669
  %v1197 = vpop.f32.mrf.mxu0
  %v1198 = vadd.f32 %v144, %v1197
  %v1199 = vpop.f32.mrf.mxu0
  %v1200 = vadd.f32 %v144, %v1199
  %1201 = vmatmul.bf16.gmra.mxu0 %v672
  %v1202 = vpop.f32.mrf.mxu0
  %v1203 = vadd.f32 %v144, %v1202
  %v1204 = vpop.f32.mrf.mxu0
  %1205 = vdwg.mxu0
  %1206 = vmatpush.bf16.msra.mxu0 0
  %1207 = vmatpush.bf16.msra.mxu0 0
  %1208 = vmatpush.bf16.msra.mxu0 0
  %1209 = vmatpush.bf16.msra.mxu0 0
  %1210 = vmatpush.bf16.msra.mxu0 %v527
  %1211 = vmatpush.bf16.msra.mxu0 %v512
  %1212 = vmatpush.bf16.msra.mxu0 %v497
  %1213 = vmatpush.bf16.msra.mxu0 %v482
  %1214 = vmatmul.bf16.gmra.mxu0 %v600
  %v1215 = vpop.f32.mrf.mxu0
  %v1216 = vadd.f32 %v145, %v1215
  %v1217 = vpop.f32.mrf.mxu0
  %v1218 = vadd.f32 %v145, %v1217
  %1219 = vmatmul.bf16.gmra.mxu0 %v603
  %v1220 = vpop.f32.mrf.mxu0
  %v1221 = vadd.f32 %v145, %v1220
  %v1222 = vpop.f32.mrf.mxu0
  %v1223 = vadd.f32 %v145, %v1222
  %1224 = vmatmul.bf16.gmra.mxu0 %v606
  %v1225 = vpop.f32.mrf.mxu0
  %v1226 = vadd.f32 %v145, %v1225
  %v1227 = vpop.f32.mrf.mxu0
  %v1228 = vadd.f32 %v145, %v1227
  %1229 = vmatmul.bf16.gmra.mxu0 %v609
  %v1230 = vpop.f32.mrf.mxu0
  %v1231 = vadd.f32 %v145, %v1230
  %v1232 = vpop.f32.mrf.mxu0
  %v1233 = vadd.f32 %v145, %v1232
  %1234 = vmatmul.bf16.gmra.mxu0 %v612
  %v1235 = vpop.f32.mrf.mxu0
  %v1236 = vadd.f32 %v145, %v1235
  %v1237 = vpop.f32.mrf.mxu0
  %v1238 = vadd.f32 %v145, %v1237
  %1239 = vmatmul.bf16.gmra.mxu0 %v615
  %v1240 = vpop.f32.mrf.mxu0
  %v1241 = vadd.f32 %v145, %v1240
  %v1242 = vpop.f32.mrf.mxu0
  %v1243 = vadd.f32 %v145, %v1242
  %1244 = vmatmul.bf16.gmra.mxu0 %v618
  %v1245 = vpop.f32.mrf.mxu0
  %v1246 = vadd.f32 %v145, %v1245
  %v1247 = vpop.f32.mrf.mxu0
  %v1248 = vadd.f32 %v145, %v1247
  %1249 = vmatmul.bf16.gmra.mxu0 %v621
  %v1250 = vpop.f32.mrf.mxu0
  %v1251 = vadd.f32 %v145, %v1250
  %v1252 = vpop.f32.mrf.mxu0
  %v1253 = vadd.f32 %v145, %v1252
  %1254 = vmatmul.bf16.gmra.mxu0 %v624
  %v1255 = vpop.f32.mrf.mxu0
  %v1256 = vadd.f32 %v145, %v1255
  %v1257 = vpop.f32.mrf.mxu0
  %v1258 = vadd.f32 %v145, %v1257
  %1259 = vmatmul.bf16.gmra.mxu0 %v627
  %v1260 = vpop.f32.mrf.mxu0
  %v1261 = vadd.f32 %v145, %v1260
  %v1262 = vpop.f32.mrf.mxu0
  %v1263 = vadd.f32 %v145, %v1262
  %1264 = vmatmul.bf16.gmra.mxu0 %v630
  %v1265 = vpop.f32.mrf.mxu0
  %v1266 = vadd.f32 %v145, %v1265
  %v1267 = vpop.f32.mrf.mxu0
  %v1268 = vadd.f32 %v145, %v1267
  %1269 = vmatmul.bf16.gmra.mxu0 %v633
  %v1270 = vpop.f32.mrf.mxu0
  %v1271 = vadd.f32 %v145, %v1270
  %v1272 = vpop.f32.mrf.mxu0
  %v1273 = vadd.f32 %v145, %v1272
  %1274 = vmatmul.bf16.gmra.mxu0 %v636
  %v1275 = vpop.f32.mrf.mxu0
  %v1276 = vadd.f32 %v145, %v1275
  %v1277 = vpop.f32.mrf.mxu0
  %v1278 = vadd.f32 %v145, %v1277
  %1279 = vmatmul.bf16.gmra.mxu0 %v639
  %v1280 = vpop.f32.mrf.mxu0
  %v1281 = vadd.f32 %v145, %v1280
  %v1282 = vpop.f32.mrf.mxu0
  %v1283 = vadd.f32 %v145, %v1282
  %1284 = vmatmul.bf16.gmra.mxu0 %v642
  %v1285 = vpop.f32.mrf.mxu0
  %v1286 = vadd.f32 %v145, %v1285
  %v1287 = vpop.f32.mrf.mxu0
  %v1288 = vadd.f32 %v145, %v1287
  %1289 = vmatmul.bf16.gmra.mxu0 %v645
  %v1290 = vpop.f32.mrf.mxu0
  %v1291 = vadd.f32 %v145, %v1290
  %v1292 = vpop.f32.mrf.mxu0
  %v1293 = vadd.f32 %v145, %v1292
  %1294 = vmatmul.bf16.gmra.mxu0 %v648
  %v1295 = vpop.f32.mrf.mxu0
  %v1296 = vadd.f32 %v145, %v1295
  %v1297 = vpop.f32.mrf.mxu0
  %v1298 = vadd.f32 %v145, %v1297
  %1299 = vmatmul.bf16.gmra.mxu0 %v651
  %v1300 = vpop.f32.mrf.mxu0
  %v1301 = vadd.f32 %v145, %v1300
  %v1302 = vpop.f32.mrf.mxu0
  %v1303 = vadd.f32 %v145, %v1302
  %1304 = vmatmul.bf16.gmra.mxu0 %v654
  %v1305 = vpop.f32.mrf.mxu0
  %v1306 = vadd.f32 %v145, %v1305
  %v1307 = vpop.f32.mrf.mxu0
  %v1308 = vadd.f32 %v145, %v1307
  %1309 = vmatmul.bf16.gmra.mxu0 %v657
  %v1310 = vpop.f32.mrf.mxu0
  %v1311 = vadd.f32 %v145, %v1310
  %v1312 = vpop.f32.mrf.mxu0
  %v1313 = vadd.f32 %v145, %v1312
  %1314 = vmatmul.bf16.gmra.mxu0 %v660
  %v1315 = vpop.f32.mrf.mxu0
  %v1316 = vadd.f32 %v145, %v1315
  %v1317 = vpop.f32.mrf.mxu0
  %v1318 = vadd.f32 %v145, %v1317
  %1319 = vmatmul.bf16.gmra.mxu0 %v663
  %v1320 = vpop.f32.mrf.mxu0
  %v1321 = vadd.f32 %v145, %v1320
  %v1322 = vpop.f32.mrf.mxu0
  %v1323 = vadd.f32 %v145, %v1322
  %1324 = vmatmul.bf16.gmra.mxu0 %v666
  %v1325 = vpop.f32.mrf.mxu0
  %v1326 = vadd.f32 %v145, %v1325
  %v1327 = vpop.f32.mrf.mxu0
  %v1328 = vadd.f32 %v145, %v1327
  %1329 = vmatmul.bf16.gmra.mxu0 %v669
  %v1330 = vpop.f32.mrf.mxu0
  %v1331 = vadd.f32 %v145, %v1330
  %v1332 = vpop.f32.mrf.mxu0
  %v1333 = vadd.f32 %v145, %v1332
  %1334 = vmatmul.bf16.gmra.mxu0 %v672
  %v1335 = vpop.f32.mrf.mxu0
  %v1336 = vadd.f32 %v145, %v1335
  %v1337 = vpop.f32.mrf.mxu0
  %1338 = vdwg.mxu0
  %1339 = vmatpush.bf16.msra.mxu0 0
  %1340 = vmatpush.bf16.msra.mxu0 0
  %1341 = vmatpush.bf16.msra.mxu0 0
  %1342 = vmatpush.bf16.msra.mxu0 0
  %1343 = vmatpush.bf16.msra.mxu0 %v528
  %1344 = vmatpush.bf16.msra.mxu0 %v513
  %1345 = vmatpush.bf16.msra.mxu0 %v498
  %1346 = vmatpush.bf16.msra.mxu0 %v483
  %1347 = vmatmul.bf16.gmra.mxu0 %v600
  %v1348 = vpop.f32.mrf.mxu0
  %v1349 = vadd.f32 %v146, %v1348
  %v1350 = vpop.f32.mrf.mxu0
  %v1351 = vadd.f32 %v146, %v1350
  %1352 = vmatmul.bf16.gmra.mxu0 %v603
  %v1353 = vpop.f32.mrf.mxu0
  %v1354 = vadd.f32 %v146, %v1353
  %v1355 = vpop.f32.mrf.mxu0
  %v1356 = vadd.f32 %v146, %v1355
  %1357 = vmatmul.bf16.gmra.mxu0 %v606
  %v1358 = vpop.f32.mrf.mxu0
  %v1359 = vadd.f32 %v146, %v1358
  %v1360 = vpop.f32.mrf.mxu0
  %v1361 = vadd.f32 %v146, %v1360
  %1362 = vmatmul.bf16.gmra.mxu0 %v609
  %v1363 = vpop.f32.mrf.mxu0
  %v1364 = vadd.f32 %v146, %v1363
  %v1365 = vpop.f32.mrf.mxu0
  %v1366 = vadd.f32 %v146, %v1365
  %1367 = vmatmul.bf16.gmra.mxu0 %v612
  %v1368 = vpop.f32.mrf.mxu0
  %v1369 = vadd.f32 %v146, %v1368
  %v1370 = vpop.f32.mrf.mxu0
  %v1371 = vadd.f32 %v146, %v1370
  %1372 = vmatmul.bf16.gmra.mxu0 %v615
  %v1373 = vpop.f32.mrf.mxu0
  %v1374 = vadd.f32 %v146, %v1373
  %v1375 = vpop.f32.mrf.mxu0
  %v1376 = vadd.f32 %v146, %v1375
  %1377 = vmatmul.bf16.gmra.mxu0 %v618
  %v1378 = vpop.f32.mrf.mxu0
  %v1379 = vadd.f32 %v146, %v1378
  %v1380 = vpop.f32.mrf.mxu0
  %v1381 = vadd.f32 %v146, %v1380
  %1382 = vmatmul.bf16.gmra.mxu0 %v621
  %v1383 = vpop.f32.mrf.mxu0
  %v1384 = vadd.f32 %v146, %v1383
  %v1385 = vpop.f32.mrf.mxu0
  %v1386 = vadd.f32 %v146, %v1385
  %1387 = vmatmul.bf16.gmra.mxu0 %v624
  %v1388 = vpop.f32.mrf.mxu0
  %v1389 = vadd.f32 %v146, %v1388
  %v1390 = vpop.f32.mrf.mxu0
  %v1391 = vadd.f32 %v146, %v1390
  %1392 = vmatmul.bf16.gmra.mxu0 %v627
  %v1393 = vpop.f32.mrf.mxu0
  %v1394 = vadd.f32 %v146, %v1393
  %v1395 = vpop.f32.mrf.mxu0
  %v1396 = vadd.f32 %v146, %v1395
  %1397 = vmatmul.bf16.gmra.mxu0 %v630
  %v1398 = vpop.f32.mrf.mxu0
  %v1399 = vadd.f32 %v146, %v1398
  %v1400 = vpop.f32.mrf.mxu0
  %v1401 = vadd.f32 %v146, %v1400
  %1402 = vmatmul.bf16.gmra.mxu0 %v633
  %v1403 = vpop.f32.mrf.mxu0
  %v1404 = vadd.f32 %v146, %v1403
  %v1405 = vpop.f32.mrf.mxu0
  %v1406 = vadd.f32 %v146, %v1405
  %1407 = vmatmul.bf16.gmra.mxu0 %v636
  %v1408 = vpop.f32.mrf.mxu0
  %v1409 = vadd.f32 %v146, %v1408
  %v1410 = vpop.f32.mrf.mxu0
  %v1411 = vadd.f32 %v146, %v1410
  %1412 = vmatmul.bf16.gmra.mxu0 %v639
  %v1413 = vpop.f32.mrf.mxu0
  %v1414 = vadd.f32 %v146, %v1413
  %v1415 = vpop.f32.mrf.mxu0
  %v1416 = vadd.f32 %v146, %v1415
  %1417 = vmatmul.bf16.gmra.mxu0 %v642
  %v1418 = vpop.f32.mrf.mxu0
  %v1419 = vadd.f32 %v146, %v1418
  %v1420 = vpop.f32.mrf.mxu0
  %v1421 = vadd.f32 %v146, %v1420
  %1422 = vmatmul.bf16.gmra.mxu0 %v645
  %v1423 = vpop.f32.mrf.mxu0
  %v1424 = vadd.f32 %v146, %v1423
  %v1425 = vpop.f32.mrf.mxu0
  %v1426 = vadd.f32 %v146, %v1425
  %1427 = vmatmul.bf16.gmra.mxu0 %v648
  %v1428 = vpop.f32.mrf.mxu0
  %v1429 = vadd.f32 %v146, %v1428
  %v1430 = vpop.f32.mrf.mxu0
  %v1431 = vadd.f32 %v146, %v1430
  %1432 = vmatmul.bf16.gmra.mxu0 %v651
  %v1433 = vpop.f32.mrf.mxu0
  %v1434 = vadd.f32 %v146, %v1433
  %v1435 = vpop.f32.mrf.mxu0
  %v1436 = vadd.f32 %v146, %v1435
  %1437 = vmatmul.bf16.gmra.mxu0 %v654
  %v1438 = vpop.f32.mrf.mxu0
  %v1439 = vadd.f32 %v146, %v1438
  %v1440 = vpop.f32.mrf.mxu0
  %v1441 = vadd.f32 %v146, %v1440
  %1442 = vmatmul.bf16.gmra.mxu0 %v657
  %v1443 = vpop.f32.mrf.mxu0
  %v1444 = vadd.f32 %v146, %v1443
  %v1445 = vpop.f32.mrf.mxu0
  %v1446 = vadd.f32 %v146, %v1445
  %1447 = vmatmul.bf16.gmra.mxu0 %v660
  %v1448 = vpop.f32.mrf.mxu0
  %v1449 = vadd.f32 %v146, %v1448
  %v1450 = vpop.f32.mrf.mxu0
  %v1451 = vadd.f32 %v146, %v1450
  %1452 = vmatmul.bf16.gmra.mxu0 %v663
  %v1453 = vpop.f32.mrf.mxu0
  %v1454 = vadd.f32 %v146, %v1453
  %v1455 = vpop.f32.mrf.mxu0
  %v1456 = vadd.f32 %v146, %v1455
  %1457 = vmatmul.bf16.gmra.mxu0 %v666
  %v1458 = vpop.f32.mrf.mxu0
  %v1459 = vadd.f32 %v146, %v1458
  %v1460 = vpop.f32.mrf.mxu0
  %v1461 = vadd.f32 %v146, %v1460
  %1462 = vmatmul.bf16.gmra.mxu0 %v669
  %v1463 = vpop.f32.mrf.mxu0
  %v1464 = vadd.f32 %v146, %v1463
  %v1465 = vpop.f32.mrf.mxu0
  %v1466 = vadd.f32 %v146, %v1465
  %1467 = vmatmul.bf16.gmra.mxu0 %v672
  %v1468 = vpop.f32.mrf.mxu0
  %v1469 = vadd.f32 %v146, %v1468
  %v1470 = vpop.f32.mrf.mxu0
  %1471 = vdwg.mxu0
  %1472 = vmatpush.bf16.msra.mxu0 0
  %1473 = vmatpush.bf16.msra.mxu0 0
  %1474 = vmatpush.bf16.msra.mxu0 0
  %1475 = vmatpush.bf16.msra.mxu0 0
  %1476 = vmatpush.bf16.msra.mxu0 %v529
  %1477 = vmatpush.bf16.msra.mxu0 %v514
  %1478 = vmatpush.bf16.msra.mxu0 %v499
  %1479 = vmatpush.bf16.msra.mxu0 %v484
  %1480 = vmatmul.bf16.gmra.mxu0 %v600
  %v1481 = vpop.f32.mrf.mxu0
  %v1482 = vadd.f32 %v147, %v1481
  %v1483 = vpop.f32.mrf.mxu0
  %v1484 = vadd.f32 %v147, %v1483
  %1485 = vmatmul.bf16.gmra.mxu0 %v603
  %v1486 = vpop.f32.mrf.mxu0
  %v1487 = vadd.f32 %v147, %v1486
  %v1488 = vpop.f32.mrf.mxu0
  %v1489 = vadd.f32 %v147, %v1488
  %1490 = vmatmul.bf16.gmra.mxu0 %v606
  %v1491 = vpop.f32.mrf.mxu0
  %v1492 = vadd.f32 %v147, %v1491
  %v1493 = vpop.f32.mrf.mxu0
  %v1494 = vadd.f32 %v147, %v1493
  %1495 = vmatmul.bf16.gmra.mxu0 %v609
  %v1496 = vpop.f32.mrf.mxu0
  %v1497 = vadd.f32 %v147, %v1496
  %v1498 = vpop.f32.mrf.mxu0
  %v1499 = vadd.f32 %v147, %v1498
  %1500 = vmatmul.bf16.gmra.mxu0 %v612
  %v1501 = vpop.f32.mrf.mxu0
  %v1502 = vadd.f32 %v147, %v1501
  %v1503 = vpop.f32.mrf.mxu0
  %v1504 = vadd.f32 %v147, %v1503
  %1505 = vmatmul.bf16.gmra.mxu0 %v615
  %v1506 = vpop.f32.mrf.mxu0
  %v1507 = vadd.f32 %v147, %v1506
  %v1508 = vpop.f32.mrf.mxu0
  %v1509 = vadd.f32 %v147, %v1508
  %1510 = vmatmul.bf16.gmra.mxu0 %v618
  %v1511 = vpop.f32.mrf.mxu0
  %v1512 = vadd.f32 %v147, %v1511
  %v1513 = vpop.f32.mrf.mxu0
  %v1514 = vadd.f32 %v147, %v1513
  %1515 = vmatmul.bf16.gmra.mxu0 %v621
  %v1516 = vpop.f32.mrf.mxu0
  %v1517 = vadd.f32 %v147, %v1516
  %v1518 = vpop.f32.mrf.mxu0
  %v1519 = vadd.f32 %v147, %v1518
  %1520 = vmatmul.bf16.gmra.mxu0 %v624
  %v1521 = vpop.f32.mrf.mxu0
  %v1522 = vadd.f32 %v147, %v1521
  %v1523 = vpop.f32.mrf.mxu0
  %v1524 = vadd.f32 %v147, %v1523
  %1525 = vmatmul.bf16.gmra.mxu0 %v627
  %v1526 = vpop.f32.mrf.mxu0
  %v1527 = vadd.f32 %v147, %v1526
  %v1528 = vpop.f32.mrf.mxu0
  %v1529 = vadd.f32 %v147, %v1528
  %1530 = vmatmul.bf16.gmra.mxu0 %v630
  %v1531 = vpop.f32.mrf.mxu0
  %v1532 = vadd.f32 %v147, %v1531
  %v1533 = vpop.f32.mrf.mxu0
  %v1534 = vadd.f32 %v147, %v1533
  %1535 = vmatmul.bf16.gmra.mxu0 %v633
  %v1536 = vpop.f32.mrf.mxu0
  %v1537 = vadd.f32 %v147, %v1536
  %v1538 = vpop.f32.mrf.mxu0
  %v1539 = vadd.f32 %v147, %v1538
  %1540 = vmatmul.bf16.gmra.mxu0 %v636
  %v1541 = vpop.f32.mrf.mxu0
  %v1542 = vadd.f32 %v147, %v1541
  %v1543 = vpop.f32.mrf.mxu0
  %v1544 = vadd.f32 %v147, %v1543
  %1545 = vmatmul.bf16.gmra.mxu0 %v639
  %v1546 = vpop.f32.mrf.mxu0
  %v1547 = vadd.f32 %v147, %v1546
  %v1548 = vpop.f32.mrf.mxu0
  %v1549 = vadd.f32 %v147, %v1548
  %1550 = vmatmul.bf16.gmra.mxu0 %v642
  %v1551 = vpop.f32.mrf.mxu0
  %v1552 = vadd.f32 %v147, %v1551
  %v1553 = vpop.f32.mrf.mxu0
  %v1554 = vadd.f32 %v147, %v1553
  %1555 = vmatmul.bf16.gmra.mxu0 %v645
  %v1556 = vpop.f32.mrf.mxu0
  %v1557 = vadd.f32 %v147, %v1556
  %v1558 = vpop.f32.mrf.mxu0
  %v1559 = vadd.f32 %v147, %v1558
  %1560 = vmatmul.bf16.gmra.mxu0 %v648
  %v1561 = vpop.f32.mrf.mxu0
  %v1562 = vadd.f32 %v147, %v1561
  %v1563 = vpop.f32.mrf.mxu0
  %v1564 = vadd.f32 %v147, %v1563
  %1565 = vmatmul.bf16.gmra.mxu0 %v651
  %v1566 = vpop.f32.mrf.mxu0
  %v1567 = vadd.f32 %v147, %v1566
  %v1568 = vpop.f32.mrf.mxu0
  %v1569 = vadd.f32 %v147, %v1568
  %1570 = vmatmul.bf16.gmra.mxu0 %v654
  %v1571 = vpop.f32.mrf.mxu0
  %v1572 = vadd.f32 %v147, %v1571
  %v1573 = vpop.f32.mrf.mxu0
  %v1574 = vadd.f32 %v147, %v1573
  %1575 = vmatmul.bf16.gmra.mxu0 %v657
  %v1576 = vpop.f32.mrf.mxu0
  %v1577 = vadd.f32 %v147, %v1576
  %v1578 = vpop.f32.mrf.mxu0
  %v1579 = vadd.f32 %v147, %v1578
  %1580 = vmatmul.bf16.gmra.mxu0 %v660
  %v1581 = vpop.f32.mrf.mxu0
  %v1582 = vadd.f32 %v147, %v1581
  %v1583 = vpop.f32.mrf.mxu0
  %v1584 = vadd.f32 %v147, %v1583
  %1585 = vmatmul.bf16.gmra.mxu0 %v663
  %v1586 = vpop.f32.mrf.mxu0
  %v1587 = vadd.f32 %v147, %v1586
  %v1588 = vpop.f32.mrf.mxu0
  %v1589 = vadd.f32 %v147, %v1588
  %1590 = vmatmul.bf16.gmra.mxu0 %v666
  %v1591 = vpop.f32.mrf.mxu0
  %v1592 = vadd.f32 %v147, %v1591
  %v1593 = vpop.f32.mrf.mxu0
  %v1594 = vadd.f32 %v147, %v1593
  %1595 = vmatmul.bf16.gmra.mxu0 %v669
  %v1596 = vpop.f32.mrf.mxu0
  %v1597 = vadd.f32 %v147, %v1596
  %v1598 = vpop.f32.mrf.mxu0
  %v1599 = vadd.f32 %v147, %v1598
  %1600 = vmatmul.bf16.gmra.mxu0 %v672
  %v1601 = vpop.f32.mrf.mxu0
  %v1602 = vadd.f32 %v147, %v1601
  %v1603 = vpop.f32.mrf.mxu0
  %1604 = vdwg.mxu0
  %1605 = vmatpush.bf16.msra.mxu0 0
  %1606 = vmatpush.bf16.msra.mxu0 0
  %1607 = vmatpush.bf16.msra.mxu0 0
  %1608 = vmatpush.bf16.msra.mxu0 0
  %1609 = vmatpush.bf16.msra.mxu0 %v530
  %1610 = vmatpush.bf16.msra.mxu0 %v515
  %1611 = vmatpush.bf16.msra.mxu0 %v500
  %1612 = vmatpush.bf16.msra.mxu0 %v485
  %1613 = vmatmul.bf16.gmra.mxu0 %v600
  %v1614 = vpop.f32.mrf.mxu0
  %v1615 = vadd.f32 %v148, %v1614
  %v1616 = vpop.f32.mrf.mxu0
  %v1617 = vadd.f32 %v148, %v1616
  %1618 = vmatmul.bf16.gmra.mxu0 %v603
  %v1619 = vpop.f32.mrf.mxu0
  %v1620 = vadd.f32 %v148, %v1619
  %v1621 = vpop.f32.mrf.mxu0
  %v1622 = vadd.f32 %v148, %v1621
  %1623 = vmatmul.bf16.gmra.mxu0 %v606
  %v1624 = vpop.f32.mrf.mxu0
  %v1625 = vadd.f32 %v148, %v1624
  %v1626 = vpop.f32.mrf.mxu0
  %v1627 = vadd.f32 %v148, %v1626
  %1628 = vmatmul.bf16.gmra.mxu0 %v609
  %v1629 = vpop.f32.mrf.mxu0
  %v1630 = vadd.f32 %v148, %v1629
  %v1631 = vpop.f32.mrf.mxu0
  %v1632 = vadd.f32 %v148, %v1631
  %1633 = vmatmul.bf16.gmra.mxu0 %v612
  %v1634 = vpop.f32.mrf.mxu0
  %v1635 = vadd.f32 %v148, %v1634
  %v1636 = vpop.f32.mrf.mxu0
  %v1637 = vadd.f32 %v148, %v1636
  %1638 = vmatmul.bf16.gmra.mxu0 %v615
  %v1639 = vpop.f32.mrf.mxu0
  %v1640 = vadd.f32 %v148, %v1639
  %v1641 = vpop.f32.mrf.mxu0
  %v1642 = vadd.f32 %v148, %v1641
  %1643 = vmatmul.bf16.gmra.mxu0 %v618
  %v1644 = vpop.f32.mrf.mxu0
  %v1645 = vadd.f32 %v148, %v1644
  %v1646 = vpop.f32.mrf.mxu0
  %v1647 = vadd.f32 %v148, %v1646
  %1648 = vmatmul.bf16.gmra.mxu0 %v621
  %v1649 = vpop.f32.mrf.mxu0
  %v1650 = vadd.f32 %v148, %v1649
  %v1651 = vpop.f32.mrf.mxu0
  %v1652 = vadd.f32 %v148, %v1651
  %1653 = vmatmul.bf16.gmra.mxu0 %v624
  %v1654 = vpop.f32.mrf.mxu0
  %v1655 = vadd.f32 %v148, %v1654
  %v1656 = vpop.f32.mrf.mxu0
  %v1657 = vadd.f32 %v148, %v1656
  %1658 = vmatmul.bf16.gmra.mxu0 %v627
  %v1659 = vpop.f32.mrf.mxu0
  %v1660 = vadd.f32 %v148, %v1659
  %v1661 = vpop.f32.mrf.mxu0
  %v1662 = vadd.f32 %v148, %v1661
  %1663 = vmatmul.bf16.gmra.mxu0 %v630
  %v1664 = vpop.f32.mrf.mxu0
  %v1665 = vadd.f32 %v148, %v1664
  %v1666 = vpop.f32.mrf.mxu0
  %v1667 = vadd.f32 %v148, %v1666
  %1668 = vmatmul.bf16.gmra.mxu0 %v633
  %v1669 = vpop.f32.mrf.mxu0
  %v1670 = vadd.f32 %v148, %v1669
  %v1671 = vpop.f32.mrf.mxu0
  %v1672 = vadd.f32 %v148, %v1671
  %1673 = vmatmul.bf16.gmra.mxu0 %v636
  %v1674 = vpop.f32.mrf.mxu0
  %v1675 = vadd.f32 %v148, %v1674
  %v1676 = vpop.f32.mrf.mxu0
  %v1677 = vadd.f32 %v148, %v1676
  %1678 = vmatmul.bf16.gmra.mxu0 %v639
  %v1679 = vpop.f32.mrf.mxu0
  %v1680 = vadd.f32 %v148, %v1679
  %v1681 = vpop.f32.mrf.mxu0
  %v1682 = vadd.f32 %v148, %v1681
  %1683 = vmatmul.bf16.gmra.mxu0 %v642
  %v1684 = vpop.f32.mrf.mxu0
  %v1685 = vadd.f32 %v148, %v1684
  %v1686 = vpop.f32.mrf.mxu0
  %v1687 = vadd.f32 %v148, %v1686
  %1688 = vmatmul.bf16.gmra.mxu0 %v645
  %v1689 = vpop.f32.mrf.mxu0
  %v1690 = vadd.f32 %v148, %v1689
  %v1691 = vpop.f32.mrf.mxu0
  %v1692 = vadd.f32 %v148, %v1691
  %1693 = vmatmul.bf16.gmra.mxu0 %v648
  %v1694 = vpop.f32.mrf.mxu0
  %v1695 = vadd.f32 %v148, %v1694
  %v1696 = vpop.f32.mrf.mxu0
  %v1697 = vadd.f32 %v148, %v1696
  %1698 = vmatmul.bf16.gmra.mxu0 %v651
  %v1699 = vpop.f32.mrf.mxu0
  %v1700 = vadd.f32 %v148, %v1699
  %v1701 = vpop.f32.mrf.mxu0
  %v1702 = vadd.f32 %v148, %v1701
  %1703 = vmatmul.bf16.gmra.mxu0 %v654
  %v1704 = vpop.f32.mrf.mxu0
  %v1705 = vadd.f32 %v148, %v1704
  %v1706 = vpop.f32.mrf.mxu0
  %v1707 = vadd.f32 %v148, %v1706
  %1708 = vmatmul.bf16.gmra.mxu0 %v657
  %v1709 = vpop.f32.mrf.mxu0
  %v1710 = vadd.f32 %v148, %v1709
  %v1711 = vpop.f32.mrf.mxu0
  %v1712 = vadd.f32 %v148, %v1711
  %1713 = vmatmul.bf16.gmra.mxu0 %v660
  %v1714 = vpop.f32.mrf.mxu0
  %v1715 = vadd.f32 %v148, %v1714
  %v1716 = vpop.f32.mrf.mxu0
  %v1717 = vadd.f32 %v148, %v1716
  %1718 = vmatmul.bf16.gmra.mxu0 %v663
  %v1719 = vpop.f32.mrf.mxu0
  %v1720 = vadd.f32 %v148, %v1719
  %v1721 = vpop.f32.mrf.mxu0
  %v1722 = vadd.f32 %v148, %v1721
  %1723 = vmatmul.bf16.gmra.mxu0 %v666
  %v1724 = vpop.f32.mrf.mxu0
  %v1725 = vadd.f32 %v148, %v1724
  %v1726 = vpop.f32.mrf.mxu0
  %v1727 = vadd.f32 %v148, %v1726
  %1728 = vmatmul.bf16.gmra.mxu0 %v669
  %v1729 = vpop.f32.mrf.mxu0
  %v1730 = vadd.f32 %v148, %v1729
  %v1731 = vpop.f32.mrf.mxu0
  %v1732 = vadd.f32 %v148, %v1731
  %1733 = vmatmul.bf16.gmra.mxu0 %v672
  %v1734 = vpop.f32.mrf.mxu0
  %v1735 = vadd.f32 %v148, %v1734
  %v1736 = vpop.f32.mrf.mxu0
  %1737 = vdwg.mxu0
  %1738 = vmatpush.bf16.msra.mxu0 0
  %1739 = vmatpush.bf16.msra.mxu0 0
  %1740 = vmatpush.bf16.msra.mxu0 0
  %1741 = vmatpush.bf16.msra.mxu0 0
  %1742 = vmatpush.bf16.msra.mxu0 %v531
  %1743 = vmatpush.bf16.msra.mxu0 %v516
  %1744 = vmatpush.bf16.msra.mxu0 %v501
  %1745 = vmatpush.bf16.msra.mxu0 %v486
  %1746 = vmatmul.bf16.gmra.mxu0 %v600
  %v1747 = vpop.f32.mrf.mxu0
  %v1748 = vadd.f32 %v149, %v1747
  %v1749 = vpop.f32.mrf.mxu0
  %v1750 = vadd.f32 %v149, %v1749
  %1751 = vmatmul.bf16.gmra.mxu0 %v603
  %v1752 = vpop.f32.mrf.mxu0
  %v1753 = vadd.f32 %v149, %v1752
  %v1754 = vpop.f32.mrf.mxu0
  %v1755 = vadd.f32 %v149, %v1754
  %1756 = vmatmul.bf16.gmra.mxu0 %v606
  %v1757 = vpop.f32.mrf.mxu0
  %v1758 = vadd.f32 %v149, %v1757
  %v1759 = vpop.f32.mrf.mxu0
  %v1760 = vadd.f32 %v149, %v1759
  %1761 = vmatmul.bf16.gmra.mxu0 %v609
  %v1762 = vpop.f32.mrf.mxu0
  %v1763 = vadd.f32 %v149, %v1762
  %v1764 = vpop.f32.mrf.mxu0
  %v1765 = vadd.f32 %v149, %v1764
  %1766 = vmatmul.bf16.gmra.mxu0 %v612
  %v1767 = vpop.f32.mrf.mxu0
  %v1768 = vadd.f32 %v149, %v1767
  %v1769 = vpop.f32.mrf.mxu0
  %v1770 = vadd.f32 %v149, %v1769
  %1771 = vmatmul.bf16.gmra.mxu0 %v615
  %v1772 = vpop.f32.mrf.mxu0
  %v1773 = vadd.f32 %v149, %v1772
  %v1774 = vpop.f32.mrf.mxu0
  %v1775 = vadd.f32 %v149, %v1774
  %1776 = vmatmul.bf16.gmra.mxu0 %v618
  %v1777 = vpop.f32.mrf.mxu0
  %v1778 = vadd.f32 %v149, %v1777
  %v1779 = vpop.f32.mrf.mxu0
  %v1780 = vadd.f32 %v149, %v1779
  %1781 = vmatmul.bf16.gmra.mxu0 %v621
  %v1782 = vpop.f32.mrf.mxu0
  %v1783 = vadd.f32 %v149, %v1782
  %v1784 = vpop.f32.mrf.mxu0
  %v1785 = vadd.f32 %v149, %v1784
  %1786 = vmatmul.bf16.gmra.mxu0 %v624
  %v1787 = vpop.f32.mrf.mxu0
  %v1788 = vadd.f32 %v149, %v1787
  %v1789 = vpop.f32.mrf.mxu0
  %v1790 = vadd.f32 %v149, %v1789
  %1791 = vmatmul.bf16.gmra.mxu0 %v627
  %v1792 = vpop.f32.mrf.mxu0
  %v1793 = vadd.f32 %v149, %v1792
  %v1794 = vpop.f32.mrf.mxu0
  %v1795 = vadd.f32 %v149, %v1794
  %1796 = vmatmul.bf16.gmra.mxu0 %v630
  %v1797 = vpop.f32.mrf.mxu0
  %v1798 = vadd.f32 %v149, %v1797
  %v1799 = vpop.f32.mrf.mxu0
  %v1800 = vadd.f32 %v149, %v1799
  %1801 = vmatmul.bf16.gmra.mxu0 %v633
  %v1802 = vpop.f32.mrf.mxu0
  %v1803 = vadd.f32 %v149, %v1802
  %v1804 = vpop.f32.mrf.mxu0
  %v1805 = vadd.f32 %v149, %v1804
  %1806 = vmatmul.bf16.gmra.mxu0 %v636
  %v1807 = vpop.f32.mrf.mxu0
  %v1808 = vadd.f32 %v149, %v1807
  %v1809 = vpop.f32.mrf.mxu0
  %v1810 = vadd.f32 %v149, %v1809
  %1811 = vmatmul.bf16.gmra.mxu0 %v639
  %v1812 = vpop.f32.mrf.mxu0
  %v1813 = vadd.f32 %v149, %v1812
  %v1814 = vpop.f32.mrf.mxu0
  %v1815 = vadd.f32 %v149, %v1814
  %1816 = vmatmul.bf16.gmra.mxu0 %v642
  %v1817 = vpop.f32.mrf.mxu0
  %v1818 = vadd.f32 %v149, %v1817
  %v1819 = vpop.f32.mrf.mxu0
  %v1820 = vadd.f32 %v149, %v1819
  %1821 = vmatmul.bf16.gmra.mxu0 %v645
  %v1822 = vpop.f32.mrf.mxu0
  %v1823 = vadd.f32 %v149, %v1822
  %v1824 = vpop.f32.mrf.mxu0
  %v1825 = vadd.f32 %v149, %v1824
  %1826 = vmatmul.bf16.gmra.mxu0 %v648
  %v1827 = vpop.f32.mrf.mxu0
  %v1828 = vadd.f32 %v149, %v1827
  %v1829 = vpop.f32.mrf.mxu0
  %v1830 = vadd.f32 %v149, %v1829
  %1831 = vmatmul.bf16.gmra.mxu0 %v651
  %v1832 = vpop.f32.mrf.mxu0
  %v1833 = vadd.f32 %v149, %v1832
  %v1834 = vpop.f32.mrf.mxu0
  %v1835 = vadd.f32 %v149, %v1834
  %1836 = vmatmul.bf16.gmra.mxu0 %v654
  %v1837 = vpop.f32.mrf.mxu0
  %v1838 = vadd.f32 %v149, %v1837
  %v1839 = vpop.f32.mrf.mxu0
  %v1840 = vadd.f32 %v149, %v1839
  %1841 = vmatmul.bf16.gmra.mxu0 %v657
  %v1842 = vpop.f32.mrf.mxu0
  %v1843 = vadd.f32 %v149, %v1842
  %v1844 = vpop.f32.mrf.mxu0
  %v1845 = vadd.f32 %v149, %v1844
  %1846 = vmatmul.bf16.gmra.mxu0 %v660
  %v1847 = vpop.f32.mrf.mxu0
  %v1848 = vadd.f32 %v149, %v1847
  %v1849 = vpop.f32.mrf.mxu0
  %v1850 = vadd.f32 %v149, %v1849
  %1851 = vmatmul.bf16.gmra.mxu0 %v663
  %v1852 = vpop.f32.mrf.mxu0
  %v1853 = vadd.f32 %v149, %v1852
  %v1854 = vpop.f32.mrf.mxu0
  %v1855 = vadd.f32 %v149, %v1854
  %1856 = vmatmul.bf16.gmra.mxu0 %v666
  %v1857 = vpop.f32.mrf.mxu0
  %v1858 = vadd.f32 %v149, %v1857
  %v1859 = vpop.f32.mrf.mxu0
  %v1860 = vadd.f32 %v149, %v1859
  %1861 = vmatmul.bf16.gmra.mxu0 %v669
  %v1862 = vpop.f32.mrf.mxu0
  %v1863 = vadd.f32 %v149, %v1862
  %v1864 = vpop.f32.mrf.mxu0
  %v1865 = vadd.f32 %v149, %v1864
  %1866 = vmatmul.bf16.gmra.mxu0 %v672
  %v1867 = vpop.f32.mrf.mxu0
  %v1868 = vadd.f32 %v149, %v1867
  %v1869 = vpop.f32.mrf.mxu0
  %1870 = vdwg.mxu0
  %1871 = vmatpush.bf16.msra.mxu0 0
  %1872 = vmatpush.bf16.msra.mxu0 0
  %1873 = vmatpush.bf16.msra.mxu0 0
  %1874 = vmatpush.bf16.msra.mxu0 0
  %1875 = vmatpush.bf16.msra.mxu0 %v532
  %1876 = vmatpush.bf16.msra.mxu0 %v517
  %1877 = vmatpush.bf16.msra.mxu0 %v502
  %1878 = vmatpush.bf16.msra.mxu0 %v487
  %1879 = vmatmul.bf16.gmra.mxu0 %v600
  %v1880 = vpop.f32.mrf.mxu0
  %v1881 = vadd.f32 %v150, %v1880
  %v1882 = vpop.f32.mrf.mxu0
  %v1883 = vadd.f32 %v150, %v1882
  %1884 = vmatmul.bf16.gmra.mxu0 %v603
  %v1885 = vpop.f32.mrf.mxu0
  %v1886 = vadd.f32 %v150, %v1885
  %v1887 = vpop.f32.mrf.mxu0
  %v1888 = vadd.f32 %v150, %v1887
  %1889 = vmatmul.bf16.gmra.mxu0 %v606
  %v1890 = vpop.f32.mrf.mxu0
  %v1891 = vadd.f32 %v150, %v1890
  %v1892 = vpop.f32.mrf.mxu0
  %v1893 = vadd.f32 %v150, %v1892
  %1894 = vmatmul.bf16.gmra.mxu0 %v609
  %v1895 = vpop.f32.mrf.mxu0
  %v1896 = vadd.f32 %v150, %v1895
  %v1897 = vpop.f32.mrf.mxu0
  %v1898 = vadd.f32 %v150, %v1897
  %1899 = vmatmul.bf16.gmra.mxu0 %v612
  %v1900 = vpop.f32.mrf.mxu0
  %v1901 = vadd.f32 %v150, %v1900
  %v1902 = vpop.f32.mrf.mxu0
  %v1903 = vadd.f32 %v150, %v1902
  %1904 = vmatmul.bf16.gmra.mxu0 %v615
  %v1905 = vpop.f32.mrf.mxu0
  %v1906 = vadd.f32 %v150, %v1905
  %v1907 = vpop.f32.mrf.mxu0
  %v1908 = vadd.f32 %v150, %v1907
  %1909 = vmatmul.bf16.gmra.mxu0 %v618
  %v1910 = vpop.f32.mrf.mxu0
  %v1911 = vadd.f32 %v150, %v1910
  %v1912 = vpop.f32.mrf.mxu0
  %v1913 = vadd.f32 %v150, %v1912
  %1914 = vmatmul.bf16.gmra.mxu0 %v621
  %v1915 = vpop.f32.mrf.mxu0
  %v1916 = vadd.f32 %v150, %v1915
  %v1917 = vpop.f32.mrf.mxu0
  %v1918 = vadd.f32 %v150, %v1917
  %1919 = vmatmul.bf16.gmra.mxu0 %v624
  %v1920 = vpop.f32.mrf.mxu0
  %v1921 = vadd.f32 %v150, %v1920
  %v1922 = vpop.f32.mrf.mxu0
  %v1923 = vadd.f32 %v150, %v1922
  %1924 = vmatmul.bf16.gmra.mxu0 %v627
  %v1925 = vpop.f32.mrf.mxu0
  %v1926 = vadd.f32 %v150, %v1925
  %v1927 = vpop.f32.mrf.mxu0
  %v1928 = vadd.f32 %v150, %v1927
  %1929 = vmatmul.bf16.gmra.mxu0 %v630
  %v1930 = vpop.f32.mrf.mxu0
  %v1931 = vadd.f32 %v150, %v1930
  %v1932 = vpop.f32.mrf.mxu0
  %v1933 = vadd.f32 %v150, %v1932
  %1934 = vmatmul.bf16.gmra.mxu0 %v633
  %v1935 = vpop.f32.mrf.mxu0
  %v1936 = vadd.f32 %v150, %v1935
  %v1937 = vpop.f32.mrf.mxu0
  %v1938 = vadd.f32 %v150, %v1937
  %1939 = vmatmul.bf16.gmra.mxu0 %v636
  %v1940 = vpop.f32.mrf.mxu0
  %v1941 = vadd.f32 %v150, %v1940
  %v1942 = vpop.f32.mrf.mxu0
  %v1943 = vadd.f32 %v150, %v1942
  %1944 = vmatmul.bf16.gmra.mxu0 %v639
  %v1945 = vpop.f32.mrf.mxu0
  %v1946 = vadd.f32 %v150, %v1945
  %v1947 = vpop.f32.mrf.mxu0
  %v1948 = vadd.f32 %v150, %v1947
  %1949 = vmatmul.bf16.gmra.mxu0 %v642
  %v1950 = vpop.f32.mrf.mxu0
  %v1951 = vadd.f32 %v150, %v1950
  %v1952 = vpop.f32.mrf.mxu0
  %v1953 = vadd.f32 %v150, %v1952
  %1954 = vmatmul.bf16.gmra.mxu0 %v645
  %v1955 = vpop.f32.mrf.mxu0
  %v1956 = vadd.f32 %v150, %v1955
  %v1957 = vpop.f32.mrf.mxu0
  %v1958 = vadd.f32 %v150, %v1957
  %1959 = vmatmul.bf16.gmra.mxu0 %v648
  %v1960 = vpop.f32.mrf.mxu0
  %v1961 = vadd.f32 %v150, %v1960
  %v1962 = vpop.f32.mrf.mxu0
  %v1963 = vadd.f32 %v150, %v1962
  %1964 = vmatmul.bf16.gmra.mxu0 %v651
  %v1965 = vpop.f32.mrf.mxu0
  %v1966 = vadd.f32 %v150, %v1965
  %v1967 = vpop.f32.mrf.mxu0
  %v1968 = vadd.f32 %v150, %v1967
  %1969 = vmatmul.bf16.gmra.mxu0 %v654
  %v1970 = vpop.f32.mrf.mxu0
  %v1971 = vadd.f32 %v150, %v1970
  %v1972 = vpop.f32.mrf.mxu0
  %v1973 = vadd.f32 %v150, %v1972
  %1974 = vmatmul.bf16.gmra.mxu0 %v657
  %v1975 = vpop.f32.mrf.mxu0
  %v1976 = vadd.f32 %v150, %v1975
  %v1977 = vpop.f32.mrf.mxu0
  %v1978 = vadd.f32 %v150, %v1977
  %1979 = vmatmul.bf16.gmra.mxu0 %v660
  %v1980 = vpop.f32.mrf.mxu0
  %v1981 = vadd.f32 %v150, %v1980
  %v1982 = vpop.f32.mrf.mxu0
  %v1983 = vadd.f32 %v150, %v1982
  %1984 = vmatmul.bf16.gmra.mxu0 %v663
  %v1985 = vpop.f32.mrf.mxu0
  %v1986 = vadd.f32 %v150, %v1985
  %v1987 = vpop.f32.mrf.mxu0
  %v1988 = vadd.f32 %v150, %v1987
  %1989 = vmatmul.bf16.gmra.mxu0 %v666
  %v1990 = vpop.f32.mrf.mxu0
  %v1991 = vadd.f32 %v150, %v1990
  %v1992 = vpop.f32.mrf.mxu0
  %v1993 = vadd.f32 %v150, %v1992
  %1994 = vmatmul.bf16.gmra.mxu0 %v669
  %v1995 = vpop.f32.mrf.mxu0
  %v1996 = vadd.f32 %v150, %v1995
  %v1997 = vpop.f32.mrf.mxu0
  %v1998 = vadd.f32 %v150, %v1997
  %1999 = vmatmul.bf16.gmra.mxu0 %v672
  %v2000 = vpop.f32.mrf.mxu0
  %v2001 = vadd.f32 %v150, %v2000
  %v2002 = vpop.f32.mrf.mxu0
  %2003 = vdwg.mxu0
  %2004 = vmatpush.bf16.msra.mxu0 0
  %2005 = vmatpush.bf16.msra.mxu0 0
  %2006 = vmatpush.bf16.msra.mxu0 0
  %2007 = vmatpush.bf16.msra.mxu0 0
  %2008 = vmatpush.bf16.msra.mxu0 %v533
  %2009 = vmatpush.bf16.msra.mxu0 %v518
  %2010 = vmatpush.bf16.msra.mxu0 %v503
  %2011 = vmatpush.bf16.msra.mxu0 %v488
  %2012 = vmatmul.bf16.gmra.mxu0 %v600
  %v2013 = vpop.f32.mrf.mxu0
  %v2014 = vadd.f32 %v151, %v2013
  %v2015 = vpop.f32.mrf.mxu0
  %v2016 = vadd.f32 %v151, %v2015
  %2017 = vmatmul.bf16.gmra.mxu0 %v603
  %v2018 = vpop.f32.mrf.mxu0
  %v2019 = vadd.f32 %v151, %v2018
  %v2020 = vpop.f32.mrf.mxu0
  %v2021 = vadd.f32 %v151, %v2020
  %2022 = vmatmul.bf16.gmra.mxu0 %v606
  %v2023 = vpop.f32.mrf.mxu0
  %v2024 = vadd.f32 %v151, %v2023
  %v2025 = vpop.f32.mrf.mxu0
  %v2026 = vadd.f32 %v151, %v2025
  %2027 = vmatmul.bf16.gmra.mxu0 %v609
  %v2028 = vpop.f32.mrf.mxu0
  %v2029 = vadd.f32 %v151, %v2028
  %v2030 = vpop.f32.mrf.mxu0
  %v2031 = vadd.f32 %v151, %v2030
  %2032 = vmatmul.bf16.gmra.mxu0 %v612
  %v2033 = vpop.f32.mrf.mxu0
  %v2034 = vadd.f32 %v151, %v2033
  %v2035 = vpop.f32.mrf.mxu0
  %v2036 = vadd.f32 %v151, %v2035
  %2037 = vmatmul.bf16.gmra.mxu0 %v615
  %v2038 = vpop.f32.mrf.mxu0
  %v2039 = vadd.f32 %v151, %v2038
  %v2040 = vpop.f32.mrf.mxu0
  %v2041 = vadd.f32 %v151, %v2040
  %2042 = vmatmul.bf16.gmra.mxu0 %v618
  %v2043 = vpop.f32.mrf.mxu0
  %v2044 = vadd.f32 %v151, %v2043
  %v2045 = vpop.f32.mrf.mxu0
  %v2046 = vadd.f32 %v151, %v2045
  %2047 = vmatmul.bf16.gmra.mxu0 %v621
  %v2048 = vpop.f32.mrf.mxu0
  %v2049 = vadd.f32 %v151, %v2048
  %v2050 = vpop.f32.mrf.mxu0
  %v2051 = vadd.f32 %v151, %v2050
  %2052 = vmatmul.bf16.gmra.mxu0 %v624
  %v2053 = vpop.f32.mrf.mxu0
  %v2054 = vadd.f32 %v151, %v2053
  %v2055 = vpop.f32.mrf.mxu0
  %v2056 = vadd.f32 %v151, %v2055
  %2057 = vmatmul.bf16.gmra.mxu0 %v627
  %v2058 = vpop.f32.mrf.mxu0
  %v2059 = vadd.f32 %v151, %v2058
  %v2060 = vpop.f32.mrf.mxu0
  %v2061 = vadd.f32 %v151, %v2060
  %2062 = vmatmul.bf16.gmra.mxu0 %v630
  %v2063 = vpop.f32.mrf.mxu0
  %v2064 = vadd.f32 %v151, %v2063
  %v2065 = vpop.f32.mrf.mxu0
  %v2066 = vadd.f32 %v151, %v2065
  %2067 = vmatmul.bf16.gmra.mxu0 %v633
  %v2068 = vpop.f32.mrf.mxu0
  %v2069 = vadd.f32 %v151, %v2068
  %v2070 = vpop.f32.mrf.mxu0
  %v2071 = vadd.f32 %v151, %v2070
  %2072 = vmatmul.bf16.gmra.mxu0 %v636
  %v2073 = vpop.f32.mrf.mxu0
  %v2074 = vadd.f32 %v151, %v2073
  %v2075 = vpop.f32.mrf.mxu0
  %v2076 = vadd.f32 %v151, %v2075
  %2077 = vmatmul.bf16.gmra.mxu0 %v639
  %v2078 = vpop.f32.mrf.mxu0
  %v2079 = vadd.f32 %v151, %v2078
  %v2080 = vpop.f32.mrf.mxu0
  %v2081 = vadd.f32 %v151, %v2080
  %2082 = vmatmul.bf16.gmra.mxu0 %v642
  %v2083 = vpop.f32.mrf.mxu0
  %v2084 = vadd.f32 %v151, %v2083
  %v2085 = vpop.f32.mrf.mxu0
  %v2086 = vadd.f32 %v151, %v2085
  %2087 = vmatmul.bf16.gmra.mxu0 %v645
  %v2088 = vpop.f32.mrf.mxu0
  %v2089 = vadd.f32 %v151, %v2088
  %v2090 = vpop.f32.mrf.mxu0
  %v2091 = vadd.f32 %v151, %v2090
  %2092 = vmatmul.bf16.gmra.mxu0 %v648
  %v2093 = vpop.f32.mrf.mxu0
  %v2094 = vadd.f32 %v151, %v2093
  %v2095 = vpop.f32.mrf.mxu0
  %v2096 = vadd.f32 %v151, %v2095
  %2097 = vmatmul.bf16.gmra.mxu0 %v651
  %v2098 = vpop.f32.mrf.mxu0
  %v2099 = vadd.f32 %v151, %v2098
  %v2100 = vpop.f32.mrf.mxu0
  %v2101 = vadd.f32 %v151, %v2100
  %2102 = vmatmul.bf16.gmra.mxu0 %v654
  %v2103 = vpop.f32.mrf.mxu0
  %v2104 = vadd.f32 %v151, %v2103
  %v2105 = vpop.f32.mrf.mxu0
  %v2106 = vadd.f32 %v151, %v2105
  %2107 = vmatmul.bf16.gmra.mxu0 %v657
  %v2108 = vpop.f32.mrf.mxu0
  %v2109 = vadd.f32 %v151, %v2108
  %v2110 = vpop.f32.mrf.mxu0
  %v2111 = vadd.f32 %v151, %v2110
  %2112 = vmatmul.bf16.gmra.mxu0 %v660
  %v2113 = vpop.f32.mrf.mxu0
  %v2114 = vadd.f32 %v151, %v2113
  %v2115 = vpop.f32.mrf.mxu0
  %v2116 = vadd.f32 %v151, %v2115
  %2117 = vmatmul.bf16.gmra.mxu0 %v663
  %v2118 = vpop.f32.mrf.mxu0
  %v2119 = vadd.f32 %v151, %v2118
  %v2120 = vpop.f32.mrf.mxu0
  %v2121 = vadd.f32 %v151, %v2120
  %2122 = vmatmul.bf16.gmra.mxu0 %v666
  %v2123 = vpop.f32.mrf.mxu0
  %v2124 = vadd.f32 %v151, %v2123
  %v2125 = vpop.f32.mrf.mxu0
  %v2126 = vadd.f32 %v151, %v2125
  %2127 = vmatmul.bf16.gmra.mxu0 %v669
  %v2128 = vpop.f32.mrf.mxu0
  %v2129 = vadd.f32 %v151, %v2128
  %v2130 = vpop.f32.mrf.mxu0
  %v2131 = vadd.f32 %v151, %v2130
  %2132 = vmatmul.bf16.gmra.mxu0 %v672
  %v2133 = vpop.f32.mrf.mxu0
  %v2134 = vadd.f32 %v151, %v2133
  %v2135 = vpop.f32.mrf.mxu0
  %2136 = vdwg.mxu0
  %2137 = vmatpush.bf16.msra.mxu0 0
  %2138 = vmatpush.bf16.msra.mxu0 0
  %2139 = vmatpush.bf16.msra.mxu0 0
  %2140 = vmatpush.bf16.msra.mxu0 0
  %2141 = vmatpush.bf16.msra.mxu0 %v534
  %2142 = vmatpush.bf16.msra.mxu0 %v519
  %2143 = vmatpush.bf16.msra.mxu0 %v504
  %2144 = vmatpush.bf16.msra.mxu0 %v489
  %2145 = vmatmul.bf16.gmra.mxu0 %v600
  %v2146 = vpop.f32.mrf.mxu0
  %v2147 = vadd.f32 %v152, %v2146
  %v2148 = vpop.f32.mrf.mxu0
  %v2149 = vadd.f32 %v152, %v2148
  %2150 = vmatmul.bf16.gmra.mxu0 %v603
  %v2151 = vpop.f32.mrf.mxu0
  %v2152 = vadd.f32 %v152, %v2151
  %v2153 = vpop.f32.mrf.mxu0
  %v2154 = vadd.f32 %v152, %v2153
  %2155 = vmatmul.bf16.gmra.mxu0 %v606
  %v2156 = vpop.f32.mrf.mxu0
  %v2157 = vadd.f32 %v152, %v2156
  %v2158 = vpop.f32.mrf.mxu0
  %v2159 = vadd.f32 %v152, %v2158
  %2160 = vmatmul.bf16.gmra.mxu0 %v609
  %v2161 = vpop.f32.mrf.mxu0
  %v2162 = vadd.f32 %v152, %v2161
  %v2163 = vpop.f32.mrf.mxu0
  %v2164 = vadd.f32 %v152, %v2163
  %2165 = vmatmul.bf16.gmra.mxu0 %v612
  %v2166 = vpop.f32.mrf.mxu0
  %v2167 = vadd.f32 %v152, %v2166
  %v2168 = vpop.f32.mrf.mxu0
  %v2169 = vadd.f32 %v152, %v2168
  %2170 = vmatmul.bf16.gmra.mxu0 %v615
  %v2171 = vpop.f32.mrf.mxu0
  %v2172 = vadd.f32 %v152, %v2171
  %v2173 = vpop.f32.mrf.mxu0
  %v2174 = vadd.f32 %v152, %v2173
  %2175 = vmatmul.bf16.gmra.mxu0 %v618
  %v2176 = vpop.f32.mrf.mxu0
  %v2177 = vadd.f32 %v152, %v2176
  %v2178 = vpop.f32.mrf.mxu0
  %v2179 = vadd.f32 %v152, %v2178
  %2180 = vmatmul.bf16.gmra.mxu0 %v621
  %v2181 = vpop.f32.mrf.mxu0
  %v2182 = vadd.f32 %v152, %v2181
  %v2183 = vpop.f32.mrf.mxu0
  %v2184 = vadd.f32 %v152, %v2183
  %2185 = vmatmul.bf16.gmra.mxu0 %v624
  %v2186 = vpop.f32.mrf.mxu0
  %v2187 = vadd.f32 %v152, %v2186
  %v2188 = vpop.f32.mrf.mxu0
  %v2189 = vadd.f32 %v152, %v2188
  %2190 = vmatmul.bf16.gmra.mxu0 %v627
  %v2191 = vpop.f32.mrf.mxu0
  %v2192 = vadd.f32 %v152, %v2191
  %v2193 = vpop.f32.mrf.mxu0
  %v2194 = vadd.f32 %v152, %v2193
  %2195 = vmatmul.bf16.gmra.mxu0 %v630
  %v2196 = vpop.f32.mrf.mxu0
  %v2197 = vadd.f32 %v152, %v2196
  %v2198 = vpop.f32.mrf.mxu0
  %v2199 = vadd.f32 %v152, %v2198
  %2200 = vmatmul.bf16.gmra.mxu0 %v633
  %v2201 = vpop.f32.mrf.mxu0
  %v2202 = vadd.f32 %v152, %v2201
  %v2203 = vpop.f32.mrf.mxu0
  %v2204 = vadd.f32 %v152, %v2203
  %2205 = vmatmul.bf16.gmra.mxu0 %v636
  %v2206 = vpop.f32.mrf.mxu0
  %v2207 = vadd.f32 %v152, %v2206
  %v2208 = vpop.f32.mrf.mxu0
  %v2209 = vadd.f32 %v152, %v2208
  %2210 = vmatmul.bf16.gmra.mxu0 %v639
  %v2211 = vpop.f32.mrf.mxu0
  %v2212 = vadd.f32 %v152, %v2211
  %v2213 = vpop.f32.mrf.mxu0
  %v2214 = vadd.f32 %v152, %v2213
  %2215 = vmatmul.bf16.gmra.mxu0 %v642
  %v2216 = vpop.f32.mrf.mxu0
  %v2217 = vadd.f32 %v152, %v2216
  %v2218 = vpop.f32.mrf.mxu0
  %v2219 = vadd.f32 %v152, %v2218
  %2220 = vmatmul.bf16.gmra.mxu0 %v645
  %v2221 = vpop.f32.mrf.mxu0
  %v2222 = vadd.f32 %v152, %v2221
  %v2223 = vpop.f32.mrf.mxu0
  %v2224 = vadd.f32 %v152, %v2223
  %2225 = vmatmul.bf16.gmra.mxu0 %v648
  %v2226 = vpop.f32.mrf.mxu0
  %v2227 = vadd.f32 %v152, %v2226
  %v2228 = vpop.f32.mrf.mxu0
  %v2229 = vadd.f32 %v152, %v2228
  %2230 = vmatmul.bf16.gmra.mxu0 %v651
  %v2231 = vpop.f32.mrf.mxu0
  %v2232 = vadd.f32 %v152, %v2231
  %v2233 = vpop.f32.mrf.mxu0
  %v2234 = vadd.f32 %v152, %v2233
  %2235 = vmatmul.bf16.gmra.mxu0 %v654
  %v2236 = vpop.f32.mrf.mxu0
  %v2237 = vadd.f32 %v152, %v2236
  %v2238 = vpop.f32.mrf.mxu0
  %v2239 = vadd.f32 %v152, %v2238
  %2240 = vmatmul.bf16.gmra.mxu0 %v657
  %v2241 = vpop.f32.mrf.mxu0
  %v2242 = vadd.f32 %v152, %v2241
  %v2243 = vpop.f32.mrf.mxu0
  %v2244 = vadd.f32 %v152, %v2243
  %2245 = vmatmul.bf16.gmra.mxu0 %v660
  %v2246 = vpop.f32.mrf.mxu0
  %v2247 = vadd.f32 %v152, %v2246
  %v2248 = vpop.f32.mrf.mxu0
  %v2249 = vadd.f32 %v152, %v2248
  %2250 = vmatmul.bf16.gmra.mxu0 %v663
  %v2251 = vpop.f32.mrf.mxu0
  %v2252 = vadd.f32 %v152, %v2251
  %v2253 = vpop.f32.mrf.mxu0
  %v2254 = vadd.f32 %v152, %v2253
  %2255 = vmatmul.bf16.gmra.mxu0 %v666
  %v2256 = vpop.f32.mrf.mxu0
  %v2257 = vadd.f32 %v152, %v2256
  %v2258 = vpop.f32.mrf.mxu0
  %v2259 = vadd.f32 %v152, %v2258
  %2260 = vmatmul.bf16.gmra.mxu0 %v669
  %v2261 = vpop.f32.mrf.mxu0
  %v2262 = vadd.f32 %v152, %v2261
  %v2263 = vpop.f32.mrf.mxu0
  %v2264 = vadd.f32 %v152, %v2263
  %2265 = vmatmul.bf16.gmra.mxu0 %v672
  %v2266 = vpop.f32.mrf.mxu0
  %v2267 = vadd.f32 %v152, %v2266
  %v2268 = vpop.f32.mrf.mxu0
  %2269 = vdwg.mxu0
  %2270 = vmatpush.bf16.msra.mxu0 0
  %2271 = vmatpush.bf16.msra.mxu0 0
  %2272 = vmatpush.bf16.msra.mxu0 0
  %2273 = vmatpush.bf16.msra.mxu0 0
  %2274 = vmatpush.bf16.msra.mxu0 %v535
  %2275 = vmatpush.bf16.msra.mxu0 %v520
  %2276 = vmatpush.bf16.msra.mxu0 %v505
  %2277 = vmatpush.bf16.msra.mxu0 %v490
  %2278 = vmatmul.bf16.gmra.mxu0 %v600
  %v2279 = vpop.f32.mrf.mxu0
  %v2280 = vadd.f32 %v153, %v2279
  %v2281 = vpop.f32.mrf.mxu0
  %v2282 = vadd.f32 %v153, %v2281
  %2283 = vmatmul.bf16.gmra.mxu0 %v603
  %v2284 = vpop.f32.mrf.mxu0
  %v2285 = vadd.f32 %v153, %v2284
  %v2286 = vpop.f32.mrf.mxu0
  %v2287 = vadd.f32 %v153, %v2286
  %2288 = vmatmul.bf16.gmra.mxu0 %v606
  %v2289 = vpop.f32.mrf.mxu0
  %v2290 = vadd.f32 %v153, %v2289
  %v2291 = vpop.f32.mrf.mxu0
  %v2292 = vadd.f32 %v153, %v2291
  %2293 = vmatmul.bf16.gmra.mxu0 %v609
  %v2294 = vpop.f32.mrf.mxu0
  %v2295 = vadd.f32 %v153, %v2294
  %v2296 = vpop.f32.mrf.mxu0
  %v2297 = vadd.f32 %v153, %v2296
  %2298 = vmatmul.bf16.gmra.mxu0 %v612
  %v2299 = vpop.f32.mrf.mxu0
  %v2300 = vadd.f32 %v153, %v2299
  %v2301 = vpop.f32.mrf.mxu0
  %v2302 = vadd.f32 %v153, %v2301
  %2303 = vmatmul.bf16.gmra.mxu0 %v615
  %v2304 = vpop.f32.mrf.mxu0
  %v2305 = vadd.f32 %v153, %v2304
  %v2306 = vpop.f32.mrf.mxu0
  %v2307 = vadd.f32 %v153, %v2306
  %2308 = vmatmul.bf16.gmra.mxu0 %v618
  %v2309 = vpop.f32.mrf.mxu0
  %v2310 = vadd.f32 %v153, %v2309
  %v2311 = vpop.f32.mrf.mxu0
  %v2312 = vadd.f32 %v153, %v2311
  %2313 = vmatmul.bf16.gmra.mxu0 %v621
  %v2314 = vpop.f32.mrf.mxu0
  %v2315 = vadd.f32 %v153, %v2314
  %v2316 = vpop.f32.mrf.mxu0
  %v2317 = vadd.f32 %v153, %v2316
  %2318 = vmatmul.bf16.gmra.mxu0 %v624
  %v2319 = vpop.f32.mrf.mxu0
  %v2320 = vadd.f32 %v153, %v2319
  %v2321 = vpop.f32.mrf.mxu0
  %v2322 = vadd.f32 %v153, %v2321
  %2323 = vmatmul.bf16.gmra.mxu0 %v627
  %v2324 = vpop.f32.mrf.mxu0
  %v2325 = vadd.f32 %v153, %v2324
  %v2326 = vpop.f32.mrf.mxu0
  %v2327 = vadd.f32 %v153, %v2326
  %2328 = vmatmul.bf16.gmra.mxu0 %v630
  %v2329 = vpop.f32.mrf.mxu0
  %v2330 = vadd.f32 %v153, %v2329
  %v2331 = vpop.f32.mrf.mxu0
  %v2332 = vadd.f32 %v153, %v2331
  %2333 = vmatmul.bf16.gmra.mxu0 %v633
  %v2334 = vpop.f32.mrf.mxu0
  %v2335 = vadd.f32 %v153, %v2334
  %v2336 = vpop.f32.mrf.mxu0
  %v2337 = vadd.f32 %v153, %v2336
  %2338 = vmatmul.bf16.gmra.mxu0 %v636
  %v2339 = vpop.f32.mrf.mxu0
  %v2340 = vadd.f32 %v153, %v2339
  %v2341 = vpop.f32.mrf.mxu0
  %v2342 = vadd.f32 %v153, %v2341
  %2343 = vmatmul.bf16.gmra.mxu0 %v639
  %v2344 = vpop.f32.mrf.mxu0
  %v2345 = vadd.f32 %v153, %v2344
  %v2346 = vpop.f32.mrf.mxu0
  %v2347 = vadd.f32 %v153, %v2346
  %2348 = vmatmul.bf16.gmra.mxu0 %v642
  %v2349 = vpop.f32.mrf.mxu0
  %v2350 = vadd.f32 %v153, %v2349
  %v2351 = vpop.f32.mrf.mxu0
  %v2352 = vadd.f32 %v153, %v2351
  %2353 = vmatmul.bf16.gmra.mxu0 %v645
  %v2354 = vpop.f32.mrf.mxu0
  %v2355 = vadd.f32 %v153, %v2354
  %v2356 = vpop.f32.mrf.mxu0
  %v2357 = vadd.f32 %v153, %v2356
  %2358 = vmatmul.bf16.gmra.mxu0 %v648
  %v2359 = vpop.f32.mrf.mxu0
  %v2360 = vadd.f32 %v153, %v2359
  %v2361 = vpop.f32.mrf.mxu0
  %v2362 = vadd.f32 %v153, %v2361
  %2363 = vmatmul.bf16.gmra.mxu0 %v651
  %v2364 = vpop.f32.mrf.mxu0
  %v2365 = vadd.f32 %v153, %v2364
  %v2366 = vpop.f32.mrf.mxu0
  %v2367 = vadd.f32 %v153, %v2366
  %2368 = vmatmul.bf16.gmra.mxu0 %v654
  %v2369 = vpop.f32.mrf.mxu0
  %v2370 = vadd.f32 %v153, %v2369
  %v2371 = vpop.f32.mrf.mxu0
  %v2372 = vadd.f32 %v153, %v2371
  %2373 = vmatmul.bf16.gmra.mxu0 %v657
  %v2374 = vpop.f32.mrf.mxu0
  %v2375 = vadd.f32 %v153, %v2374
  %v2376 = vpop.f32.mrf.mxu0
  %v2377 = vadd.f32 %v153, %v2376
  %2378 = vmatmul.bf16.gmra.mxu0 %v660
  %v2379 = vpop.f32.mrf.mxu0
  %v2380 = vadd.f32 %v153, %v2379
  %v2381 = vpop.f32.mrf.mxu0
  %v2382 = vadd.f32 %v153, %v2381
  %2383 = vmatmul.bf16.gmra.mxu0 %v663
  %v2384 = vpop.f32.mrf.mxu0
  %v2385 = vadd.f32 %v153, %v2384
  %v2386 = vpop.f32.mrf.mxu0
  %v2387 = vadd.f32 %v153, %v2386
  %2388 = vmatmul.bf16.gmra.mxu0 %v666
  %v2389 = vpop.f32.mrf.mxu0
  %v2390 = vadd.f32 %v153, %v2389
  %v2391 = vpop.f32.mrf.mxu0
  %v2392 = vadd.f32 %v153, %v2391
  %2393 = vmatmul.bf16.gmra.mxu0 %v669
  %v2394 = vpop.f32.mrf.mxu0
  %v2395 = vadd.f32 %v153, %v2394
  %v2396 = vpop.f32.mrf.mxu0
  %v2397 = vadd.f32 %v153, %v2396
  %2398 = vmatmul.bf16.gmra.mxu0 %v672
  %v2399 = vpop.f32.mrf.mxu0
  %v2400 = vadd.f32 %v153, %v2399
  %v2401 = vpop.f32.mrf.mxu0
  %2402 = vdwg.mxu0
  %2403 = vmatpush.bf16.msra.mxu0 0
  %2404 = vmatpush.bf16.msra.mxu0 0
  %2405 = vmatpush.bf16.msra.mxu0 0
  %2406 = vmatpush.bf16.msra.mxu0 0
  %2407 = vmatpush.bf16.msra.mxu0 %v536
  %2408 = vmatpush.bf16.msra.mxu0 %v521
  %2409 = vmatpush.bf16.msra.mxu0 %v506
  %2410 = vmatpush.bf16.msra.mxu0 %v491
  %2411 = vmatmul.bf16.gmra.mxu0 %v600
  %v2412 = vpop.f32.mrf.mxu0
  %v2413 = vadd.f32 %v154, %v2412
  %v2414 = vpop.f32.mrf.mxu0
  %v2415 = vadd.f32 %v154, %v2414
  %2416 = vmatmul.bf16.gmra.mxu0 %v603
  %v2417 = vpop.f32.mrf.mxu0
  %v2418 = vadd.f32 %v154, %v2417
  %v2419 = vpop.f32.mrf.mxu0
  %v2420 = vadd.f32 %v154, %v2419
  %2421 = vmatmul.bf16.gmra.mxu0 %v606
  %v2422 = vpop.f32.mrf.mxu0
  %v2423 = vadd.f32 %v154, %v2422
  %v2424 = vpop.f32.mrf.mxu0
  %v2425 = vadd.f32 %v154, %v2424
  %2426 = vmatmul.bf16.gmra.mxu0 %v609
  %v2427 = vpop.f32.mrf.mxu0
  %v2428 = vadd.f32 %v154, %v2427
  %v2429 = vpop.f32.mrf.mxu0
  %v2430 = vadd.f32 %v154, %v2429
  %2431 = vmatmul.bf16.gmra.mxu0 %v612
  %v2432 = vpop.f32.mrf.mxu0
  %v2433 = vadd.f32 %v154, %v2432
  %v2434 = vpop.f32.mrf.mxu0
  %v2435 = vadd.f32 %v154, %v2434
  %2436 = vmatmul.bf16.gmra.mxu0 %v615
  %v2437 = vpop.f32.mrf.mxu0
  %v2438 = vadd.f32 %v154, %v2437
  %v2439 = vpop.f32.mrf.mxu0
  %v2440 = vadd.f32 %v154, %v2439
  %2441 = vmatmul.bf16.gmra.mxu0 %v618
  %v2442 = vpop.f32.mrf.mxu0
  %v2443 = vadd.f32 %v154, %v2442
  %v2444 = vpop.f32.mrf.mxu0
  %v2445 = vadd.f32 %v154, %v2444
  %2446 = vmatmul.bf16.gmra.mxu0 %v621
  %v2447 = vpop.f32.mrf.mxu0
  %v2448 = vadd.f32 %v154, %v2447
  %v2449 = vpop.f32.mrf.mxu0
  %v2450 = vadd.f32 %v154, %v2449
  %2451 = vmatmul.bf16.gmra.mxu0 %v624
  %v2452 = vpop.f32.mrf.mxu0
  %v2453 = vadd.f32 %v154, %v2452
  %v2454 = vpop.f32.mrf.mxu0
  %v2455 = vadd.f32 %v154, %v2454
  %2456 = vmatmul.bf16.gmra.mxu0 %v627
  %v2457 = vpop.f32.mrf.mxu0
  %v2458 = vadd.f32 %v154, %v2457
  %v2459 = vpop.f32.mrf.mxu0
  %v2460 = vadd.f32 %v154, %v2459
  %2461 = vmatmul.bf16.gmra.mxu0 %v630
  %v2462 = vpop.f32.mrf.mxu0
  %v2463 = vadd.f32 %v154, %v2462
  %v2464 = vpop.f32.mrf.mxu0
  %v2465 = vadd.f32 %v154, %v2464
  %2466 = vmatmul.bf16.gmra.mxu0 %v633
  %v2467 = vpop.f32.mrf.mxu0
  %v2468 = vadd.f32 %v154, %v2467
  %v2469 = vpop.f32.mrf.mxu0
  %v2470 = vadd.f32 %v154, %v2469
  %2471 = vmatmul.bf16.gmra.mxu0 %v636
  %v2472 = vpop.f32.mrf.mxu0
  %v2473 = vadd.f32 %v154, %v2472
  %v2474 = vpop.f32.mrf.mxu0
  %v2475 = vadd.f32 %v154, %v2474
  %2476 = vmatmul.bf16.gmra.mxu0 %v639
  %v2477 = vpop.f32.mrf.mxu0
  %v2478 = vadd.f32 %v154, %v2477
  %v2479 = vpop.f32.mrf.mxu0
  %v2480 = vadd.f32 %v154, %v2479
  %2481 = vmatmul.bf16.gmra.mxu0 %v642
  %v2482 = vpop.f32.mrf.mxu0
  %v2483 = vadd.f32 %v154, %v2482
  %v2484 = vpop.f32.mrf.mxu0
  %v2485 = vadd.f32 %v154, %v2484
  %2486 = vmatmul.bf16.gmra.mxu0 %v645
  %v2487 = vpop.f32.mrf.mxu0
  %v2488 = vadd.f32 %v154, %v2487
  %v2489 = vpop.f32.mrf.mxu0
  %v2490 = vadd.f32 %v154, %v2489
  %2491 = vmatmul.bf16.gmra.mxu0 %v648
  %v2492 = vpop.f32.mrf.mxu0
  %v2493 = vadd.f32 %v154, %v2492
  %v2494 = vpop.f32.mrf.mxu0
  %v2495 = vadd.f32 %v154, %v2494
  %2496 = vmatmul.bf16.gmra.mxu0 %v651
  %v2497 = vpop.f32.mrf.mxu0
  %v2498 = vadd.f32 %v154, %v2497
  %v2499 = vpop.f32.mrf.mxu0
  %v2500 = vadd.f32 %v154, %v2499
  %2501 = vmatmul.bf16.gmra.mxu0 %v654
  %v2502 = vpop.f32.mrf.mxu0
  %v2503 = vadd.f32 %v154, %v2502
  %v2504 = vpop.f32.mrf.mxu0
  %v2505 = vadd.f32 %v154, %v2504
  %2506 = vmatmul.bf16.gmra.mxu0 %v657
  %v2507 = vpop.f32.mrf.mxu0
  %v2508 = vadd.f32 %v154, %v2507
  %v2509 = vpop.f32.mrf.mxu0
  %v2510 = vadd.f32 %v154, %v2509
  %2511 = vmatmul.bf16.gmra.mxu0 %v660
  %v2512 = vpop.f32.mrf.mxu0
  %v2513 = vadd.f32 %v154, %v2512
  %v2514 = vpop.f32.mrf.mxu0
  %v2515 = vadd.f32 %v154, %v2514
  %2516 = vmatmul.bf16.gmra.mxu0 %v663
  %v2517 = vpop.f32.mrf.mxu0
  %v2518 = vadd.f32 %v154, %v2517
  %v2519 = vpop.f32.mrf.mxu0
  %v2520 = vadd.f32 %v154, %v2519
  %2521 = vmatmul.bf16.gmra.mxu0 %v666
  %v2522 = vpop.f32.mrf.mxu0
  %v2523 = vadd.f32 %v154, %v2522
  %v2524 = vpop.f32.mrf.mxu0
  %v2525 = vadd.f32 %v154, %v2524
  %2526 = vmatmul.bf16.gmra.mxu0 %v669
  %v2527 = vpop.f32.mrf.mxu0
  %v2528 = vadd.f32 %v154, %v2527
  %v2529 = vpop.f32.mrf.mxu0
  %v2530 = vadd.f32 %v154, %v2529
  %2531 = vmatmul.bf16.gmra.mxu0 %v672
  %v2532 = vpop.f32.mrf.mxu0
  %v2533 = vadd.f32 %v154, %v2532
  %v2534 = vpop.f32.mrf.mxu0
  %2535 = vdwg.mxu0
  %2536 = vmatpush.bf16.msra.mxu0 0
  %2537 = vmatpush.bf16.msra.mxu0 0
  %2538 = vmatpush.bf16.msra.mxu0 0
  %2539 = vmatpush.bf16.msra.mxu0 0
  %2540 = vmatpush.bf16.msra.mxu0 %v537
  %2541 = vmatpush.bf16.msra.mxu0 %v522
  %2542 = vmatpush.bf16.msra.mxu0 %v507
  %2543 = vmatpush.bf16.msra.mxu0 %v492
  %2544 = vmatmul.bf16.gmra.mxu0 %v600
  %v2545 = vpop.f32.mrf.mxu0
  %v2546 = vadd.f32 %v155, %v2545
  %v2547 = vpop.f32.mrf.mxu0
  %v2548 = vadd.f32 %v155, %v2547
  %2549 = vmatmul.bf16.gmra.mxu0 %v603
  %v2550 = vpop.f32.mrf.mxu0
  %v2551 = vadd.f32 %v155, %v2550
  %v2552 = vpop.f32.mrf.mxu0
  %v2553 = vadd.f32 %v155, %v2552
  %2554 = vmatmul.bf16.gmra.mxu0 %v606
  %v2555 = vpop.f32.mrf.mxu0
  %v2556 = vadd.f32 %v155, %v2555
  %v2557 = vpop.f32.mrf.mxu0
  %v2558 = vadd.f32 %v155, %v2557
  %2559 = vmatmul.bf16.gmra.mxu0 %v609
  %v2560 = vpop.f32.mrf.mxu0
  %v2561 = vadd.f32 %v155, %v2560
  %v2562 = vpop.f32.mrf.mxu0
  %v2563 = vadd.f32 %v155, %v2562
  %2564 = vmatmul.bf16.gmra.mxu0 %v612
  %v2565 = vpop.f32.mrf.mxu0
  %v2566 = vadd.f32 %v155, %v2565
  %v2567 = vpop.f32.mrf.mxu0
  %v2568 = vadd.f32 %v155, %v2567
  %2569 = vmatmul.bf16.gmra.mxu0 %v615
  %v2570 = vpop.f32.mrf.mxu0
  %v2571 = vadd.f32 %v155, %v2570
  %v2572 = vpop.f32.mrf.mxu0
  %v2573 = vadd.f32 %v155, %v2572
  %2574 = vmatmul.bf16.gmra.mxu0 %v618
  %v2575 = vpop.f32.mrf.mxu0
  %v2576 = vadd.f32 %v155, %v2575
  %v2577 = vpop.f32.mrf.mxu0
  %v2578 = vadd.f32 %v155, %v2577
  %2579 = vmatmul.bf16.gmra.mxu0 %v621
  %v2580 = vpop.f32.mrf.mxu0
  %v2581 = vadd.f32 %v155, %v2580
  %v2582 = vpop.f32.mrf.mxu0
  %v2583 = vadd.f32 %v155, %v2582
  %2584 = vmatmul.bf16.gmra.mxu0 %v624
  %v2585 = vpop.f32.mrf.mxu0
  %v2586 = vadd.f32 %v155, %v2585
  %v2587 = vpop.f32.mrf.mxu0
  %v2588 = vadd.f32 %v155, %v2587
  %2589 = vmatmul.bf16.gmra.mxu0 %v627
  %v2590 = vpop.f32.mrf.mxu0
  %v2591 = vadd.f32 %v155, %v2590
  %v2592 = vpop.f32.mrf.mxu0
  %v2593 = vadd.f32 %v155, %v2592
  %2594 = vmatmul.bf16.gmra.mxu0 %v630
  %v2595 = vpop.f32.mrf.mxu0
  %v2596 = vadd.f32 %v155, %v2595
  %v2597 = vpop.f32.mrf.mxu0
  %v2598 = vadd.f32 %v155, %v2597
  %2599 = vmatmul.bf16.gmra.mxu0 %v633
  %v2600 = vpop.f32.mrf.mxu0
  %v2601 = vadd.f32 %v155, %v2600
  %v2602 = vpop.f32.mrf.mxu0
  %v2603 = vadd.f32 %v155, %v2602
  %2604 = vmatmul.bf16.gmra.mxu0 %v636
  %v2605 = vpop.f32.mrf.mxu0
  %v2606 = vadd.f32 %v155, %v2605
  %v2607 = vpop.f32.mrf.mxu0
  %v2608 = vadd.f32 %v155, %v2607
  %2609 = vmatmul.bf16.gmra.mxu0 %v639
  %v2610 = vpop.f32.mrf.mxu0
  %v2611 = vadd.f32 %v155, %v2610
  %v2612 = vpop.f32.mrf.mxu0
  %v2613 = vadd.f32 %v155, %v2612
  %2614 = vmatmul.bf16.gmra.mxu0 %v642
  %v2615 = vpop.f32.mrf.mxu0
  %v2616 = vadd.f32 %v155, %v2615
  %v2617 = vpop.f32.mrf.mxu0
  %v2618 = vadd.f32 %v155, %v2617
  %2619 = vmatmul.bf16.gmra.mxu0 %v645
  %v2620 = vpop.f32.mrf.mxu0
  %v2621 = vadd.f32 %v155, %v2620
  %v2622 = vpop.f32.mrf.mxu0
  %v2623 = vadd.f32 %v155, %v2622
  %2624 = vmatmul.bf16.gmra.mxu0 %v648
  %v2625 = vpop.f32.mrf.mxu0
  %v2626 = vadd.f32 %v155, %v2625
  %v2627 = vpop.f32.mrf.mxu0
  %v2628 = vadd.f32 %v155, %v2627
  %2629 = vmatmul.bf16.gmra.mxu0 %v651
  %v2630 = vpop.f32.mrf.mxu0
  %v2631 = vadd.f32 %v155, %v2630
  %v2632 = vpop.f32.mrf.mxu0
  %v2633 = vadd.f32 %v155, %v2632
  %2634 = vmatmul.bf16.gmra.mxu0 %v654
  %v2635 = vpop.f32.mrf.mxu0
  %v2636 = vadd.f32 %v155, %v2635
  %v2637 = vpop.f32.mrf.mxu0
  %v2638 = vadd.f32 %v155, %v2637
  %2639 = vmatmul.bf16.gmra.mxu0 %v657
  %v2640 = vpop.f32.mrf.mxu0
  %v2641 = vadd.f32 %v155, %v2640
  %v2642 = vpop.f32.mrf.mxu0
  %v2643 = vadd.f32 %v155, %v2642
  %2644 = vmatmul.bf16.gmra.mxu0 %v660
  %v2645 = vpop.f32.mrf.mxu0
  %v2646 = vadd.f32 %v155, %v2645
  %v2647 = vpop.f32.mrf.mxu0
  %v2648 = vadd.f32 %v155, %v2647
  %2649 = vmatmul.bf16.gmra.mxu0 %v663
  %v2650 = vpop.f32.mrf.mxu0
  %v2651 = vadd.f32 %v155, %v2650
  %v2652 = vpop.f32.mrf.mxu0
  %v2653 = vadd.f32 %v155, %v2652
  %2654 = vmatmul.bf16.gmra.mxu0 %v666
  %v2655 = vpop.f32.mrf.mxu0
  %v2656 = vadd.f32 %v155, %v2655
  %v2657 = vpop.f32.mrf.mxu0
  %v2658 = vadd.f32 %v155, %v2657
  %2659 = vmatmul.bf16.gmra.mxu0 %v669
  %v2660 = vpop.f32.mrf.mxu0
  %v2661 = vadd.f32 %v155, %v2660
  %v2662 = vpop.f32.mrf.mxu0
  %v2663 = vadd.f32 %v155, %v2662
  %2664 = vmatmul.bf16.gmra.mxu0 %v672
  %v2665 = vpop.f32.mrf.mxu0
  %v2666 = vadd.f32 %v155, %v2665
  %v2667 = vpop.f32.mrf.mxu0
  %2668 = vdwg.mxu0
  %v2669 = vmax.f32 %v684, 0.0
  %v2670 = vmax.f32 %v817, 0.0
  %v2671 = vmax.f32 %v950, 0.0
  %v2672 = vmax.f32 %v1083, 0.0
  %v2673 = vmax.f32 %v1216, 0.0
  %v2674 = vmax.f32 %v1349, 0.0
  %v2675 = vmax.f32 %v1482, 0.0
  %v2676 = vmax.f32 %v1615, 0.0
  %v2677 = vmax.f32 %v1748, 0.0
  %v2678 = vmax.f32 %v1881, 0.0
  %v2679 = vmax.f32 %v2014, 0.0
  %v2680 = vmax.f32 %v2147, 0.0
  %v2681 = vmax.f32 %v2280, 0.0
  %v2682 = vmax.f32 %v2413, 0.0
  %v2683 = vmax.f32 %v2546, 0.0
  %v2684 = vmax.f32 %v686, 0.0
  %v2685 = vmax.f32 %v819, 0.0
  %v2686 = vmax.f32 %v952, 0.0
  %v2687 = vmax.f32 %v1085, 0.0
  %v2688 = vmax.f32 %v1218, 0.0
  %v2689 = vmax.f32 %v1351, 0.0
  %v2690 = vmax.f32 %v1484, 0.0
  %v2691 = vmax.f32 %v1617, 0.0
  %v2692 = vmax.f32 %v1750, 0.0
  %v2693 = vmax.f32 %v1883, 0.0
  %v2694 = vmax.f32 %v2016, 0.0
  %v2695 = vmax.f32 %v2149, 0.0
  %v2696 = vmax.f32 %v2282, 0.0
  %v2697 = vmax.f32 %v2415, 0.0
  %v2698 = vmax.f32 %v2548, 0.0
  %v2699 = vmax.f32 %v689, 0.0
  %v2700 = vmax.f32 %v822, 0.0
  %v2701 = vmax.f32 %v955, 0.0
  %v2702 = vmax.f32 %v1088, 0.0
  %v2703 = vmax.f32 %v1221, 0.0
  %v2704 = vmax.f32 %v1354, 0.0
  %v2705 = vmax.f32 %v1487, 0.0
  %v2706 = vmax.f32 %v1620, 0.0
  %v2707 = vmax.f32 %v1753, 0.0
  %v2708 = vmax.f32 %v1886, 0.0
  %v2709 = vmax.f32 %v2019, 0.0
  %v2710 = vmax.f32 %v2152, 0.0
  %v2711 = vmax.f32 %v2285, 0.0
  %v2712 = vmax.f32 %v2418, 0.0
  %v2713 = vmax.f32 %v2551, 0.0
  %v2714 = vmax.f32 %v691, 0.0
  %v2715 = vmax.f32 %v824, 0.0
  %v2716 = vmax.f32 %v957, 0.0
  %v2717 = vmax.f32 %v1090, 0.0
  %v2718 = vmax.f32 %v1223, 0.0
  %v2719 = vmax.f32 %v1356, 0.0
  %v2720 = vmax.f32 %v1489, 0.0
  %v2721 = vmax.f32 %v1622, 0.0
  %v2722 = vmax.f32 %v1755, 0.0
  %v2723 = vmax.f32 %v1888, 0.0
  %v2724 = vmax.f32 %v2021, 0.0
  %v2725 = vmax.f32 %v2154, 0.0
  %v2726 = vmax.f32 %v2287, 0.0
  %v2727 = vmax.f32 %v2420, 0.0
  %v2728 = vmax.f32 %v2553, 0.0
  %v2729 = vmax.f32 %v694, 0.0
  %v2730 = vmax.f32 %v827, 0.0
  %v2731 = vmax.f32 %v960, 0.0
  %v2732 = vmax.f32 %v1093, 0.0
  %v2733 = vmax.f32 %v1226, 0.0
  %v2734 = vmax.f32 %v1359, 0.0
  %v2735 = vmax.f32 %v1492, 0.0
  %v2736 = vmax.f32 %v1625, 0.0
  %v2737 = vmax.f32 %v1758, 0.0
  %v2738 = vmax.f32 %v1891, 0.0
  %v2739 = vmax.f32 %v2024, 0.0
  %v2740 = vmax.f32 %v2157, 0.0
  %v2741 = vmax.f32 %v2290, 0.0
  %v2742 = vmax.f32 %v2423, 0.0
  %v2743 = vmax.f32 %v2556, 0.0
  %v2744 = vmax.f32 %v696, 0.0
  %v2745 = vmax.f32 %v829, 0.0
  %v2746 = vmax.f32 %v962, 0.0
  %v2747 = vmax.f32 %v1095, 0.0
  %v2748 = vmax.f32 %v1228, 0.0
  %v2749 = vmax.f32 %v1361, 0.0
  %v2750 = vmax.f32 %v1494, 0.0
  %v2751 = vmax.f32 %v1627, 0.0
  %v2752 = vmax.f32 %v1760, 0.0
  %v2753 = vmax.f32 %v1893, 0.0
  %v2754 = vmax.f32 %v2026, 0.0
  %v2755 = vmax.f32 %v2159, 0.0
  %v2756 = vmax.f32 %v2292, 0.0
  %v2757 = vmax.f32 %v2425, 0.0
  %v2758 = vmax.f32 %v2558, 0.0
  %v2759 = vmax.f32 %v699, 0.0
  %v2760 = vmax.f32 %v832, 0.0
  %v2761 = vmax.f32 %v965, 0.0
  %v2762 = vmax.f32 %v1098, 0.0
  %v2763 = vmax.f32 %v1231, 0.0
  %v2764 = vmax.f32 %v1364, 0.0
  %v2765 = vmax.f32 %v1497, 0.0
  %v2766 = vmax.f32 %v1630, 0.0
  %v2767 = vmax.f32 %v1763, 0.0
  %v2768 = vmax.f32 %v1896, 0.0
  %v2769 = vmax.f32 %v2029, 0.0
  %v2770 = vmax.f32 %v2162, 0.0
  %v2771 = vmax.f32 %v2295, 0.0
  %v2772 = vmax.f32 %v2428, 0.0
  %v2773 = vmax.f32 %v2561, 0.0
  %v2774 = vmax.f32 %v701, 0.0
  %v2775 = vmax.f32 %v834, 0.0
  %v2776 = vmax.f32 %v967, 0.0
  %v2777 = vmax.f32 %v1100, 0.0
  %v2778 = vmax.f32 %v1233, 0.0
  %v2779 = vmax.f32 %v1366, 0.0
  %v2780 = vmax.f32 %v1499, 0.0
  %v2781 = vmax.f32 %v1632, 0.0
  %v2782 = vmax.f32 %v1765, 0.0
  %v2783 = vmax.f32 %v1898, 0.0
  %v2784 = vmax.f32 %v2031, 0.0
  %v2785 = vmax.f32 %v2164, 0.0
  %v2786 = vmax.f32 %v2297, 0.0
  %v2787 = vmax.f32 %v2430, 0.0
  %v2788 = vmax.f32 %v2563, 0.0
  %v2789 = vmax.f32 %v704, 0.0
  %v2790 = vmax.f32 %v837, 0.0
  %v2791 = vmax.f32 %v970, 0.0
  %v2792 = vmax.f32 %v1103, 0.0
  %v2793 = vmax.f32 %v1236, 0.0
  %v2794 = vmax.f32 %v1369, 0.0
  %v2795 = vmax.f32 %v1502, 0.0
  %v2796 = vmax.f32 %v1635, 0.0
  %v2797 = vmax.f32 %v1768, 0.0
  %v2798 = vmax.f32 %v1901, 0.0
  %v2799 = vmax.f32 %v2034, 0.0
  %v2800 = vmax.f32 %v2167, 0.0
  %v2801 = vmax.f32 %v2300, 0.0
  %v2802 = vmax.f32 %v2433, 0.0
  %v2803 = vmax.f32 %v2566, 0.0
  %v2804 = vmax.f32 %v706, 0.0
  %v2805 = vmax.f32 %v839, 0.0
  %v2806 = vmax.f32 %v972, 0.0
  %v2807 = vmax.f32 %v1105, 0.0
  %v2808 = vmax.f32 %v1238, 0.0
  %v2809 = vmax.f32 %v1371, 0.0
  %v2810 = vmax.f32 %v1504, 0.0
  %v2811 = vmax.f32 %v1637, 0.0
  %v2812 = vmax.f32 %v1770, 0.0
  %v2813 = vmax.f32 %v1903, 0.0
  %v2814 = vmax.f32 %v2036, 0.0
  %v2815 = vmax.f32 %v2169, 0.0
  %v2816 = vmax.f32 %v2302, 0.0
  %v2817 = vmax.f32 %v2435, 0.0
  %v2818 = vmax.f32 %v2568, 0.0
  %v2819 = vmax.f32 %v709, 0.0
  %v2820 = vmax.f32 %v842, 0.0
  %v2821 = vmax.f32 %v975, 0.0
  %v2822 = vmax.f32 %v1108, 0.0
  %v2823 = vmax.f32 %v1241, 0.0
  %v2824 = vmax.f32 %v1374, 0.0
  %v2825 = vmax.f32 %v1507, 0.0
  %v2826 = vmax.f32 %v1640, 0.0
  %v2827 = vmax.f32 %v1773, 0.0
  %v2828 = vmax.f32 %v1906, 0.0
  %v2829 = vmax.f32 %v2039, 0.0
  %v2830 = vmax.f32 %v2172, 0.0
  %v2831 = vmax.f32 %v2305, 0.0
  %v2832 = vmax.f32 %v2438, 0.0
  %v2833 = vmax.f32 %v2571, 0.0
  %v2834 = vmax.f32 %v711, 0.0
  %v2835 = vmax.f32 %v844, 0.0
  %v2836 = vmax.f32 %v977, 0.0
  %v2837 = vmax.f32 %v1110, 0.0
  %v2838 = vmax.f32 %v1243, 0.0
  %v2839 = vmax.f32 %v1376, 0.0
  %v2840 = vmax.f32 %v1509, 0.0
  %v2841 = vmax.f32 %v1642, 0.0
  %v2842 = vmax.f32 %v1775, 0.0
  %v2843 = vmax.f32 %v1908, 0.0
  %v2844 = vmax.f32 %v2041, 0.0
  %v2845 = vmax.f32 %v2174, 0.0
  %v2846 = vmax.f32 %v2307, 0.0
  %v2847 = vmax.f32 %v2440, 0.0
  %v2848 = vmax.f32 %v2573, 0.0
  %v2849 = vmax.f32 %v714, 0.0
  %v2850 = vmax.f32 %v847, 0.0
  %v2851 = vmax.f32 %v980, 0.0
  %v2852 = vmax.f32 %v1113, 0.0
  %v2853 = vmax.f32 %v1246, 0.0
  %v2854 = vmax.f32 %v1379, 0.0
  %v2855 = vmax.f32 %v1512, 0.0
  %v2856 = vmax.f32 %v1645, 0.0
  %v2857 = vmax.f32 %v1778, 0.0
  %v2858 = vmax.f32 %v1911, 0.0
  %v2859 = vmax.f32 %v2044, 0.0
  %v2860 = vmax.f32 %v2177, 0.0
  %v2861 = vmax.f32 %v2310, 0.0
  %v2862 = vmax.f32 %v2443, 0.0
  %v2863 = vmax.f32 %v2576, 0.0
  %v2864 = vmax.f32 %v716, 0.0
  %v2865 = vmax.f32 %v849, 0.0
  %v2866 = vmax.f32 %v982, 0.0
  %v2867 = vmax.f32 %v1115, 0.0
  %v2868 = vmax.f32 %v1248, 0.0
  %v2869 = vmax.f32 %v1381, 0.0
  %v2870 = vmax.f32 %v1514, 0.0
  %v2871 = vmax.f32 %v1647, 0.0
  %v2872 = vmax.f32 %v1780, 0.0
  %v2873 = vmax.f32 %v1913, 0.0
  %v2874 = vmax.f32 %v2046, 0.0
  %v2875 = vmax.f32 %v2179, 0.0
  %v2876 = vmax.f32 %v2312, 0.0
  %v2877 = vmax.f32 %v2445, 0.0
  %v2878 = vmax.f32 %v2578, 0.0
  %v2879 = vmax.f32 %v719, 0.0
  %v2880 = vmax.f32 %v852, 0.0
  %v2881 = vmax.f32 %v985, 0.0
  %v2882 = vmax.f32 %v1118, 0.0
  %v2883 = vmax.f32 %v1251, 0.0
  %v2884 = vmax.f32 %v1384, 0.0
  %v2885 = vmax.f32 %v1517, 0.0
  %v2886 = vmax.f32 %v1650, 0.0
  %v2887 = vmax.f32 %v1783, 0.0
  %v2888 = vmax.f32 %v1916, 0.0
  %v2889 = vmax.f32 %v2049, 0.0
  %v2890 = vmax.f32 %v2182, 0.0
  %v2891 = vmax.f32 %v2315, 0.0
  %v2892 = vmax.f32 %v2448, 0.0
  %v2893 = vmax.f32 %v2581, 0.0
  %v2894 = vmax.f32 %v721, 0.0
  %v2895 = vmax.f32 %v854, 0.0
  %v2896 = vmax.f32 %v987, 0.0
  %v2897 = vmax.f32 %v1120, 0.0
  %v2898 = vmax.f32 %v1253, 0.0
  %v2899 = vmax.f32 %v1386, 0.0
  %v2900 = vmax.f32 %v1519, 0.0
  %v2901 = vmax.f32 %v1652, 0.0
  %v2902 = vmax.f32 %v1785, 0.0
  %v2903 = vmax.f32 %v1918, 0.0
  %v2904 = vmax.f32 %v2051, 0.0
  %v2905 = vmax.f32 %v2184, 0.0
  %v2906 = vmax.f32 %v2317, 0.0
  %v2907 = vmax.f32 %v2450, 0.0
  %v2908 = vmax.f32 %v2583, 0.0
  %v2909 = vmax.f32 %v724, 0.0
  %v2910 = vmax.f32 %v857, 0.0
  %v2911 = vmax.f32 %v990, 0.0
  %v2912 = vmax.f32 %v1123, 0.0
  %v2913 = vmax.f32 %v1256, 0.0
  %v2914 = vmax.f32 %v1389, 0.0
  %v2915 = vmax.f32 %v1522, 0.0
  %v2916 = vmax.f32 %v1655, 0.0
  %v2917 = vmax.f32 %v1788, 0.0
  %v2918 = vmax.f32 %v1921, 0.0
  %v2919 = vmax.f32 %v2054, 0.0
  %v2920 = vmax.f32 %v2187, 0.0
  %v2921 = vmax.f32 %v2320, 0.0
  %v2922 = vmax.f32 %v2453, 0.0
  %v2923 = vmax.f32 %v2586, 0.0
  %v2924 = vmax.f32 %v726, 0.0
  %v2925 = vmax.f32 %v859, 0.0
  %v2926 = vmax.f32 %v992, 0.0
  %v2927 = vmax.f32 %v1125, 0.0
  %v2928 = vmax.f32 %v1258, 0.0
  %v2929 = vmax.f32 %v1391, 0.0
  %v2930 = vmax.f32 %v1524, 0.0
  %v2931 = vmax.f32 %v1657, 0.0
  %v2932 = vmax.f32 %v1790, 0.0
  %v2933 = vmax.f32 %v1923, 0.0
  %v2934 = vmax.f32 %v2056, 0.0
  %v2935 = vmax.f32 %v2189, 0.0
  %v2936 = vmax.f32 %v2322, 0.0
  %v2937 = vmax.f32 %v2455, 0.0
  %v2938 = vmax.f32 %v2588, 0.0
  %v2939 = vmax.f32 %v729, 0.0
  %v2940 = vmax.f32 %v862, 0.0
  %v2941 = vmax.f32 %v995, 0.0
  %v2942 = vmax.f32 %v1128, 0.0
  %v2943 = vmax.f32 %v1261, 0.0
  %v2944 = vmax.f32 %v1394, 0.0
  %v2945 = vmax.f32 %v1527, 0.0
  %v2946 = vmax.f32 %v1660, 0.0
  %v2947 = vmax.f32 %v1793, 0.0
  %v2948 = vmax.f32 %v1926, 0.0
  %v2949 = vmax.f32 %v2059, 0.0
  %v2950 = vmax.f32 %v2192, 0.0
  %v2951 = vmax.f32 %v2325, 0.0
  %v2952 = vmax.f32 %v2458, 0.0
  %v2953 = vmax.f32 %v2591, 0.0
  %v2954 = vmax.f32 %v731, 0.0
  %v2955 = vmax.f32 %v864, 0.0
  %v2956 = vmax.f32 %v997, 0.0
  %v2957 = vmax.f32 %v1130, 0.0
  %v2958 = vmax.f32 %v1263, 0.0
  %v2959 = vmax.f32 %v1396, 0.0
  %v2960 = vmax.f32 %v1529, 0.0
  %v2961 = vmax.f32 %v1662, 0.0
  %v2962 = vmax.f32 %v1795, 0.0
  %v2963 = vmax.f32 %v1928, 0.0
  %v2964 = vmax.f32 %v2061, 0.0
  %v2965 = vmax.f32 %v2194, 0.0
  %v2966 = vmax.f32 %v2327, 0.0
  %v2967 = vmax.f32 %v2460, 0.0
  %v2968 = vmax.f32 %v2593, 0.0
  %v2969 = vmax.f32 %v734, 0.0
  %v2970 = vmax.f32 %v867, 0.0
  %v2971 = vmax.f32 %v1000, 0.0
  %v2972 = vmax.f32 %v1133, 0.0
  %v2973 = vmax.f32 %v1266, 0.0
  %v2974 = vmax.f32 %v1399, 0.0
  %v2975 = vmax.f32 %v1532, 0.0
  %v2976 = vmax.f32 %v1665, 0.0
  %v2977 = vmax.f32 %v1798, 0.0
  %v2978 = vmax.f32 %v1931, 0.0
  %v2979 = vmax.f32 %v2064, 0.0
  %v2980 = vmax.f32 %v2197, 0.0
  %v2981 = vmax.f32 %v2330, 0.0
  %v2982 = vmax.f32 %v2463, 0.0
  %v2983 = vmax.f32 %v2596, 0.0
  %v2984 = vmax.f32 %v736, 0.0
  %v2985 = vmax.f32 %v869, 0.0
  %v2986 = vmax.f32 %v1002, 0.0
  %v2987 = vmax.f32 %v1135, 0.0
  %v2988 = vmax.f32 %v1268, 0.0
  %v2989 = vmax.f32 %v1401, 0.0
  %v2990 = vmax.f32 %v1534, 0.0
  %v2991 = vmax.f32 %v1667, 0.0
  %v2992 = vmax.f32 %v1800, 0.0
  %v2993 = vmax.f32 %v1933, 0.0
  %v2994 = vmax.f32 %v2066, 0.0
  %v2995 = vmax.f32 %v2199, 0.0
  %v2996 = vmax.f32 %v2332, 0.0
  %v2997 = vmax.f32 %v2465, 0.0
  %v2998 = vmax.f32 %v2598, 0.0
  %v2999 = vmax.f32 %v739, 0.0
  %v3000 = vmax.f32 %v872, 0.0
  %v3001 = vmax.f32 %v1005, 0.0
  %v3002 = vmax.f32 %v1138, 0.0
  %v3003 = vmax.f32 %v1271, 0.0
  %v3004 = vmax.f32 %v1404, 0.0
  %v3005 = vmax.f32 %v1537, 0.0
  %v3006 = vmax.f32 %v1670, 0.0
  %v3007 = vmax.f32 %v1803, 0.0
  %v3008 = vmax.f32 %v1936, 0.0
  %v3009 = vmax.f32 %v2069, 0.0
  %v3010 = vmax.f32 %v2202, 0.0
  %v3011 = vmax.f32 %v2335, 0.0
  %v3012 = vmax.f32 %v2468, 0.0
  %v3013 = vmax.f32 %v2601, 0.0
  %v3014 = vmax.f32 %v741, 0.0
  %v3015 = vmax.f32 %v874, 0.0
  %v3016 = vmax.f32 %v1007, 0.0
  %v3017 = vmax.f32 %v1140, 0.0
  %v3018 = vmax.f32 %v1273, 0.0
  %v3019 = vmax.f32 %v1406, 0.0
  %v3020 = vmax.f32 %v1539, 0.0
  %v3021 = vmax.f32 %v1672, 0.0
  %v3022 = vmax.f32 %v1805, 0.0
  %v3023 = vmax.f32 %v1938, 0.0
  %v3024 = vmax.f32 %v2071, 0.0
  %v3025 = vmax.f32 %v2204, 0.0
  %v3026 = vmax.f32 %v2337, 0.0
  %v3027 = vmax.f32 %v2470, 0.0
  %v3028 = vmax.f32 %v2603, 0.0
  %v3029 = vmax.f32 %v744, 0.0
  %v3030 = vmax.f32 %v877, 0.0
  %v3031 = vmax.f32 %v1010, 0.0
  %v3032 = vmax.f32 %v1143, 0.0
  %v3033 = vmax.f32 %v1276, 0.0
  %v3034 = vmax.f32 %v1409, 0.0
  %v3035 = vmax.f32 %v1542, 0.0
  %v3036 = vmax.f32 %v1675, 0.0
  %v3037 = vmax.f32 %v1808, 0.0
  %v3038 = vmax.f32 %v1941, 0.0
  %v3039 = vmax.f32 %v2074, 0.0
  %v3040 = vmax.f32 %v2207, 0.0
  %v3041 = vmax.f32 %v2340, 0.0
  %v3042 = vmax.f32 %v2473, 0.0
  %v3043 = vmax.f32 %v2606, 0.0
  %v3044 = vmax.f32 %v746, 0.0
  %v3045 = vmax.f32 %v879, 0.0
  %v3046 = vmax.f32 %v1012, 0.0
  %v3047 = vmax.f32 %v1145, 0.0
  %v3048 = vmax.f32 %v1278, 0.0
  %v3049 = vmax.f32 %v1411, 0.0
  %v3050 = vmax.f32 %v1544, 0.0
  %v3051 = vmax.f32 %v1677, 0.0
  %v3052 = vmax.f32 %v1810, 0.0
  %v3053 = vmax.f32 %v1943, 0.0
  %v3054 = vmax.f32 %v2076, 0.0
  %v3055 = vmax.f32 %v2209, 0.0
  %v3056 = vmax.f32 %v2342, 0.0
  %v3057 = vmax.f32 %v2475, 0.0
  %v3058 = vmax.f32 %v2608, 0.0
  %v3059 = vmax.f32 %v749, 0.0
  %v3060 = vmax.f32 %v882, 0.0
  %v3061 = vmax.f32 %v1015, 0.0
  %v3062 = vmax.f32 %v1148, 0.0
  %v3063 = vmax.f32 %v1281, 0.0
  %v3064 = vmax.f32 %v1414, 0.0
  %v3065 = vmax.f32 %v1547, 0.0
  %v3066 = vmax.f32 %v1680, 0.0
  %v3067 = vmax.f32 %v1813, 0.0
  %v3068 = vmax.f32 %v1946, 0.0
  %v3069 = vmax.f32 %v2079, 0.0
  %v3070 = vmax.f32 %v2212, 0.0
  %v3071 = vmax.f32 %v2345, 0.0
  %v3072 = vmax.f32 %v2478, 0.0
  %v3073 = vmax.f32 %v2611, 0.0
  %v3074 = vmax.f32 %v751, 0.0
  %v3075 = vmax.f32 %v884, 0.0
  %v3076 = vmax.f32 %v1017, 0.0
  %v3077 = vmax.f32 %v1150, 0.0
  %v3078 = vmax.f32 %v1283, 0.0
  %v3079 = vmax.f32 %v1416, 0.0
  %v3080 = vmax.f32 %v1549, 0.0
  %v3081 = vmax.f32 %v1682, 0.0
  %v3082 = vmax.f32 %v1815, 0.0
  %v3083 = vmax.f32 %v1948, 0.0
  %v3084 = vmax.f32 %v2081, 0.0
  %v3085 = vmax.f32 %v2214, 0.0
  %v3086 = vmax.f32 %v2347, 0.0
  %v3087 = vmax.f32 %v2480, 0.0
  %v3088 = vmax.f32 %v2613, 0.0
  %v3089 = vmax.f32 %v754, 0.0
  %v3090 = vmax.f32 %v887, 0.0
  %v3091 = vmax.f32 %v1020, 0.0
  %v3092 = vmax.f32 %v1153, 0.0
  %v3093 = vmax.f32 %v1286, 0.0
  %v3094 = vmax.f32 %v1419, 0.0
  %v3095 = vmax.f32 %v1552, 0.0
  %v3096 = vmax.f32 %v1685, 0.0
  %v3097 = vmax.f32 %v1818, 0.0
  %v3098 = vmax.f32 %v1951, 0.0
  %v3099 = vmax.f32 %v2084, 0.0
  %v3100 = vmax.f32 %v2217, 0.0
  %v3101 = vmax.f32 %v2350, 0.0
  %v3102 = vmax.f32 %v2483, 0.0
  %v3103 = vmax.f32 %v2616, 0.0
  %v3104 = vmax.f32 %v756, 0.0
  %v3105 = vmax.f32 %v889, 0.0
  %v3106 = vmax.f32 %v1022, 0.0
  %v3107 = vmax.f32 %v1155, 0.0
  %v3108 = vmax.f32 %v1288, 0.0
  %v3109 = vmax.f32 %v1421, 0.0
  %v3110 = vmax.f32 %v1554, 0.0
  %v3111 = vmax.f32 %v1687, 0.0
  %v3112 = vmax.f32 %v1820, 0.0
  %v3113 = vmax.f32 %v1953, 0.0
  %v3114 = vmax.f32 %v2086, 0.0
  %v3115 = vmax.f32 %v2219, 0.0
  %v3116 = vmax.f32 %v2352, 0.0
  %v3117 = vmax.f32 %v2485, 0.0
  %v3118 = vmax.f32 %v2618, 0.0
  %v3119 = vmax.f32 %v759, 0.0
  %v3120 = vmax.f32 %v892, 0.0
  %v3121 = vmax.f32 %v1025, 0.0
  %v3122 = vmax.f32 %v1158, 0.0
  %v3123 = vmax.f32 %v1291, 0.0
  %v3124 = vmax.f32 %v1424, 0.0
  %v3125 = vmax.f32 %v1557, 0.0
  %v3126 = vmax.f32 %v1690, 0.0
  %v3127 = vmax.f32 %v1823, 0.0
  %v3128 = vmax.f32 %v1956, 0.0
  %v3129 = vmax.f32 %v2089, 0.0
  %v3130 = vmax.f32 %v2222, 0.0
  %v3131 = vmax.f32 %v2355, 0.0
  %v3132 = vmax.f32 %v2488, 0.0
  %v3133 = vmax.f32 %v2621, 0.0
  %v3134 = vmax.f32 %v761, 0.0
  %v3135 = vmax.f32 %v894, 0.0
  %v3136 = vmax.f32 %v1027, 0.0
  %v3137 = vmax.f32 %v1160, 0.0
  %v3138 = vmax.f32 %v1293, 0.0
  %v3139 = vmax.f32 %v1426, 0.0
  %v3140 = vmax.f32 %v1559, 0.0
  %v3141 = vmax.f32 %v1692, 0.0
  %v3142 = vmax.f32 %v1825, 0.0
  %v3143 = vmax.f32 %v1958, 0.0
  %v3144 = vmax.f32 %v2091, 0.0
  %v3145 = vmax.f32 %v2224, 0.0
  %v3146 = vmax.f32 %v2357, 0.0
  %v3147 = vmax.f32 %v2490, 0.0
  %v3148 = vmax.f32 %v2623, 0.0
  %v3149 = vmax.f32 %v764, 0.0
  %v3150 = vmax.f32 %v897, 0.0
  %v3151 = vmax.f32 %v1030, 0.0
  %v3152 = vmax.f32 %v1163, 0.0
  %v3153 = vmax.f32 %v1296, 0.0
  %v3154 = vmax.f32 %v1429, 0.0
  %v3155 = vmax.f32 %v1562, 0.0
  %v3156 = vmax.f32 %v1695, 0.0
  %v3157 = vmax.f32 %v1828, 0.0
  %v3158 = vmax.f32 %v1961, 0.0
  %v3159 = vmax.f32 %v2094, 0.0
  %v3160 = vmax.f32 %v2227, 0.0
  %v3161 = vmax.f32 %v2360, 0.0
  %v3162 = vmax.f32 %v2493, 0.0
  %v3163 = vmax.f32 %v2626, 0.0
  %v3164 = vmax.f32 %v766, 0.0
  %v3165 = vmax.f32 %v899, 0.0
  %v3166 = vmax.f32 %v1032, 0.0
  %v3167 = vmax.f32 %v1165, 0.0
  %v3168 = vmax.f32 %v1298, 0.0
  %v3169 = vmax.f32 %v1431, 0.0
  %v3170 = vmax.f32 %v1564, 0.0
  %v3171 = vmax.f32 %v1697, 0.0
  %v3172 = vmax.f32 %v1830, 0.0
  %v3173 = vmax.f32 %v1963, 0.0
  %v3174 = vmax.f32 %v2096, 0.0
  %v3175 = vmax.f32 %v2229, 0.0
  %v3176 = vmax.f32 %v2362, 0.0
  %v3177 = vmax.f32 %v2495, 0.0
  %v3178 = vmax.f32 %v2628, 0.0
  %v3179 = vmax.f32 %v769, 0.0
  %v3180 = vmax.f32 %v902, 0.0
  %v3181 = vmax.f32 %v1035, 0.0
  %v3182 = vmax.f32 %v1168, 0.0
  %v3183 = vmax.f32 %v1301, 0.0
  %v3184 = vmax.f32 %v1434, 0.0
  %v3185 = vmax.f32 %v1567, 0.0
  %v3186 = vmax.f32 %v1700, 0.0
  %v3187 = vmax.f32 %v1833, 0.0
  %v3188 = vmax.f32 %v1966, 0.0
  %v3189 = vmax.f32 %v2099, 0.0
  %v3190 = vmax.f32 %v2232, 0.0
  %v3191 = vmax.f32 %v2365, 0.0
  %v3192 = vmax.f32 %v2498, 0.0
  %v3193 = vmax.f32 %v2631, 0.0
  %v3194 = vmax.f32 %v771, 0.0
  %v3195 = vmax.f32 %v904, 0.0
  %v3196 = vmax.f32 %v1037, 0.0
  %v3197 = vmax.f32 %v1170, 0.0
  %v3198 = vmax.f32 %v1303, 0.0
  %v3199 = vmax.f32 %v1436, 0.0
  %v3200 = vmax.f32 %v1569, 0.0
  %v3201 = vmax.f32 %v1702, 0.0
  %v3202 = vmax.f32 %v1835, 0.0
  %v3203 = vmax.f32 %v1968, 0.0
  %v3204 = vmax.f32 %v2101, 0.0
  %v3205 = vmax.f32 %v2234, 0.0
  %v3206 = vmax.f32 %v2367, 0.0
  %v3207 = vmax.f32 %v2500, 0.0
  %v3208 = vmax.f32 %v2633, 0.0
  %v3209 = vmax.f32 %v774, 0.0
  %v3210 = vmax.f32 %v907, 0.0
  %v3211 = vmax.f32 %v1040, 0.0
  %v3212 = vmax.f32 %v1173, 0.0
  %v3213 = vmax.f32 %v1306, 0.0
  %v3214 = vmax.f32 %v1439, 0.0
  %v3215 = vmax.f32 %v1572, 0.0
  %v3216 = vmax.f32 %v1705, 0.0
  %v3217 = vmax.f32 %v1838, 0.0
  %v3218 = vmax.f32 %v1971, 0.0
  %v3219 = vmax.f32 %v2104, 0.0
  %v3220 = vmax.f32 %v2237, 0.0
  %v3221 = vmax.f32 %v2370, 0.0
  %v3222 = vmax.f32 %v2503, 0.0
  %v3223 = vmax.f32 %v2636, 0.0
  %v3224 = vmax.f32 %v776, 0.0
  %v3225 = vmax.f32 %v909, 0.0
  %v3226 = vmax.f32 %v1042, 0.0
  %v3227 = vmax.f32 %v1175, 0.0
  %v3228 = vmax.f32 %v1308, 0.0
  %v3229 = vmax.f32 %v1441, 0.0
  %v3230 = vmax.f32 %v1574, 0.0
  %v3231 = vmax.f32 %v1707, 0.0
  %v3232 = vmax.f32 %v1840, 0.0
  %v3233 = vmax.f32 %v1973, 0.0
  %v3234 = vmax.f32 %v2106, 0.0
  %v3235 = vmax.f32 %v2239, 0.0
  %v3236 = vmax.f32 %v2372, 0.0
  %v3237 = vmax.f32 %v2505, 0.0
  %v3238 = vmax.f32 %v2638, 0.0
  %v3239 = vmax.f32 %v779, 0.0
  %v3240 = vmax.f32 %v912, 0.0
  %v3241 = vmax.f32 %v1045, 0.0
  %v3242 = vmax.f32 %v1178, 0.0
  %v3243 = vmax.f32 %v1311, 0.0
  %v3244 = vmax.f32 %v1444, 0.0
  %v3245 = vmax.f32 %v1577, 0.0
  %v3246 = vmax.f32 %v1710, 0.0
  %v3247 = vmax.f32 %v1843, 0.0
  %v3248 = vmax.f32 %v1976, 0.0
  %v3249 = vmax.f32 %v2109, 0.0
  %v3250 = vmax.f32 %v2242, 0.0
  %v3251 = vmax.f32 %v2375, 0.0
  %v3252 = vmax.f32 %v2508, 0.0
  %v3253 = vmax.f32 %v2641, 0.0
  %v3254 = vmax.f32 %v781, 0.0
  %v3255 = vmax.f32 %v914, 0.0
  %v3256 = vmax.f32 %v1047, 0.0
  %v3257 = vmax.f32 %v1180, 0.0
  %v3258 = vmax.f32 %v1313, 0.0
  %v3259 = vmax.f32 %v1446, 0.0
  %v3260 = vmax.f32 %v1579, 0.0
  %v3261 = vmax.f32 %v1712, 0.0
  %v3262 = vmax.f32 %v1845, 0.0
  %v3263 = vmax.f32 %v1978, 0.0
  %v3264 = vmax.f32 %v2111, 0.0
  %v3265 = vmax.f32 %v2244, 0.0
  %v3266 = vmax.f32 %v2377, 0.0
  %v3267 = vmax.f32 %v2510, 0.0
  %v3268 = vmax.f32 %v2643, 0.0
  %v3269 = vmax.f32 %v784, 0.0
  %v3270 = vmax.f32 %v917, 0.0
  %v3271 = vmax.f32 %v1050, 0.0
  %v3272 = vmax.f32 %v1183, 0.0
  %v3273 = vmax.f32 %v1316, 0.0
  %v3274 = vmax.f32 %v1449, 0.0
  %v3275 = vmax.f32 %v1582, 0.0
  %v3276 = vmax.f32 %v1715, 0.0
  %v3277 = vmax.f32 %v1848, 0.0
  %v3278 = vmax.f32 %v1981, 0.0
  %v3279 = vmax.f32 %v2114, 0.0
  %v3280 = vmax.f32 %v2247, 0.0
  %v3281 = vmax.f32 %v2380, 0.0
  %v3282 = vmax.f32 %v2513, 0.0
  %v3283 = vmax.f32 %v2646, 0.0
  %v3284 = vmax.f32 %v786, 0.0
  %v3285 = vmax.f32 %v919, 0.0
  %v3286 = vmax.f32 %v1052, 0.0
  %v3287 = vmax.f32 %v1185, 0.0
  %v3288 = vmax.f32 %v1318, 0.0
  %v3289 = vmax.f32 %v1451, 0.0
  %v3290 = vmax.f32 %v1584, 0.0
  %v3291 = vmax.f32 %v1717, 0.0
  %v3292 = vmax.f32 %v1850, 0.0
  %v3293 = vmax.f32 %v1983, 0.0
  %v3294 = vmax.f32 %v2116, 0.0
  %v3295 = vmax.f32 %v2249, 0.0
  %v3296 = vmax.f32 %v2382, 0.0
  %v3297 = vmax.f32 %v2515, 0.0
  %v3298 = vmax.f32 %v2648, 0.0
  %v3299 = vmax.f32 %v789, 0.0
  %v3300 = vmax.f32 %v922, 0.0
  %v3301 = vmax.f32 %v1055, 0.0
  %v3302 = vmax.f32 %v1188, 0.0
  %v3303 = vmax.f32 %v1321, 0.0
  %v3304 = vmax.f32 %v1454, 0.0
  %v3305 = vmax.f32 %v1587, 0.0
  %v3306 = vmax.f32 %v1720, 0.0
  %v3307 = vmax.f32 %v1853, 0.0
  %v3308 = vmax.f32 %v1986, 0.0
  %v3309 = vmax.f32 %v2119, 0.0
  %v3310 = vmax.f32 %v2252, 0.0
  %v3311 = vmax.f32 %v2385, 0.0
  %v3312 = vmax.f32 %v2518, 0.0
  %v3313 = vmax.f32 %v2651, 0.0
  %v3314 = vmax.f32 %v791, 0.0
  %v3315 = vmax.f32 %v924, 0.0
  %v3316 = vmax.f32 %v1057, 0.0
  %v3317 = vmax.f32 %v1190, 0.0
  %v3318 = vmax.f32 %v1323, 0.0
  %v3319 = vmax.f32 %v1456, 0.0
  %v3320 = vmax.f32 %v1589, 0.0
  %v3321 = vmax.f32 %v1722, 0.0
  %v3322 = vmax.f32 %v1855, 0.0
  %v3323 = vmax.f32 %v1988, 0.0
  %v3324 = vmax.f32 %v2121, 0.0
  %v3325 = vmax.f32 %v2254, 0.0
  %v3326 = vmax.f32 %v2387, 0.0
  %v3327 = vmax.f32 %v2520, 0.0
  %v3328 = vmax.f32 %v2653, 0.0
  %v3329 = vmax.f32 %v794, 0.0
  %v3330 = vmax.f32 %v927, 0.0
  %v3331 = vmax.f32 %v1060, 0.0
  %v3332 = vmax.f32 %v1193, 0.0
  %v3333 = vmax.f32 %v1326, 0.0
  %v3334 = vmax.f32 %v1459, 0.0
  %v3335 = vmax.f32 %v1592, 0.0
  %v3336 = vmax.f32 %v1725, 0.0
  %v3337 = vmax.f32 %v1858, 0.0
  %v3338 = vmax.f32 %v1991, 0.0
  %v3339 = vmax.f32 %v2124, 0.0
  %v3340 = vmax.f32 %v2257, 0.0
  %v3341 = vmax.f32 %v2390, 0.0
  %v3342 = vmax.f32 %v2523, 0.0
  %v3343 = vmax.f32 %v2656, 0.0
  %v3344 = vmax.f32 %v796, 0.0
  %v3345 = vmax.f32 %v929, 0.0
  %v3346 = vmax.f32 %v1062, 0.0
  %v3347 = vmax.f32 %v1195, 0.0
  %v3348 = vmax.f32 %v1328, 0.0
  %v3349 = vmax.f32 %v1461, 0.0
  %v3350 = vmax.f32 %v1594, 0.0
  %v3351 = vmax.f32 %v1727, 0.0
  %v3352 = vmax.f32 %v1860, 0.0
  %v3353 = vmax.f32 %v1993, 0.0
  %v3354 = vmax.f32 %v2126, 0.0
  %v3355 = vmax.f32 %v2259, 0.0
  %v3356 = vmax.f32 %v2392, 0.0
  %v3357 = vmax.f32 %v2525, 0.0
  %v3358 = vmax.f32 %v2658, 0.0
  %v3359 = vmax.f32 %v799, 0.0
  %v3360 = vmax.f32 %v932, 0.0
  %v3361 = vmax.f32 %v1065, 0.0
  %v3362 = vmax.f32 %v1198, 0.0
  %v3363 = vmax.f32 %v1331, 0.0
  %v3364 = vmax.f32 %v1464, 0.0
  %v3365 = vmax.f32 %v1597, 0.0
  %v3366 = vmax.f32 %v1730, 0.0
  %v3367 = vmax.f32 %v1863, 0.0
  %v3368 = vmax.f32 %v1996, 0.0
  %v3369 = vmax.f32 %v2129, 0.0
  %v3370 = vmax.f32 %v2262, 0.0
  %v3371 = vmax.f32 %v2395, 0.0
  %v3372 = vmax.f32 %v2528, 0.0
  %v3373 = vmax.f32 %v2661, 0.0
  %v3374 = vmax.f32 %v801, 0.0
  %v3375 = vmax.f32 %v934, 0.0
  %v3376 = vmax.f32 %v1067, 0.0
  %v3377 = vmax.f32 %v1200, 0.0
  %v3378 = vmax.f32 %v1333, 0.0
  %v3379 = vmax.f32 %v1466, 0.0
  %v3380 = vmax.f32 %v1599, 0.0
  %v3381 = vmax.f32 %v1732, 0.0
  %v3382 = vmax.f32 %v1865, 0.0
  %v3383 = vmax.f32 %v1998, 0.0
  %v3384 = vmax.f32 %v2131, 0.0
  %v3385 = vmax.f32 %v2264, 0.0
  %v3386 = vmax.f32 %v2397, 0.0
  %v3387 = vmax.f32 %v2530, 0.0
  %v3388 = vmax.f32 %v2663, 0.0
  %v3389 = vmax.f32 %v804, 0.0
  %v3390 = vmax.f32 %v937, 0.0
  %v3391 = vmax.f32 %v1070, 0.0
  %v3392 = vmax.f32 %v1203, 0.0
  %v3393 = vmax.f32 %v1336, 0.0
  %v3394 = vmax.f32 %v1469, 0.0
  %v3395 = vmax.f32 %v1602, 0.0
  %v3396 = vmax.f32 %v1735, 0.0
  %v3397 = vmax.f32 %v1868, 0.0
  %v3398 = vmax.f32 %v2001, 0.0
  %v3399 = vmax.f32 %v2134, 0.0
  %v3400 = vmax.f32 %v2267, 0.0
  %v3401 = vmax.f32 %v2400, 0.0
  %v3402 = vmax.f32 %v2533, 0.0
  %v3403 = vmax.f32 %v2666, 0.0
  %v3404 = vld [vmem:[%s3] sm:$0xff]
  %v3405 = vld [vmem:[%s3 + $0x8] sm:$0xff]
  %v3406 = vld [vmem:[%s3 + $0x10] sm:$0xff]
  %v3407 = vld [vmem:[%s3 + $0x18] sm:$0xff]
  %vm3408 = vcmask 64512
  %v3410 = vsel %vm3408, %v3407, 0
  %3412 = vmatpush.msra.mxu0 %v2894
  %3413 = vmatpush.msra.mxu0 %v2879
  %3414 = vmatpush.msra.mxu0 %v2864
  %3415 = vmatpush.msra.mxu0 %v2849
  %3416 = vmatpush.msra.mxu0 %v2834
  %3417 = vmatpush.msra.mxu0 %v2819
  %3418 = vmatpush.msra.mxu0 %v2804
  %3419 = vmatpush.msra.mxu0 %v2789
  %3420 = vmatpush.msra.mxu0 %v2774
  %3421 = vmatpush.msra.mxu0 %v2759
  %3422 = vmatpush.msra.mxu0 %v2744
  %3423 = vmatpush.msra.mxu0 %v2729
  %3424 = vmatpush.msra.mxu0 %v2714
  %3425 = vmatpush.msra.mxu0 %v2699
  %3426 = vmatpush.msra.mxu0 %v2684
  %3427 = vmatpush.msra.mxu0 %v2669
  %3428 = vmatmul.f32.gmra.mxu0 %v3404
  %v3429 = vpop.f32.mrf.mxu0
  %v3430 = vadd.f32 0.0, %v3429
  %3431 = vdwg.mxu0
  %3432 = vmatpush.msra.mxu0 %v3134
  %3433 = vmatpush.msra.mxu0 %v3119
  %3434 = vmatpush.msra.mxu0 %v3104
  %3435 = vmatpush.msra.mxu0 %v3089
  %3436 = vmatpush.msra.mxu0 %v3074
  %3437 = vmatpush.msra.mxu0 %v3059
  %3438 = vmatpush.msra.mxu0 %v3044
  %3439 = vmatpush.msra.mxu0 %v3029
  %3440 = vmatpush.msra.mxu0 %v3014
  %3441 = vmatpush.msra.mxu0 %v2999
  %3442 = vmatpush.msra.mxu0 %v2984
  %3443 = vmatpush.msra.mxu0 %v2969
  %3444 = vmatpush.msra.mxu0 %v2954
  %3445 = vmatpush.msra.mxu0 %v2939
  %3446 = vmatpush.msra.mxu0 %v2924
  %3447 = vmatpush.msra.mxu0 %v2909
  %3448 = vmatmul.f32.gmra.mxu0 %v3405
  %v3449 = vpop.f32.mrf.mxu0
  %v3450 = vadd.f32 %v3430, %v3449
  %3451 = vdwg.mxu0
  %3452 = vmatpush.msra.mxu0 %v3374
  %3453 = vmatpush.msra.mxu0 %v3359
  %3454 = vmatpush.msra.mxu0 %v3344
  %3455 = vmatpush.msra.mxu0 %v3329
  %3456 = vmatpush.msra.mxu0 %v3314
  %3457 = vmatpush.msra.mxu0 %v3299
  %3458 = vmatpush.msra.mxu0 %v3284
  %3459 = vmatpush.msra.mxu0 %v3269
  %3460 = vmatpush.msra.mxu0 %v3254
  %3461 = vmatpush.msra.mxu0 %v3239
  %3462 = vmatpush.msra.mxu0 %v3224
  %3463 = vmatpush.msra.mxu0 %v3209
  %3464 = vmatpush.msra.mxu0 %v3194
  %3465 = vmatpush.msra.mxu0 %v3179
  %3466 = vmatpush.msra.mxu0 %v3164
  %3467 = vmatpush.msra.mxu0 %v3149
  %3468 = vmatmul.f32.gmra.mxu0 %v3406
  %v3469 = vpop.f32.mrf.mxu0
  %v3470 = vadd.f32 %v3450, %v3469
  %3471 = vdwg.mxu0
  %3472 = vmatpush.msra.mxu0 0.0
  %3473 = vmatpush.msra.mxu0 0.0
  %3474 = vmatpush.msra.mxu0 0.0
  %3475 = vmatpush.msra.mxu0 0.0
  %3476 = vmatpush.msra.mxu0 0.0
  %3477 = vmatpush.msra.mxu0 0.0
  %3478 = vmatpush.msra.mxu0 0.0
  %3479 = vmatpush.msra.mxu0 0.0
  %3480 = vmatpush.msra.mxu0 0.0
  %3481 = vmatpush.msra.mxu0 0.0
  %3482 = vmatpush.msra.mxu0 0.0
  %3483 = vmatpush.msra.mxu0 0.0
  %3484 = vmatpush.msra.mxu0 0.0
  %3485 = vmatpush.msra.mxu0 0.0
  %3486 = vmatpush.msra.mxu0 0.0
  %3487 = vmatpush.msra.mxu0 %v3389
  %3488 = vmatmul.f32.gmra.mxu0 %v3410
  %v3489 = vpop.f32.mrf.mxu0
  %v3490 = vadd.f32 %v3470, %v3489
  %3491 = vdwg.mxu0
  %3492 = vmatpush.msra.mxu0 %v2895
  %3493 = vmatpush.msra.mxu0 %v2880
  %3494 = vmatpush.msra.mxu0 %v2865
  %3495 = vmatpush.msra.mxu0 %v2850
  %3496 = vmatpush.msra.mxu0 %v2835
  %3497 = vmatpush.msra.mxu0 %v2820
  %3498 = vmatpush.msra.mxu0 %v2805
  %3499 = vmatpush.msra.mxu0 %v2790
  %3500 = vmatpush.msra.mxu0 %v2775
  %3501 = vmatpush.msra.mxu0 %v2760
  %3502 = vmatpush.msra.mxu0 %v2745
  %3503 = vmatpush.msra.mxu0 %v2730
  %3504 = vmatpush.msra.mxu0 %v2715
  %3505 = vmatpush.msra.mxu0 %v2700
  %3506 = vmatpush.msra.mxu0 %v2685
  %3507 = vmatpush.msra.mxu0 %v2670
  %3508 = vmatmul.f32.gmra.mxu0 %v3404
  %v3509 = vpop.f32.mrf.mxu0
  %v3510 = vadd.f32 0.0, %v3509
  %3511 = vdwg.mxu0
  %3512 = vmatpush.msra.mxu0 %v3135
  %3513 = vmatpush.msra.mxu0 %v3120
  %3514 = vmatpush.msra.mxu0 %v3105
  %3515 = vmatpush.msra.mxu0 %v3090
  %3516 = vmatpush.msra.mxu0 %v3075
  %3517 = vmatpush.msra.mxu0 %v3060
  %3518 = vmatpush.msra.mxu0 %v3045
  %3519 = vmatpush.msra.mxu0 %v3030
  %3520 = vmatpush.msra.mxu0 %v3015
  %3521 = vmatpush.msra.mxu0 %v3000
  %3522 = vmatpush.msra.mxu0 %v2985
  %3523 = vmatpush.msra.mxu0 %v2970
  %3524 = vmatpush.msra.mxu0 %v2955
  %3525 = vmatpush.msra.mxu0 %v2940
  %3526 = vmatpush.msra.mxu0 %v2925
  %3527 = vmatpush.msra.mxu0 %v2910
  %3528 = vmatmul.f32.gmra.mxu0 %v3405
  %v3529 = vpop.f32.mrf.mxu0
  %v3530 = vadd.f32 %v3510, %v3529
  %3531 = vdwg.mxu0
  %3532 = vmatpush.msra.mxu0 %v3375
  %3533 = vmatpush.msra.mxu0 %v3360
  %3534 = vmatpush.msra.mxu0 %v3345
  %3535 = vmatpush.msra.mxu0 %v3330
  %3536 = vmatpush.msra.mxu0 %v3315
  %3537 = vmatpush.msra.mxu0 %v3300
  %3538 = vmatpush.msra.mxu0 %v3285
  %3539 = vmatpush.msra.mxu0 %v3270
  %3540 = vmatpush.msra.mxu0 %v3255
  %3541 = vmatpush.msra.mxu0 %v3240
  %3542 = vmatpush.msra.mxu0 %v3225
  %3543 = vmatpush.msra.mxu0 %v3210
  %3544 = vmatpush.msra.mxu0 %v3195
  %3545 = vmatpush.msra.mxu0 %v3180
  %3546 = vmatpush.msra.mxu0 %v3165
  %3547 = vmatpush.msra.mxu0 %v3150
  %3548 = vmatmul.f32.gmra.mxu0 %v3406
  %v3549 = vpop.f32.mrf.mxu0
  %v3550 = vadd.f32 %v3530, %v3549
  %3551 = vdwg.mxu0
  %3552 = vmatpush.msra.mxu0 0.0
  %3553 = vmatpush.msra.mxu0 0.0
  %3554 = vmatpush.msra.mxu0 0.0
  %3555 = vmatpush.msra.mxu0 0.0
  %3556 = vmatpush.msra.mxu0 0.0
  %3557 = vmatpush.msra.mxu0 0.0
  %3558 = vmatpush.msra.mxu0 0.0
  %3559 = vmatpush.msra.mxu0 0.0
  %3560 = vmatpush.msra.mxu0 0.0
  %3561 = vmatpush.msra.mxu0 0.0
  %3562 = vmatpush.msra.mxu0 0.0
  %3563 = vmatpush.msra.mxu0 0.0
  %3564 = vmatpush.msra.mxu0 0.0
  %3565 = vmatpush.msra.mxu0 0.0
  %3566 = vmatpush.msra.mxu0 0.0
  %3567 = vmatpush.msra.mxu0 %v3390
  %3568 = vmatmul.f32.gmra.mxu0 %v3410
  %v3569 = vpop.f32.mrf.mxu0
  %v3570 = vadd.f32 %v3550, %v3569
  %3571 = vdwg.mxu0
  %3572 = vmatpush.msra.mxu0 %v2896
  %3573 = vmatpush.msra.mxu0 %v2881
  %3574 = vmatpush.msra.mxu0 %v2866
  %3575 = vmatpush.msra.mxu0 %v2851
  %3576 = vmatpush.msra.mxu0 %v2836
  %3577 = vmatpush.msra.mxu0 %v2821
  %3578 = vmatpush.msra.mxu0 %v2806
  %3579 = vmatpush.msra.mxu0 %v2791
  %3580 = vmatpush.msra.mxu0 %v2776
  %3581 = vmatpush.msra.mxu0 %v2761
  %3582 = vmatpush.msra.mxu0 %v2746
  %3583 = vmatpush.msra.mxu0 %v2731
  %3584 = vmatpush.msra.mxu0 %v2716
  %3585 = vmatpush.msra.mxu0 %v2701
  %3586 = vmatpush.msra.mxu0 %v2686
  %3587 = vmatpush.msra.mxu0 %v2671
  %3588 = vmatmul.f32.gmra.mxu0 %v3404
  %v3589 = vpop.f32.mrf.mxu0
  %v3590 = vadd.f32 0.0, %v3589
  %3591 = vdwg.mxu0
  %3592 = vmatpush.msra.mxu0 %v3136
  %3593 = vmatpush.msra.mxu0 %v3121
  %3594 = vmatpush.msra.mxu0 %v3106
  %3595 = vmatpush.msra.mxu0 %v3091
  %3596 = vmatpush.msra.mxu0 %v3076
  %3597 = vmatpush.msra.mxu0 %v3061
  %3598 = vmatpush.msra.mxu0 %v3046
  %3599 = vmatpush.msra.mxu0 %v3031
  %3600 = vmatpush.msra.mxu0 %v3016
  %3601 = vmatpush.msra.mxu0 %v3001
  %3602 = vmatpush.msra.mxu0 %v2986
  %3603 = vmatpush.msra.mxu0 %v2971
  %3604 = vmatpush.msra.mxu0 %v2956
  %3605 = vmatpush.msra.mxu0 %v2941
  %3606 = vmatpush.msra.mxu0 %v2926
  %3607 = vmatpush.msra.mxu0 %v2911
  %3608 = vmatmul.f32.gmra.mxu0 %v3405
  %v3609 = vpop.f32.mrf.mxu0
  %v3610 = vadd.f32 %v3590, %v3609
  %3611 = vdwg.mxu0
  %3612 = vmatpush.msra.mxu0 %v3376
  %3613 = vmatpush.msra.mxu0 %v3361
  %3614 = vmatpush.msra.mxu0 %v3346
  %3615 = vmatpush.msra.mxu0 %v3331
  %3616 = vmatpush.msra.mxu0 %v3316
  %3617 = vmatpush.msra.mxu0 %v3301
  %3618 = vmatpush.msra.mxu0 %v3286
  %3619 = vmatpush.msra.mxu0 %v3271
  %3620 = vmatpush.msra.mxu0 %v3256
  %3621 = vmatpush.msra.mxu0 %v3241
  %3622 = vmatpush.msra.mxu0 %v3226
  %3623 = vmatpush.msra.mxu0 %v3211
  %3624 = vmatpush.msra.mxu0 %v3196
  %3625 = vmatpush.msra.mxu0 %v3181
  %3626 = vmatpush.msra.mxu0 %v3166
  %3627 = vmatpush.msra.mxu0 %v3151
  %3628 = vmatmul.f32.gmra.mxu0 %v3406
  %v3629 = vpop.f32.mrf.mxu0
  %v3630 = vadd.f32 %v3610, %v3629
  %3631 = vdwg.mxu0
  %3632 = vmatpush.msra.mxu0 0.0
  %3633 = vmatpush.msra.mxu0 0.0
  %3634 = vmatpush.msra.mxu0 0.0
  %3635 = vmatpush.msra.mxu0 0.0
  %3636 = vmatpush.msra.mxu0 0.0
  %3637 = vmatpush.msra.mxu0 0.0
  %3638 = vmatpush.msra.mxu0 0.0
  %3639 = vmatpush.msra.mxu0 0.0
  %3640 = vmatpush.msra.mxu0 0.0
  %3641 = vmatpush.msra.mxu0 0.0
  %3642 = vmatpush.msra.mxu0 0.0
  %3643 = vmatpush.msra.mxu0 0.0
  %3644 = vmatpush.msra.mxu0 0.0
  %3645 = vmatpush.msra.mxu0 0.0
  %3646 = vmatpush.msra.mxu0 0.0
  %3647 = vmatpush.msra.mxu0 %v3391
  %3648 = vmatmul.f32.gmra.mxu0 %v3410
  %v3649 = vpop.f32.mrf.mxu0
  %v3650 = vadd.f32 %v3630, %v3649
  %3651 = vdwg.mxu0
  %3652 = vmatpush.msra.mxu0 %v2897
  %3653 = vmatpush.msra.mxu0 %v2882
  %3654 = vmatpush.msra.mxu0 %v2867
  %3655 = vmatpush.msra.mxu0 %v2852
  %3656 = vmatpush.msra.mxu0 %v2837
  %3657 = vmatpush.msra.mxu0 %v2822
  %3658 = vmatpush.msra.mxu0 %v2807
  %3659 = vmatpush.msra.mxu0 %v2792
  %3660 = vmatpush.msra.mxu0 %v2777
  %3661 = vmatpush.msra.mxu0 %v2762
  %3662 = vmatpush.msra.mxu0 %v2747
  %3663 = vmatpush.msra.mxu0 %v2732
  %3664 = vmatpush.msra.mxu0 %v2717
  %3665 = vmatpush.msra.mxu0 %v2702
  %3666 = vmatpush.msra.mxu0 %v2687
  %3667 = vmatpush.msra.mxu0 %v2672
  %3668 = vmatmul.f32.gmra.mxu0 %v3404
  %v3669 = vpop.f32.mrf.mxu0
  %v3670 = vadd.f32 0.0, %v3669
  %3671 = vdwg.mxu0
  %3672 = vmatpush.msra.mxu0 %v3137
  %3673 = vmatpush.msra.mxu0 %v3122
  %3674 = vmatpush.msra.mxu0 %v3107
  %3675 = vmatpush.msra.mxu0 %v3092
  %3676 = vmatpush.msra.mxu0 %v3077
  %3677 = vmatpush.msra.mxu0 %v3062
  %3678 = vmatpush.msra.mxu0 %v3047
  %3679 = vmatpush.msra.mxu0 %v3032
  %3680 = vmatpush.msra.mxu0 %v3017
  %3681 = vmatpush.msra.mxu0 %v3002
  %3682 = vmatpush.msra.mxu0 %v2987
  %3683 = vmatpush.msra.mxu0 %v2972
  %3684 = vmatpush.msra.mxu0 %v2957
  %3685 = vmatpush.msra.mxu0 %v2942
  %3686 = vmatpush.msra.mxu0 %v2927
  %3687 = vmatpush.msra.mxu0 %v2912
  %3688 = vmatmul.f32.gmra.mxu0 %v3405
  %v3689 = vpop.f32.mrf.mxu0
  %v3690 = vadd.f32 %v3670, %v3689
  %3691 = vdwg.mxu0
  %3692 = vmatpush.msra.mxu0 %v3377
  %3693 = vmatpush.msra.mxu0 %v3362
  %3694 = vmatpush.msra.mxu0 %v3347
  %3695 = vmatpush.msra.mxu0 %v3332
  %3696 = vmatpush.msra.mxu0 %v3317
  %3697 = vmatpush.msra.mxu0 %v3302
  %3698 = vmatpush.msra.mxu0 %v3287
  %3699 = vmatpush.msra.mxu0 %v3272
  %3700 = vmatpush.msra.mxu0 %v3257
  %3701 = vmatpush.msra.mxu0 %v3242
  %3702 = vmatpush.msra.mxu0 %v3227
  %3703 = vmatpush.msra.mxu0 %v3212
  %3704 = vmatpush.msra.mxu0 %v3197
  %3705 = vmatpush.msra.mxu0 %v3182
  %3706 = vmatpush.msra.mxu0 %v3167
  %3707 = vmatpush.msra.mxu0 %v3152
  %3708 = vmatmul.f32.gmra.mxu0 %v3406
  %v3709 = vpop.f32.mrf.mxu0
  %v3710 = vadd.f32 %v3690, %v3709
  %3711 = vdwg.mxu0
  %3712 = vmatpush.msra.mxu0 0.0
  %3713 = vmatpush.msra.mxu0 0.0
  %3714 = vmatpush.msra.mxu0 0.0
  %3715 = vmatpush.msra.mxu0 0.0
  %3716 = vmatpush.msra.mxu0 0.0
  %3717 = vmatpush.msra.mxu0 0.0
  %3718 = vmatpush.msra.mxu0 0.0
  %3719 = vmatpush.msra.mxu0 0.0
  %3720 = vmatpush.msra.mxu0 0.0
  %3721 = vmatpush.msra.mxu0 0.0
  %3722 = vmatpush.msra.mxu0 0.0
  %3723 = vmatpush.msra.mxu0 0.0
  %3724 = vmatpush.msra.mxu0 0.0
  %3725 = vmatpush.msra.mxu0 0.0
  %3726 = vmatpush.msra.mxu0 0.0
  %3727 = vmatpush.msra.mxu0 %v3392
  %3728 = vmatmul.f32.gmra.mxu0 %v3410
  %v3729 = vpop.f32.mrf.mxu0
  %v3730 = vadd.f32 %v3710, %v3729
  %3731 = vdwg.mxu0
  %3732 = vmatpush.msra.mxu0 %v2898
  %3733 = vmatpush.msra.mxu0 %v2883
  %3734 = vmatpush.msra.mxu0 %v2868
  %3735 = vmatpush.msra.mxu0 %v2853
  %3736 = vmatpush.msra.mxu0 %v2838
  %3737 = vmatpush.msra.mxu0 %v2823
  %3738 = vmatpush.msra.mxu0 %v2808
  %3739 = vmatpush.msra.mxu0 %v2793
  %3740 = vmatpush.msra.mxu0 %v2778
  %3741 = vmatpush.msra.mxu0 %v2763
  %3742 = vmatpush.msra.mxu0 %v2748
  %3743 = vmatpush.msra.mxu0 %v2733
  %3744 = vmatpush.msra.mxu0 %v2718
  %3745 = vmatpush.msra.mxu0 %v2703
  %3746 = vmatpush.msra.mxu0 %v2688
  %3747 = vmatpush.msra.mxu0 %v2673
  %3748 = vmatmul.f32.gmra.mxu0 %v3404
  %v3749 = vpop.f32.mrf.mxu0
  %v3750 = vadd.f32 0.0, %v3749
  %3751 = vdwg.mxu0
  %3752 = vmatpush.msra.mxu0 %v3138
  %3753 = vmatpush.msra.mxu0 %v3123
  %3754 = vmatpush.msra.mxu0 %v3108
  %3755 = vmatpush.msra.mxu0 %v3093
  %3756 = vmatpush.msra.mxu0 %v3078
  %3757 = vmatpush.msra.mxu0 %v3063
  %3758 = vmatpush.msra.mxu0 %v3048
  %3759 = vmatpush.msra.mxu0 %v3033
  %3760 = vmatpush.msra.mxu0 %v3018
  %3761 = vmatpush.msra.mxu0 %v3003
  %3762 = vmatpush.msra.mxu0 %v2988
  %3763 = vmatpush.msra.mxu0 %v2973
  %3764 = vmatpush.msra.mxu0 %v2958
  %3765 = vmatpush.msra.mxu0 %v2943
  %3766 = vmatpush.msra.mxu0 %v2928
  %3767 = vmatpush.msra.mxu0 %v2913
  %3768 = vmatmul.f32.gmra.mxu0 %v3405
  %v3769 = vpop.f32.mrf.mxu0
  %v3770 = vadd.f32 %v3750, %v3769
  %3771 = vdwg.mxu0
  %3772 = vmatpush.msra.mxu0 %v3378
  %3773 = vmatpush.msra.mxu0 %v3363
  %3774 = vmatpush.msra.mxu0 %v3348
  %3775 = vmatpush.msra.mxu0 %v3333
  %3776 = vmatpush.msra.mxu0 %v3318
  %3777 = vmatpush.msra.mxu0 %v3303
  %3778 = vmatpush.msra.mxu0 %v3288
  %3779 = vmatpush.msra.mxu0 %v3273
  %3780 = vmatpush.msra.mxu0 %v3258
  %3781 = vmatpush.msra.mxu0 %v3243
  %3782 = vmatpush.msra.mxu0 %v3228
  %3783 = vmatpush.msra.mxu0 %v3213
  %3784 = vmatpush.msra.mxu0 %v3198
  %3785 = vmatpush.msra.mxu0 %v3183
  %3786 = vmatpush.msra.mxu0 %v3168
  %3787 = vmatpush.msra.mxu0 %v3153
  %3788 = vmatmul.f32.gmra.mxu0 %v3406
  %v3789 = vpop.f32.mrf.mxu0
  %v3790 = vadd.f32 %v3770, %v3789
  %3791 = vdwg.mxu0
  %3792 = vmatpush.msra.mxu0 0.0
  %3793 = vmatpush.msra.mxu0 0.0
  %3794 = vmatpush.msra.mxu0 0.0
  %3795 = vmatpush.msra.mxu0 0.0
  %3796 = vmatpush.msra.mxu0 0.0
  %3797 = vmatpush.msra.mxu0 0.0
  %3798 = vmatpush.msra.mxu0 0.0
  %3799 = vmatpush.msra.mxu0 0.0
  %3800 = vmatpush.msra.mxu0 0.0
  %3801 = vmatpush.msra.mxu0 0.0
  %3802 = vmatpush.msra.mxu0 0.0
  %3803 = vmatpush.msra.mxu0 0.0
  %3804 = vmatpush.msra.mxu0 0.0
  %3805 = vmatpush.msra.mxu0 0.0
  %3806 = vmatpush.msra.mxu0 0.0
  %3807 = vmatpush.msra.mxu0 %v3393
  %3808 = vmatmul.f32.gmra.mxu0 %v3410
  %v3809 = vpop.f32.mrf.mxu0
  %v3810 = vadd.f32 %v3790, %v3809
  %3811 = vdwg.mxu0
  %3812 = vmatpush.msra.mxu0 %v2899
  %3813 = vmatpush.msra.mxu0 %v2884
  %3814 = vmatpush.msra.mxu0 %v2869
  %3815 = vmatpush.msra.mxu0 %v2854
  %3816 = vmatpush.msra.mxu0 %v2839
  %3817 = vmatpush.msra.mxu0 %v2824
  %3818 = vmatpush.msra.mxu0 %v2809
  %3819 = vmatpush.msra.mxu0 %v2794
  %3820 = vmatpush.msra.mxu0 %v2779
  %3821 = vmatpush.msra.mxu0 %v2764
  %3822 = vmatpush.msra.mxu0 %v2749
  %3823 = vmatpush.msra.mxu0 %v2734
  %3824 = vmatpush.msra.mxu0 %v2719
  %3825 = vmatpush.msra.mxu0 %v2704
  %3826 = vmatpush.msra.mxu0 %v2689
  %3827 = vmatpush.msra.mxu0 %v2674
  %3828 = vmatmul.f32.gmra.mxu0 %v3404
  %v3829 = vpop.f32.mrf.mxu0
  %v3830 = vadd.f32 0.0, %v3829
  %3831 = vdwg.mxu0
  %3832 = vmatpush.msra.mxu0 %v3139
  %3833 = vmatpush.msra.mxu0 %v3124
  %3834 = vmatpush.msra.mxu0 %v3109
  %3835 = vmatpush.msra.mxu0 %v3094
  %3836 = vmatpush.msra.mxu0 %v3079
  %3837 = vmatpush.msra.mxu0 %v3064
  %3838 = vmatpush.msra.mxu0 %v3049
  %3839 = vmatpush.msra.mxu0 %v3034
  %3840 = vmatpush.msra.mxu0 %v3019
  %3841 = vmatpush.msra.mxu0 %v3004
  %3842 = vmatpush.msra.mxu0 %v2989
  %3843 = vmatpush.msra.mxu0 %v2974
  %3844 = vmatpush.msra.mxu0 %v2959
  %3845 = vmatpush.msra.mxu0 %v2944
  %3846 = vmatpush.msra.mxu0 %v2929
  %3847 = vmatpush.msra.mxu0 %v2914
  %3848 = vmatmul.f32.gmra.mxu0 %v3405
  %v3849 = vpop.f32.mrf.mxu0
  %v3850 = vadd.f32 %v3830, %v3849
  %3851 = vdwg.mxu0
  %3852 = vmatpush.msra.mxu0 %v3379
  %3853 = vmatpush.msra.mxu0 %v3364
  %3854 = vmatpush.msra.mxu0 %v3349
  %3855 = vmatpush.msra.mxu0 %v3334
  %3856 = vmatpush.msra.mxu0 %v3319
  %3857 = vmatpush.msra.mxu0 %v3304
  %3858 = vmatpush.msra.mxu0 %v3289
  %3859 = vmatpush.msra.mxu0 %v3274
  %3860 = vmatpush.msra.mxu0 %v3259
  %3861 = vmatpush.msra.mxu0 %v3244
  %3862 = vmatpush.msra.mxu0 %v3229
  %3863 = vmatpush.msra.mxu0 %v3214
  %3864 = vmatpush.msra.mxu0 %v3199
  %3865 = vmatpush.msra.mxu0 %v3184
  %3866 = vmatpush.msra.mxu0 %v3169
  %3867 = vmatpush.msra.mxu0 %v3154
  %3868 = vmatmul.f32.gmra.mxu0 %v3406
  %v3869 = vpop.f32.mrf.mxu0
  %v3870 = vadd.f32 %v3850, %v3869
  %3871 = vdwg.mxu0
  %3872 = vmatpush.msra.mxu0 0.0
  %3873 = vmatpush.msra.mxu0 0.0
  %3874 = vmatpush.msra.mxu0 0.0
  %3875 = vmatpush.msra.mxu0 0.0
  %3876 = vmatpush.msra.mxu0 0.0
  %3877 = vmatpush.msra.mxu0 0.0
  %3878 = vmatpush.msra.mxu0 0.0
  %3879 = vmatpush.msra.mxu0 0.0
  %3880 = vmatpush.msra.mxu0 0.0
  %3881 = vmatpush.msra.mxu0 0.0
  %3882 = vmatpush.msra.mxu0 0.0
  %3883 = vmatpush.msra.mxu0 0.0
  %3884 = vmatpush.msra.mxu0 0.0
  %3885 = vmatpush.msra.mxu0 0.0
  %3886 = vmatpush.msra.mxu0 0.0
  %3887 = vmatpush.msra.mxu0 %v3394
  %3888 = vmatmul.f32.gmra.mxu0 %v3410
  %v3889 = vpop.f32.mrf.mxu0
  %v3890 = vadd.f32 %v3870, %v3889
  %3891 = vdwg.mxu0
  %3892 = vmatpush.msra.mxu0 %v2900
  %3893 = vmatpush.msra.mxu0 %v2885
  %3894 = vmatpush.msra.mxu0 %v2870
  %3895 = vmatpush.msra.mxu0 %v2855
  %3896 = vmatpush.msra.mxu0 %v2840
  %3897 = vmatpush.msra.mxu0 %v2825
  %3898 = vmatpush.msra.mxu0 %v2810
  %3899 = vmatpush.msra.mxu0 %v2795
  %3900 = vmatpush.msra.mxu0 %v2780
  %3901 = vmatpush.msra.mxu0 %v2765
  %3902 = vmatpush.msra.mxu0 %v2750
  %3903 = vmatpush.msra.mxu0 %v2735
  %3904 = vmatpush.msra.mxu0 %v2720
  %3905 = vmatpush.msra.mxu0 %v2705
  %3906 = vmatpush.msra.mxu0 %v2690
  %3907 = vmatpush.msra.mxu0 %v2675
  %3908 = vmatmul.f32.gmra.mxu0 %v3404
  %v3909 = vpop.f32.mrf.mxu0
  %v3910 = vadd.f32 0.0, %v3909
  %3911 = vdwg.mxu0
  %3912 = vmatpush.msra.mxu0 %v3140
  %3913 = vmatpush.msra.mxu0 %v3125
  %3914 = vmatpush.msra.mxu0 %v3110
  %3915 = vmatpush.msra.mxu0 %v3095
  %3916 = vmatpush.msra.mxu0 %v3080
  %3917 = vmatpush.msra.mxu0 %v3065
  %3918 = vmatpush.msra.mxu0 %v3050
  %3919 = vmatpush.msra.mxu0 %v3035
  %3920 = vmatpush.msra.mxu0 %v3020
  %3921 = vmatpush.msra.mxu0 %v3005
  %3922 = vmatpush.msra.mxu0 %v2990
  %3923 = vmatpush.msra.mxu0 %v2975
  %3924 = vmatpush.msra.mxu0 %v2960
  %3925 = vmatpush.msra.mxu0 %v2945
  %3926 = vmatpush.msra.mxu0 %v2930
  %3927 = vmatpush.msra.mxu0 %v2915
  %3928 = vmatmul.f32.gmra.mxu0 %v3405
  %v3929 = vpop.f32.mrf.mxu0
  %v3930 = vadd.f32 %v3910, %v3929
  %3931 = vdwg.mxu0
  %3932 = vmatpush.msra.mxu0 %v3380
  %3933 = vmatpush.msra.mxu0 %v3365
  %3934 = vmatpush.msra.mxu0 %v3350
  %3935 = vmatpush.msra.mxu0 %v3335
  %3936 = vmatpush.msra.mxu0 %v3320
  %3937 = vmatpush.msra.mxu0 %v3305
  %3938 = vmatpush.msra.mxu0 %v3290
  %3939 = vmatpush.msra.mxu0 %v3275
  %3940 = vmatpush.msra.mxu0 %v3260
  %3941 = vmatpush.msra.mxu0 %v3245
  %3942 = vmatpush.msra.mxu0 %v3230
  %3943 = vmatpush.msra.mxu0 %v3215
  %3944 = vmatpush.msra.mxu0 %v3200
  %3945 = vmatpush.msra.mxu0 %v3185
  %3946 = vmatpush.msra.mxu0 %v3170
  %3947 = vmatpush.msra.mxu0 %v3155
  %3948 = vmatmul.f32.gmra.mxu0 %v3406
  %v3949 = vpop.f32.mrf.mxu0
  %v3950 = vadd.f32 %v3930, %v3949
  %3951 = vdwg.mxu0
  %3952 = vmatpush.msra.mxu0 0.0
  %3953 = vmatpush.msra.mxu0 0.0
  %3954 = vmatpush.msra.mxu0 0.0
  %3955 = vmatpush.msra.mxu0 0.0
  %3956 = vmatpush.msra.mxu0 0.0
  %3957 = vmatpush.msra.mxu0 0.0
  %3958 = vmatpush.msra.mxu0 0.0
  %3959 = vmatpush.msra.mxu0 0.0
  %3960 = vmatpush.msra.mxu0 0.0
  %3961 = vmatpush.msra.mxu0 0.0
  %3962 = vmatpush.msra.mxu0 0.0
  %3963 = vmatpush.msra.mxu0 0.0
  %3964 = vmatpush.msra.mxu0 0.0
  %3965 = vmatpush.msra.mxu0 0.0
  %3966 = vmatpush.msra.mxu0 0.0
  %3967 = vmatpush.msra.mxu0 %v3395
  %3968 = vmatmul.f32.gmra.mxu0 %v3410
  %v3969 = vpop.f32.mrf.mxu0
  %v3970 = vadd.f32 %v3950, %v3969
  %3971 = vdwg.mxu0
  %3972 = vmatpush.msra.mxu0 %v2901
  %3973 = vmatpush.msra.mxu0 %v2886
  %3974 = vmatpush.msra.mxu0 %v2871
  %3975 = vmatpush.msra.mxu0 %v2856
  %3976 = vmatpush.msra.mxu0 %v2841
  %3977 = vmatpush.msra.mxu0 %v2826
  %3978 = vmatpush.msra.mxu0 %v2811
  %3979 = vmatpush.msra.mxu0 %v2796
  %3980 = vmatpush.msra.mxu0 %v2781
  %3981 = vmatpush.msra.mxu0 %v2766
  %3982 = vmatpush.msra.mxu0 %v2751
  %3983 = vmatpush.msra.mxu0 %v2736
  %3984 = vmatpush.msra.mxu0 %v2721
  %3985 = vmatpush.msra.mxu0 %v2706
  %3986 = vmatpush.msra.mxu0 %v2691
  %3987 = vmatpush.msra.mxu0 %v2676
  %3988 = vmatmul.f32.gmra.mxu0 %v3404
  %v3989 = vpop.f32.mrf.mxu0
  %v3990 = vadd.f32 0.0, %v3989
  %3991 = vdwg.mxu0
  %3992 = vmatpush.msra.mxu0 %v3141
  %3993 = vmatpush.msra.mxu0 %v3126
  %3994 = vmatpush.msra.mxu0 %v3111
  %3995 = vmatpush.msra.mxu0 %v3096
  %3996 = vmatpush.msra.mxu0 %v3081
  %3997 = vmatpush.msra.mxu0 %v3066
  %3998 = vmatpush.msra.mxu0 %v3051
  %3999 = vmatpush.msra.mxu0 %v3036
  %4000 = vmatpush.msra.mxu0 %v3021
  %4001 = vmatpush.msra.mxu0 %v3006
  %4002 = vmatpush.msra.mxu0 %v2991
  %4003 = vmatpush.msra.mxu0 %v2976
  %4004 = vmatpush.msra.mxu0 %v2961
  %4005 = vmatpush.msra.mxu0 %v2946
  %4006 = vmatpush.msra.mxu0 %v2931
  %4007 = vmatpush.msra.mxu0 %v2916
  %4008 = vmatmul.f32.gmra.mxu0 %v3405
  %v4009 = vpop.f32.mrf.mxu0
  %v4010 = vadd.f32 %v3990, %v4009
  %4011 = vdwg.mxu0
  %4012 = vmatpush.msra.mxu0 %v3381
  %4013 = vmatpush.msra.mxu0 %v3366
  %4014 = vmatpush.msra.mxu0 %v3351
  %4015 = vmatpush.msra.mxu0 %v3336
  %4016 = vmatpush.msra.mxu0 %v3321
  %4017 = vmatpush.msra.mxu0 %v3306
  %4018 = vmatpush.msra.mxu0 %v3291
  %4019 = vmatpush.msra.mxu0 %v3276
  %4020 = vmatpush.msra.mxu0 %v3261
  %4021 = vmatpush.msra.mxu0 %v3246
  %4022 = vmatpush.msra.mxu0 %v3231
  %4023 = vmatpush.msra.mxu0 %v3216
  %4024 = vmatpush.msra.mxu0 %v3201
  %4025 = vmatpush.msra.mxu0 %v3186
  %4026 = vmatpush.msra.mxu0 %v3171
  %4027 = vmatpush.msra.mxu0 %v3156
  %4028 = vmatmul.f32.gmra.mxu0 %v3406
  %v4029 = vpop.f32.mrf.mxu0
  %v4030 = vadd.f32 %v4010, %v4029
  %4031 = vdwg.mxu0
  %4032 = vmatpush.msra.mxu0 0.0
  %4033 = vmatpush.msra.mxu0 0.0
  %4034 = vmatpush.msra.mxu0 0.0
  %4035 = vmatpush.msra.mxu0 0.0
  %4036 = vmatpush.msra.mxu0 0.0
  %4037 = vmatpush.msra.mxu0 0.0
  %4038 = vmatpush.msra.mxu0 0.0
  %4039 = vmatpush.msra.mxu0 0.0
  %4040 = vmatpush.msra.mxu0 0.0
  %4041 = vmatpush.msra.mxu0 0.0
  %4042 = vmatpush.msra.mxu0 0.0
  %4043 = vmatpush.msra.mxu0 0.0
  %4044 = vmatpush.msra.mxu0 0.0
  %4045 = vmatpush.msra.mxu0 0.0
  %4046 = vmatpush.msra.mxu0 0.0
  %4047 = vmatpush.msra.mxu0 %v3396
  %4048 = vmatmul.f32.gmra.mxu0 %v3410
  %v4049 = vpop.f32.mrf.mxu0
  %v4050 = vadd.f32 %v4030, %v4049
  %4051 = vdwg.mxu0
  %4052 = vmatpush.msra.mxu0 %v2902
  %4053 = vmatpush.msra.mxu0 %v2887
  %4054 = vmatpush.msra.mxu0 %v2872
  %4055 = vmatpush.msra.mxu0 %v2857
  %4056 = vmatpush.msra.mxu0 %v2842
  %4057 = vmatpush.msra.mxu0 %v2827
  %4058 = vmatpush.msra.mxu0 %v2812
  %4059 = vmatpush.msra.mxu0 %v2797
  %4060 = vmatpush.msra.mxu0 %v2782
  %4061 = vmatpush.msra.mxu0 %v2767
  %4062 = vmatpush.msra.mxu0 %v2752
  %4063 = vmatpush.msra.mxu0 %v2737
  %4064 = vmatpush.msra.mxu0 %v2722
  %4065 = vmatpush.msra.mxu0 %v2707
  %4066 = vmatpush.msra.mxu0 %v2692
  %4067 = vmatpush.msra.mxu0 %v2677
  %4068 = vmatmul.f32.gmra.mxu0 %v3404
  %v4069 = vpop.f32.mrf.mxu0
  %v4070 = vadd.f32 0.0, %v4069
  %4071 = vdwg.mxu0
  %4072 = vmatpush.msra.mxu0 %v3142
  %4073 = vmatpush.msra.mxu0 %v3127
  %4074 = vmatpush.msra.mxu0 %v3112
  %4075 = vmatpush.msra.mxu0 %v3097
  %4076 = vmatpush.msra.mxu0 %v3082
  %4077 = vmatpush.msra.mxu0 %v3067
  %4078 = vmatpush.msra.mxu0 %v3052
  %4079 = vmatpush.msra.mxu0 %v3037
  %4080 = vmatpush.msra.mxu0 %v3022
  %4081 = vmatpush.msra.mxu0 %v3007
  %4082 = vmatpush.msra.mxu0 %v2992
  %4083 = vmatpush.msra.mxu0 %v2977
  %4084 = vmatpush.msra.mxu0 %v2962
  %4085 = vmatpush.msra.mxu0 %v2947
  %4086 = vmatpush.msra.mxu0 %v2932
  %4087 = vmatpush.msra.mxu0 %v2917
  %4088 = vmatmul.f32.gmra.mxu0 %v3405
  %v4089 = vpop.f32.mrf.mxu0
  %v4090 = vadd.f32 %v4070, %v4089
  %4091 = vdwg.mxu0
  %4092 = vmatpush.msra.mxu0 %v3382
  %4093 = vmatpush.msra.mxu0 %v3367
  %4094 = vmatpush.msra.mxu0 %v3352
  %4095 = vmatpush.msra.mxu0 %v3337
  %4096 = vmatpush.msra.mxu0 %v3322
  %4097 = vmatpush.msra.mxu0 %v3307
  %4098 = vmatpush.msra.mxu0 %v3292
  %4099 = vmatpush.msra.mxu0 %v3277
  %4100 = vmatpush.msra.mxu0 %v3262
  %4101 = vmatpush.msra.mxu0 %v3247
  %4102 = vmatpush.msra.mxu0 %v3232
  %4103 = vmatpush.msra.mxu0 %v3217
  %4104 = vmatpush.msra.mxu0 %v3202
  %4105 = vmatpush.msra.mxu0 %v3187
  %4106 = vmatpush.msra.mxu0 %v3172
  %4107 = vmatpush.msra.mxu0 %v3157
  %4108 = vmatmul.f32.gmra.mxu0 %v3406
  %v4109 = vpop.f32.mrf.mxu0
  %v4110 = vadd.f32 %v4090, %v4109
  %4111 = vdwg.mxu0
  %4112 = vmatpush.msra.mxu0 0.0
  %4113 = vmatpush.msra.mxu0 0.0
  %4114 = vmatpush.msra.mxu0 0.0
  %4115 = vmatpush.msra.mxu0 0.0
  %4116 = vmatpush.msra.mxu0 0.0
  %4117 = vmatpush.msra.mxu0 0.0
  %4118 = vmatpush.msra.mxu0 0.0
  %4119 = vmatpush.msra.mxu0 0.0
  %4120 = vmatpush.msra.mxu0 0.0
  %4121 = vmatpush.msra.mxu0 0.0
  %4122 = vmatpush.msra.mxu0 0.0
  %4123 = vmatpush.msra.mxu0 0.0
  %4124 = vmatpush.msra.mxu0 0.0
  %4125 = vmatpush.msra.mxu0 0.0
  %4126 = vmatpush.msra.mxu0 0.0
  %4127 = vmatpush.msra.mxu0 %v3397
  %4128 = vmatmul.f32.gmra.mxu0 %v3410
  %v4129 = vpop.f32.mrf.mxu0
  %v4130 = vadd.f32 %v4110, %v4129
  %4131 = vdwg.mxu0
  %4132 = vmatpush.msra.mxu0 %v2903
  %4133 = vmatpush.msra.mxu0 %v2888
  %4134 = vmatpush.msra.mxu0 %v2873
  %4135 = vmatpush.msra.mxu0 %v2858
  %4136 = vmatpush.msra.mxu0 %v2843
  %4137 = vmatpush.msra.mxu0 %v2828
  %4138 = vmatpush.msra.mxu0 %v2813
  %4139 = vmatpush.msra.mxu0 %v2798
  %4140 = vmatpush.msra.mxu0 %v2783
  %4141 = vmatpush.msra.mxu0 %v2768
  %4142 = vmatpush.msra.mxu0 %v2753
  %4143 = vmatpush.msra.mxu0 %v2738
  %4144 = vmatpush.msra.mxu0 %v2723
  %4145 = vmatpush.msra.mxu0 %v2708
  %4146 = vmatpush.msra.mxu0 %v2693
  %4147 = vmatpush.msra.mxu0 %v2678
  %4148 = vmatmul.f32.gmra.mxu0 %v3404
  %v4149 = vpop.f32.mrf.mxu0
  %v4150 = vadd.f32 0.0, %v4149
  %4151 = vdwg.mxu0
  %4152 = vmatpush.msra.mxu0 %v3143
  %4153 = vmatpush.msra.mxu0 %v3128
  %4154 = vmatpush.msra.mxu0 %v3113
  %4155 = vmatpush.msra.mxu0 %v3098
  %4156 = vmatpush.msra.mxu0 %v3083
  %4157 = vmatpush.msra.mxu0 %v3068
  %4158 = vmatpush.msra.mxu0 %v3053
  %4159 = vmatpush.msra.mxu0 %v3038
  %4160 = vmatpush.msra.mxu0 %v3023
  %4161 = vmatpush.msra.mxu0 %v3008
  %4162 = vmatpush.msra.mxu0 %v2993
  %4163 = vmatpush.msra.mxu0 %v2978
  %4164 = vmatpush.msra.mxu0 %v2963
  %4165 = vmatpush.msra.mxu0 %v2948
  %4166 = vmatpush.msra.mxu0 %v2933
  %4167 = vmatpush.msra.mxu0 %v2918
  %4168 = vmatmul.f32.gmra.mxu0 %v3405
  %v4169 = vpop.f32.mrf.mxu0
  %v4170 = vadd.f32 %v4150, %v4169
  %4171 = vdwg.mxu0
  %4172 = vmatpush.msra.mxu0 %v3383
  %4173 = vmatpush.msra.mxu0 %v3368
  %4174 = vmatpush.msra.mxu0 %v3353
  %4175 = vmatpush.msra.mxu0 %v3338
  %4176 = vmatpush.msra.mxu0 %v3323
  %4177 = vmatpush.msra.mxu0 %v3308
  %4178 = vmatpush.msra.mxu0 %v3293
  %4179 = vmatpush.msra.mxu0 %v3278
  %4180 = vmatpush.msra.mxu0 %v3263
  %4181 = vmatpush.msra.mxu0 %v3248
  %4182 = vmatpush.msra.mxu0 %v3233
  %4183 = vmatpush.msra.mxu0 %v3218
  %4184 = vmatpush.msra.mxu0 %v3203
  %4185 = vmatpush.msra.mxu0 %v3188
  %4186 = vmatpush.msra.mxu0 %v3173
  %4187 = vmatpush.msra.mxu0 %v3158
  %4188 = vmatmul.f32.gmra.mxu0 %v3406
  %v4189 = vpop.f32.mrf.mxu0
  %v4190 = vadd.f32 %v4170, %v4189
  %4191 = vdwg.mxu0
  %4192 = vmatpush.msra.mxu0 0.0
  %4193 = vmatpush.msra.mxu0 0.0
  %4194 = vmatpush.msra.mxu0 0.0
  %4195 = vmatpush.msra.mxu0 0.0
  %4196 = vmatpush.msra.mxu0 0.0
  %4197 = vmatpush.msra.mxu0 0.0
  %4198 = vmatpush.msra.mxu0 0.0
  %4199 = vmatpush.msra.mxu0 0.0
  %4200 = vmatpush.msra.mxu0 0.0
  %4201 = vmatpush.msra.mxu0 0.0
  %4202 = vmatpush.msra.mxu0 0.0
  %4203 = vmatpush.msra.mxu0 0.0
  %4204 = vmatpush.msra.mxu0 0.0
  %4205 = vmatpush.msra.mxu0 0.0
  %4206 = vmatpush.msra.mxu0 0.0
  %4207 = vmatpush.msra.mxu0 %v3398
  %4208 = vmatmul.f32.gmra.mxu0 %v3410
  %v4209 = vpop.f32.mrf.mxu0
  %v4210 = vadd.f32 %v4190, %v4209
  %4211 = vdwg.mxu0
  %4212 = vmatpush.msra.mxu0 %v2904
  %4213 = vmatpush.msra.mxu0 %v2889
  %4214 = vmatpush.msra.mxu0 %v2874
  %4215 = vmatpush.msra.mxu0 %v2859
  %4216 = vmatpush.msra.mxu0 %v2844
  %4217 = vmatpush.msra.mxu0 %v2829
  %4218 = vmatpush.msra.mxu0 %v2814
  %4219 = vmatpush.msra.mxu0 %v2799
  %4220 = vmatpush.msra.mxu0 %v2784
  %4221 = vmatpush.msra.mxu0 %v2769
  %4222 = vmatpush.msra.mxu0 %v2754
  %4223 = vmatpush.msra.mxu0 %v2739
  %4224 = vmatpush.msra.mxu0 %v2724
  %4225 = vmatpush.msra.mxu0 %v2709
  %4226 = vmatpush.msra.mxu0 %v2694
  %4227 = vmatpush.msra.mxu0 %v2679
  %4228 = vmatmul.f32.gmra.mxu0 %v3404
  %v4229 = vpop.f32.mrf.mxu0
  %v4230 = vadd.f32 0.0, %v4229
  %4231 = vdwg.mxu0
  %4232 = vmatpush.msra.mxu0 %v3144
  %4233 = vmatpush.msra.mxu0 %v3129
  %4234 = vmatpush.msra.mxu0 %v3114
  %4235 = vmatpush.msra.mxu0 %v3099
  %4236 = vmatpush.msra.mxu0 %v3084
  %4237 = vmatpush.msra.mxu0 %v3069
  %4238 = vmatpush.msra.mxu0 %v3054
  %4239 = vmatpush.msra.mxu0 %v3039
  %4240 = vmatpush.msra.mxu0 %v3024
  %4241 = vmatpush.msra.mxu0 %v3009
  %4242 = vmatpush.msra.mxu0 %v2994
  %4243 = vmatpush.msra.mxu0 %v2979
  %4244 = vmatpush.msra.mxu0 %v2964
  %4245 = vmatpush.msra.mxu0 %v2949
  %4246 = vmatpush.msra.mxu0 %v2934
  %4247 = vmatpush.msra.mxu0 %v2919
  %4248 = vmatmul.f32.gmra.mxu0 %v3405
  %v4249 = vpop.f32.mrf.mxu0
  %v4250 = vadd.f32 %v4230, %v4249
  %4251 = vdwg.mxu0
  %4252 = vmatpush.msra.mxu0 %v3384
  %4253 = vmatpush.msra.mxu0 %v3369
  %4254 = vmatpush.msra.mxu0 %v3354
  %4255 = vmatpush.msra.mxu0 %v3339
  %4256 = vmatpush.msra.mxu0 %v3324
  %4257 = vmatpush.msra.mxu0 %v3309
  %4258 = vmatpush.msra.mxu0 %v3294
  %4259 = vmatpush.msra.mxu0 %v3279
  %4260 = vmatpush.msra.mxu0 %v3264
  %4261 = vmatpush.msra.mxu0 %v3249
  %4262 = vmatpush.msra.mxu0 %v3234
  %4263 = vmatpush.msra.mxu0 %v3219
  %4264 = vmatpush.msra.mxu0 %v3204
  %4265 = vmatpush.msra.mxu0 %v3189
  %4266 = vmatpush.msra.mxu0 %v3174
  %4267 = vmatpush.msra.mxu0 %v3159
  %4268 = vmatmul.f32.gmra.mxu0 %v3406
  %v4269 = vpop.f32.mrf.mxu0
  %v4270 = vadd.f32 %v4250, %v4269
  %4271 = vdwg.mxu0
  %4272 = vmatpush.msra.mxu0 0.0
  %4273 = vmatpush.msra.mxu0 0.0
  %4274 = vmatpush.msra.mxu0 0.0
  %4275 = vmatpush.msra.mxu0 0.0
  %4276 = vmatpush.msra.mxu0 0.0
  %4277 = vmatpush.msra.mxu0 0.0
  %4278 = vmatpush.msra.mxu0 0.0
  %4279 = vmatpush.msra.mxu0 0.0
  %4280 = vmatpush.msra.mxu0 0.0
  %4281 = vmatpush.msra.mxu0 0.0
  %4282 = vmatpush.msra.mxu0 0.0
  %4283 = vmatpush.msra.mxu0 0.0
  %4284 = vmatpush.msra.mxu0 0.0
  %4285 = vmatpush.msra.mxu0 0.0
  %4286 = vmatpush.msra.mxu0 0.0
  %4287 = vmatpush.msra.mxu0 %v3399
  %4288 = vmatmul.f32.gmra.mxu0 %v3410
  %v4289 = vpop.f32.mrf.mxu0
  %v4290 = vadd.f32 %v4270, %v4289
  %4291 = vdwg.mxu0
  %4292 = vmatpush.msra.mxu0 %v2905
  %4293 = vmatpush.msra.mxu0 %v2890
  %4294 = vmatpush.msra.mxu0 %v2875
  %4295 = vmatpush.msra.mxu0 %v2860
  %4296 = vmatpush.msra.mxu0 %v2845
  %4297 = vmatpush.msra.mxu0 %v2830
  %4298 = vmatpush.msra.mxu0 %v2815
  %4299 = vmatpush.msra.mxu0 %v2800
  %4300 = vmatpush.msra.mxu0 %v2785
  %4301 = vmatpush.msra.mxu0 %v2770
  %4302 = vmatpush.msra.mxu0 %v2755
  %4303 = vmatpush.msra.mxu0 %v2740
  %4304 = vmatpush.msra.mxu0 %v2725
  %4305 = vmatpush.msra.mxu0 %v2710
  %4306 = vmatpush.msra.mxu0 %v2695
  %4307 = vmatpush.msra.mxu0 %v2680
  %4308 = vmatmul.f32.gmra.mxu0 %v3404
  %v4309 = vpop.f32.mrf.mxu0
  %v4310 = vadd.f32 0.0, %v4309
  %4311 = vdwg.mxu0
  %4312 = vmatpush.msra.mxu0 %v3145
  %4313 = vmatpush.msra.mxu0 %v3130
  %4314 = vmatpush.msra.mxu0 %v3115
  %4315 = vmatpush.msra.mxu0 %v3100
  %4316 = vmatpush.msra.mxu0 %v3085
  %4317 = vmatpush.msra.mxu0 %v3070
  %4318 = vmatpush.msra.mxu0 %v3055
  %4319 = vmatpush.msra.mxu0 %v3040
  %4320 = vmatpush.msra.mxu0 %v3025
  %4321 = vmatpush.msra.mxu0 %v3010
  %4322 = vmatpush.msra.mxu0 %v2995
  %4323 = vmatpush.msra.mxu0 %v2980
  %4324 = vmatpush.msra.mxu0 %v2965
  %4325 = vmatpush.msra.mxu0 %v2950
  %4326 = vmatpush.msra.mxu0 %v2935
  %4327 = vmatpush.msra.mxu0 %v2920
  %4328 = vmatmul.f32.gmra.mxu0 %v3405
  %v4329 = vpop.f32.mrf.mxu0
  %v4330 = vadd.f32 %v4310, %v4329
  %4331 = vdwg.mxu0
  %4332 = vmatpush.msra.mxu0 %v3385
  %4333 = vmatpush.msra.mxu0 %v3370
  %4334 = vmatpush.msra.mxu0 %v3355
  %4335 = vmatpush.msra.mxu0 %v3340
  %4336 = vmatpush.msra.mxu0 %v3325
  %4337 = vmatpush.msra.mxu0 %v3310
  %4338 = vmatpush.msra.mxu0 %v3295
  %4339 = vmatpush.msra.mxu0 %v3280
  %4340 = vmatpush.msra.mxu0 %v3265
  %4341 = vmatpush.msra.mxu0 %v3250
  %4342 = vmatpush.msra.mxu0 %v3235
  %4343 = vmatpush.msra.mxu0 %v3220
  %4344 = vmatpush.msra.mxu0 %v3205
  %4345 = vmatpush.msra.mxu0 %v3190
  %4346 = vmatpush.msra.mxu0 %v3175
  %4347 = vmatpush.msra.mxu0 %v3160
  %4348 = vmatmul.f32.gmra.mxu0 %v3406
  %v4349 = vpop.f32.mrf.mxu0
  %v4350 = vadd.f32 %v4330, %v4349
  %4351 = vdwg.mxu0
  %4352 = vmatpush.msra.mxu0 0.0
  %4353 = vmatpush.msra.mxu0 0.0
  %4354 = vmatpush.msra.mxu0 0.0
  %4355 = vmatpush.msra.mxu0 0.0
  %4356 = vmatpush.msra.mxu0 0.0
  %4357 = vmatpush.msra.mxu0 0.0
  %4358 = vmatpush.msra.mxu0 0.0
  %4359 = vmatpush.msra.mxu0 0.0
  %4360 = vmatpush.msra.mxu0 0.0
  %4361 = vmatpush.msra.mxu0 0.0
  %4362 = vmatpush.msra.mxu0 0.0
  %4363 = vmatpush.msra.mxu0 0.0
  %4364 = vmatpush.msra.mxu0 0.0
  %4365 = vmatpush.msra.mxu0 0.0
  %4366 = vmatpush.msra.mxu0 0.0
  %4367 = vmatpush.msra.mxu0 %v3400
  %4368 = vmatmul.f32.gmra.mxu0 %v3410
  %v4369 = vpop.f32.mrf.mxu0
  %v4370 = vadd.f32 %v4350, %v4369
  %4371 = vdwg.mxu0
  %4372 = vmatpush.msra.mxu0 %v2906
  %4373 = vmatpush.msra.mxu0 %v2891
  %4374 = vmatpush.msra.mxu0 %v2876
  %4375 = vmatpush.msra.mxu0 %v2861
  %4376 = vmatpush.msra.mxu0 %v2846
  %4377 = vmatpush.msra.mxu0 %v2831
  %4378 = vmatpush.msra.mxu0 %v2816
  %4379 = vmatpush.msra.mxu0 %v2801
  %4380 = vmatpush.msra.mxu0 %v2786
  %4381 = vmatpush.msra.mxu0 %v2771
  %4382 = vmatpush.msra.mxu0 %v2756
  %4383 = vmatpush.msra.mxu0 %v2741
  %4384 = vmatpush.msra.mxu0 %v2726
  %4385 = vmatpush.msra.mxu0 %v2711
  %4386 = vmatpush.msra.mxu0 %v2696
  %4387 = vmatpush.msra.mxu0 %v2681
  %4388 = vmatmul.f32.gmra.mxu0 %v3404
  %v4389 = vpop.f32.mrf.mxu0
  %v4390 = vadd.f32 0.0, %v4389
  %4391 = vdwg.mxu0
  %4392 = vmatpush.msra.mxu0 %v3146
  %4393 = vmatpush.msra.mxu0 %v3131
  %4394 = vmatpush.msra.mxu0 %v3116
  %4395 = vmatpush.msra.mxu0 %v3101
  %4396 = vmatpush.msra.mxu0 %v3086
  %4397 = vmatpush.msra.mxu0 %v3071
  %4398 = vmatpush.msra.mxu0 %v3056
  %4399 = vmatpush.msra.mxu0 %v3041
  %4400 = vmatpush.msra.mxu0 %v3026
  %4401 = vmatpush.msra.mxu0 %v3011
  %4402 = vmatpush.msra.mxu0 %v2996
  %4403 = vmatpush.msra.mxu0 %v2981
  %4404 = vmatpush.msra.mxu0 %v2966
  %4405 = vmatpush.msra.mxu0 %v2951
  %4406 = vmatpush.msra.mxu0 %v2936
  %4407 = vmatpush.msra.mxu0 %v2921
  %4408 = vmatmul.f32.gmra.mxu0 %v3405
  %v4409 = vpop.f32.mrf.mxu0
  %v4410 = vadd.f32 %v4390, %v4409
  %4411 = vdwg.mxu0
  %4412 = vmatpush.msra.mxu0 %v3386
  %4413 = vmatpush.msra.mxu0 %v3371
  %4414 = vmatpush.msra.mxu0 %v3356
  %4415 = vmatpush.msra.mxu0 %v3341
  %4416 = vmatpush.msra.mxu0 %v3326
  %4417 = vmatpush.msra.mxu0 %v3311
  %4418 = vmatpush.msra.mxu0 %v3296
  %4419 = vmatpush.msra.mxu0 %v3281
  %4420 = vmatpush.msra.mxu0 %v3266
  %4421 = vmatpush.msra.mxu0 %v3251
  %4422 = vmatpush.msra.mxu0 %v3236
  %4423 = vmatpush.msra.mxu0 %v3221
  %4424 = vmatpush.msra.mxu0 %v3206
  %4425 = vmatpush.msra.mxu0 %v3191
  %4426 = vmatpush.msra.mxu0 %v3176
  %4427 = vmatpush.msra.mxu0 %v3161
  %4428 = vmatmul.f32.gmra.mxu0 %v3406
  %v4429 = vpop.f32.mrf.mxu0
  %v4430 = vadd.f32 %v4410, %v4429
  %4431 = vdwg.mxu0
  %4432 = vmatpush.msra.mxu0 0.0
  %4433 = vmatpush.msra.mxu0 0.0
  %4434 = vmatpush.msra.mxu0 0.0
  %4435 = vmatpush.msra.mxu0 0.0
  %4436 = vmatpush.msra.mxu0 0.0
  %4437 = vmatpush.msra.mxu0 0.0
  %4438 = vmatpush.msra.mxu0 0.0
  %4439 = vmatpush.msra.mxu0 0.0
  %4440 = vmatpush.msra.mxu0 0.0
  %4441 = vmatpush.msra.mxu0 0.0
  %4442 = vmatpush.msra.mxu0 0.0
  %4443 = vmatpush.msra.mxu0 0.0
  %4444 = vmatpush.msra.mxu0 0.0
  %4445 = vmatpush.msra.mxu0 0.0
  %4446 = vmatpush.msra.mxu0 0.0
  %4447 = vmatpush.msra.mxu0 %v3401
  %4448 = vmatmul.f32.gmra.mxu0 %v3410
  %v4449 = vpop.f32.mrf.mxu0
  %v4450 = vadd.f32 %v4430, %v4449
  %4451 = vdwg.mxu0
  %4452 = vmatpush.msra.mxu0 %v2907
  %4453 = vmatpush.msra.mxu0 %v2892
  %4454 = vmatpush.msra.mxu0 %v2877
  %4455 = vmatpush.msra.mxu0 %v2862
  %4456 = vmatpush.msra.mxu0 %v2847
  %4457 = vmatpush.msra.mxu0 %v2832
  %4458 = vmatpush.msra.mxu0 %v2817
  %4459 = vmatpush.msra.mxu0 %v2802
  %4460 = vmatpush.msra.mxu0 %v2787
  %4461 = vmatpush.msra.mxu0 %v2772
  %4462 = vmatpush.msra.mxu0 %v2757
  %4463 = vmatpush.msra.mxu0 %v2742
  %4464 = vmatpush.msra.mxu0 %v2727
  %4465 = vmatpush.msra.mxu0 %v2712
  %4466 = vmatpush.msra.mxu0 %v2697
  %4467 = vmatpush.msra.mxu0 %v2682
  %4468 = vmatmul.f32.gmra.mxu0 %v3404
  %v4469 = vpop.f32.mrf.mxu0
  %v4470 = vadd.f32 0.0, %v4469
  %4471 = vdwg.mxu0
  %4472 = vmatpush.msra.mxu0 %v3147
  %4473 = vmatpush.msra.mxu0 %v3132
  %4474 = vmatpush.msra.mxu0 %v3117
  %4475 = vmatpush.msra.mxu0 %v3102
  %4476 = vmatpush.msra.mxu0 %v3087
  %4477 = vmatpush.msra.mxu0 %v3072
  %4478 = vmatpush.msra.mxu0 %v3057
  %4479 = vmatpush.msra.mxu0 %v3042
  %4480 = vmatpush.msra.mxu0 %v3027
  %4481 = vmatpush.msra.mxu0 %v3012
  %4482 = vmatpush.msra.mxu0 %v2997
  %4483 = vmatpush.msra.mxu0 %v2982
  %4484 = vmatpush.msra.mxu0 %v2967
  %4485 = vmatpush.msra.mxu0 %v2952
  %4486 = vmatpush.msra.mxu0 %v2937
  %4487 = vmatpush.msra.mxu0 %v2922
  %4488 = vmatmul.f32.gmra.mxu0 %v3405
  %v4489 = vpop.f32.mrf.mxu0
  %v4490 = vadd.f32 %v4470, %v4489
  %4491 = vdwg.mxu0
  %4492 = vmatpush.msra.mxu0 %v3387
  %4493 = vmatpush.msra.mxu0 %v3372
  %4494 = vmatpush.msra.mxu0 %v3357
  %4495 = vmatpush.msra.mxu0 %v3342
  %4496 = vmatpush.msra.mxu0 %v3327
  %4497 = vmatpush.msra.mxu0 %v3312
  %4498 = vmatpush.msra.mxu0 %v3297
  %4499 = vmatpush.msra.mxu0 %v3282
  %4500 = vmatpush.msra.mxu0 %v3267
  %4501 = vmatpush.msra.mxu0 %v3252
  %4502 = vmatpush.msra.mxu0 %v3237
  %4503 = vmatpush.msra.mxu0 %v3222
  %4504 = vmatpush.msra.mxu0 %v3207
  %4505 = vmatpush.msra.mxu0 %v3192
  %4506 = vmatpush.msra.mxu0 %v3177
  %4507 = vmatpush.msra.mxu0 %v3162
  %4508 = vmatmul.f32.gmra.mxu0 %v3406
  %v4509 = vpop.f32.mrf.mxu0
  %v4510 = vadd.f32 %v4490, %v4509
  %4511 = vdwg.mxu0
  %4512 = vmatpush.msra.mxu0 0.0
  %4513 = vmatpush.msra.mxu0 0.0
  %4514 = vmatpush.msra.mxu0 0.0
  %4515 = vmatpush.msra.mxu0 0.0
  %4516 = vmatpush.msra.mxu0 0.0
  %4517 = vmatpush.msra.mxu0 0.0
  %4518 = vmatpush.msra.mxu0 0.0
  %4519 = vmatpush.msra.mxu0 0.0
  %4520 = vmatpush.msra.mxu0 0.0
  %4521 = vmatpush.msra.mxu0 0.0
  %4522 = vmatpush.msra.mxu0 0.0
  %4523 = vmatpush.msra.mxu0 0.0
  %4524 = vmatpush.msra.mxu0 0.0
  %4525 = vmatpush.msra.mxu0 0.0
  %4526 = vmatpush.msra.mxu0 0.0
  %4527 = vmatpush.msra.mxu0 %v3402
  %4528 = vmatmul.f32.gmra.mxu0 %v3410
  %v4529 = vpop.f32.mrf.mxu0
  %v4530 = vadd.f32 %v4510, %v4529
  %4531 = vdwg.mxu0
  %4532 = vmatpush.msra.mxu0 %v2908
  %4533 = vmatpush.msra.mxu0 %v2893
  %4534 = vmatpush.msra.mxu0 %v2878
  %4535 = vmatpush.msra.mxu0 %v2863
  %4536 = vmatpush.msra.mxu0 %v2848
  %4537 = vmatpush.msra.mxu0 %v2833
  %4538 = vmatpush.msra.mxu0 %v2818
  %4539 = vmatpush.msra.mxu0 %v2803
  %4540 = vmatpush.msra.mxu0 %v2788
  %4541 = vmatpush.msra.mxu0 %v2773
  %4542 = vmatpush.msra.mxu0 %v2758
  %4543 = vmatpush.msra.mxu0 %v2743
  %4544 = vmatpush.msra.mxu0 %v2728
  %4545 = vmatpush.msra.mxu0 %v2713
  %4546 = vmatpush.msra.mxu0 %v2698
  %4547 = vmatpush.msra.mxu0 %v2683
  %4548 = vmatmul.f32.gmra.mxu0 %v3404
  %v4549 = vpop.f32.mrf.mxu0
  %v4550 = vadd.f32 0.0, %v4549
  %4551 = vdwg.mxu0
  %4552 = vmatpush.msra.mxu0 %v3148
  %4553 = vmatpush.msra.mxu0 %v3133
  %4554 = vmatpush.msra.mxu0 %v3118
  %4555 = vmatpush.msra.mxu0 %v3103
  %4556 = vmatpush.msra.mxu0 %v3088
  %4557 = vmatpush.msra.mxu0 %v3073
  %4558 = vmatpush.msra.mxu0 %v3058
  %4559 = vmatpush.msra.mxu0 %v3043
  %4560 = vmatpush.msra.mxu0 %v3028
  %4561 = vmatpush.msra.mxu0 %v3013
  %4562 = vmatpush.msra.mxu0 %v2998
  %4563 = vmatpush.msra.mxu0 %v2983
  %4564 = vmatpush.msra.mxu0 %v2968
  %4565 = vmatpush.msra.mxu0 %v2953
  %4566 = vmatpush.msra.mxu0 %v2938
  %4567 = vmatpush.msra.mxu0 %v2923
  %4568 = vmatmul.f32.gmra.mxu0 %v3405
  %v4569 = vpop.f32.mrf.mxu0
  %v4570 = vadd.f32 %v4550, %v4569
  %4571 = vdwg.mxu0
  %4572 = vmatpush.msra.mxu0 %v3388
  %4573 = vmatpush.msra.mxu0 %v3373
  %4574 = vmatpush.msra.mxu0 %v3358
  %4575 = vmatpush.msra.mxu0 %v3343
  %4576 = vmatpush.msra.mxu0 %v3328
  %4577 = vmatpush.msra.mxu0 %v3313
  %4578 = vmatpush.msra.mxu0 %v3298
  %4579 = vmatpush.msra.mxu0 %v3283
  %4580 = vmatpush.msra.mxu0 %v3268
  %4581 = vmatpush.msra.mxu0 %v3253
  %4582 = vmatpush.msra.mxu0 %v3238
  %4583 = vmatpush.msra.mxu0 %v3223
  %4584 = vmatpush.msra.mxu0 %v3208
  %4585 = vmatpush.msra.mxu0 %v3193
  %4586 = vmatpush.msra.mxu0 %v3178
  %4587 = vmatpush.msra.mxu0 %v3163
  %4588 = vmatmul.f32.gmra.mxu0 %v3406
  %v4589 = vpop.f32.mrf.mxu0
  %v4590 = vadd.f32 %v4570, %v4589
  %4591 = vdwg.mxu0
  %4592 = vmatpush.msra.mxu0 0.0
  %4593 = vmatpush.msra.mxu0 0.0
  %4594 = vmatpush.msra.mxu0 0.0
  %4595 = vmatpush.msra.mxu0 0.0
  %4596 = vmatpush.msra.mxu0 0.0
  %4597 = vmatpush.msra.mxu0 0.0
  %4598 = vmatpush.msra.mxu0 0.0
  %4599 = vmatpush.msra.mxu0 0.0
  %4600 = vmatpush.msra.mxu0 0.0
  %4601 = vmatpush.msra.mxu0 0.0
  %4602 = vmatpush.msra.mxu0 0.0
  %4603 = vmatpush.msra.mxu0 0.0
  %4604 = vmatpush.msra.mxu0 0.0
  %4605 = vmatpush.msra.mxu0 0.0
  %4606 = vmatpush.msra.mxu0 0.0
  %4607 = vmatpush.msra.mxu0 %v3403
  %4608 = vmatmul.f32.gmra.mxu0 %v3410
  %v4609 = vpop.f32.mrf.mxu0
  %v4610 = vadd.f32 %v4590, %v4609
  %4611 = vdwg.mxu0
  %v4612 = vpack.c.bf16 %v3490, %v3490
  %v4613 = vpack.c.bf16 %v3570, %v3570
  %v4614 = vpack.c.bf16 %v3650, %v3650
  %v4615 = vpack.c.bf16 %v3730, %v3730
  %v4616 = vpack.c.bf16 %v3810, %v3810
  %v4617 = vpack.c.bf16 %v3890, %v3890
  %v4618 = vpack.c.bf16 %v3970, %v3970
  %v4619 = vpack.c.bf16 %v4050, %v4050
  %v4620 = vpack.c.bf16 %v4130, %v4130
  %v4621 = vpack.c.bf16 %v4210, %v4210
  %v4622 = vpack.c.bf16 %v4290, %v4290
  %v4623 = vpack.c.bf16 %v4370, %v4370
  %v4624 = vpack.c.bf16 %v4450, %v4450
  %v4625 = vpack.c.bf16 %v4530, %v4530
  %v4626 = vpack.c.bf16 %v4610, %v4610
  %v4627 = vld [vmem:[%s4] sm:$0xf]
  %v4628 = vld [vmem:[%s4 + $0x4] sm:$0xf]
  %v4629 = vld [vmem:[%s4 + $0x8] sm:$0xf]
  %v4630 = vld [vmem:[%s4 + $0xc] sm:$0xf]
  %v4631 = vld [vmem:[%s4 + $0x10] sm:$0xf]
  %v4632 = vld [vmem:[%s4 + $0x14] sm:$0xf]
  %v4633 = vld [vmem:[%s4 + $0x18] sm:$0xf]
  %v4634 = vld [vmem:[%s4 + $0x1c] sm:$0xf]
  %v4635 = vld [vmem:[%s4 + $0x20] sm:$0xf]
  %v4636 = vld [vmem:[%s4 + $0x24] sm:$0xf]
  %v4637 = vld [vmem:[%s4 + $0x28] sm:$0xf]
  %v4638 = vld [vmem:[%s4 + $0x2c] sm:$0xf]
  %v4639 = vld [vmem:[%s4 + $0x30] sm:$0xf]
  %v4640 = vld [vmem:[%s4 + $0x34] sm:$0xf]
  %v4641 = vld [vmem:[%s4 + $0x38] sm:$0xf]
  %v4642 = vld [vmem:[%s4 + $0x3c] sm:$0xf]
  %v4643 = vld [vmem:[%s4 + $0x40] sm:$0xf]
  %v4644 = vld [vmem:[%s4 + $0x44] sm:$0xf]
  %v4645 = vld [vmem:[%s4 + $0x48] sm:$0xf]
  %v4646 = vld [vmem:[%s4 + $0x4c] sm:$0xf]
  %v4647 = vld [vmem:[%s4 + $0x50] sm:$0xf]
  %v4648 = vld [vmem:[%s4 + $0x54] sm:$0xf]
  %v4649 = vld [vmem:[%s4 + $0x58] sm:$0xf]
  %v4650 = vld [vmem:[%s4 + $0x5c] sm:$0xf]
  %v4651 = vld [vmem:[%s4 + $0x60] sm:$0xf]
  %v4652 = vld [vmem:[%s4 + $0x64] sm:$0xf]
  %v4653 = vld [vmem:[%s4 + $0x68] sm:$0xf]
  %v4654 = vld [vmem:[%s4 + $0x6c] sm:$0xf]
  %v4655 = vld [vmem:[%s4 + $0x70] sm:$0xf]
  %v4656 = vld [vmem:[%s4 + $0x74] sm:$0xf]
  %v4657 = vld [vmem:[%s4 + $0x78] sm:$0xf]
  %v4658 = vld [vmem:[%s4 + $0x7c] sm:$0xf]
  %v4659 = vld [vmem:[%s4 + $0x80] sm:$0xf]
  %v4660 = vld [vmem:[%s4 + $0x84] sm:$0xf]
  %v4661 = vld [vmem:[%s4 + $0x88] sm:$0xf]
  %v4662 = vld [vmem:[%s4 + $0x8c] sm:$0xf]
  %v4663 = vld [vmem:[%s4 + $0x90] sm:$0xf]
  %v4664 = vld [vmem:[%s4 + $0x94] sm:$0xf]
  %v4665 = vld [vmem:[%s4 + $0x98] sm:$0xf]
  %v4666 = vld [vmem:[%s4 + $0x9c] sm:$0xf]
  %v4667 = vld [vmem:[%s4 + $0xa0] sm:$0xf]
  %v4668 = vld [vmem:[%s4 + $0xa4] sm:$0xf]
  %v4669 = vld [vmem:[%s4 + $0xa8] sm:$0xf]
  %v4670 = vld [vmem:[%s4 + $0xac] sm:$0xf]
  %v4671 = vld [vmem:[%s4 + $0xb0] sm:$0xf]
  %v4672 = vld [vmem:[%s4 + $0xb4] sm:$0xf]
  %v4673 = vld [vmem:[%s4 + $0xb8] sm:$0xf]
  %v4674 = vld [vmem:[%s4 + $0xbc] sm:$0xf]
  %v4675 = vld [vmem:[%s4 + $0xc0] sm:$0xf]
  %v4676 = vld [vmem:[%s4 + $0xc4] sm:$0xf]
  %v4677 = vld [vmem:[%s4 + $0xc8] sm:$0xf]
  %v4678 = vld [vmem:[%s4 + $0xcc] sm:$0xf]
  %v4679 = vld [vmem:[%s4 + $0xd0] sm:$0xf]
  %v4680 = vld [vmem:[%s4 + $0xd4] sm:$0xf]
  %v4681 = vld [vmem:[%s4 + $0xd8] sm:$0xf]
  %v4682 = vld [vmem:[%s4 + $0xdc] sm:$0xf]
  %v4683 = vld [vmem:[%s4 + $0xe0] sm:$0xf]
  %v4684 = vld [vmem:[%s4 + $0xe4] sm:$0xf]
  %v4685 = vld [vmem:[%s4 + $0xe8] sm:$0xf]
  %v4686 = vld [vmem:[%s4 + $0xec] sm:$0xf]
  %v4687 = vld [vmem:[%s4 + $0xf0] sm:$0xf]
  %v4688 = vld [vmem:[%s4 + $0xf4] sm:$0xf]
  %v4689 = vld [vmem:[%s4 + $0xf8] sm:$0xf]
  %v4690 = vld [vmem:[%s4 + $0xfc] sm:$0xf]
  %v4691 = vld [vmem:[%s4 + $0x100] sm:$0xf]
  %v4692 = vld [vmem:[%s4 + $0x104] sm:$0xf]
  %v4693 = vld [vmem:[%s4 + $0x108] sm:$0xf]
  %v4694 = vld [vmem:[%s4 + $0x10c] sm:$0xf]
  %v4695 = vld [vmem:[%s4 + $0x110] sm:$0xf]
  %v4696 = vld [vmem:[%s4 + $0x114] sm:$0xf]
  %v4697 = vld [vmem:[%s4 + $0x118] sm:$0xf]
  %v4698 = vld [vmem:[%s4 + $0x11c] sm:$0xf]
  %v4699 = vld [vmem:[%s4 + $0x120] sm:$0xf]
  %v4700 = vld [vmem:[%s4 + $0x124] sm:$0xf]
  %v4701 = vld [vmem:[%s4 + $0x128] sm:$0xf]
  %v4702 = vld [vmem:[%s4 + $0x12c] sm:$0xf]
  %v4703 = vld [vmem:[%s4 + $0x130] sm:$0xf]
  %v4704 = vld [vmem:[%s4 + $0x134] sm:$0xf]
  %v4705 = vld [vmem:[%s4 + $0x138] sm:$0xf]
  %v4706 = vld [vmem:[%s4 + $0x13c] sm:$0xf]
  %v4707 = vld [vmem:[%s4 + $0x140] sm:$0xf]
  %v4708 = vld [vmem:[%s4 + $0x144] sm:$0xf]
  %v4709 = vld [vmem:[%s4 + $0x148] sm:$0xf]
  %v4710 = vld [vmem:[%s4 + $0x14c] sm:$0xf]
  %v4711 = vld [vmem:[%s4 + $0x150] sm:$0xf]
  %v4712 = vld [vmem:[%s4 + $0x154] sm:$0xf]
  %v4713 = vld [vmem:[%s4 + $0x158] sm:$0xf]
  %v4714 = vld [vmem:[%s4 + $0x15c] sm:$0xf]
  %v4715 = vld [vmem:[%s4 + $0x160] sm:$0xf]
  %v4716 = vld [vmem:[%s4 + $0x164] sm:$0xf]
  %v4717 = vld [vmem:[%s4 + $0x168] sm:$0xf]
  %v4718 = vld [vmem:[%s4 + $0x16c] sm:$0xf]
  %v4719 = vld [vmem:[%s4 + $0x170] sm:$0xf]
  %v4720 = vld [vmem:[%s4 + $0x174] sm:$0xf]
  %v4721 = vld [vmem:[%s4 + $0x178] sm:$0xf]
  %v4722 = vld [vmem:[%s4 + $0x17c] sm:$0xf]
  %v4723 = vld [vmem:[%s4 + $0x180] sm:$0xf]
  %v4724 = vld [vmem:[%s4 + $0x184] sm:$0xf]
  %v4725 = vld [vmem:[%s4 + $0x188] sm:$0xf]
  %v4726 = vld [vmem:[%s4 + $0x18c] sm:$0xf]
  %v4727 = vld [vmem:[%s4 + $0x190] sm:$0xf]
  %v4728 = vld [vmem:[%s4 + $0x194] sm:$0xf]
  %v4729 = vld [vmem:[%s4 + $0x198] sm:$0xf]
  %v4730 = vld [vmem:[%s4 + $0x19c] sm:$0xf]
  %v4731 = vld [vmem:[%s4 + $0x1a0] sm:$0xf]
  %v4732 = vld [vmem:[%s4 + $0x1a4] sm:$0xf]
  %v4733 = vld [vmem:[%s4 + $0x1a8] sm:$0xf]
  %v4734 = vld [vmem:[%s4 + $0x1ac] sm:$0xf]
  %v4735 = vld [vmem:[%s4 + $0x1b0] sm:$0xf]
  %v4736 = vld [vmem:[%s4 + $0x1b4] sm:$0xf]
  %v4737 = vld [vmem:[%s4 + $0x1b8] sm:$0xf]
  %v4738 = vld [vmem:[%s4 + $0x1bc] sm:$0xf]
  %v4739 = vld [vmem:[%s4 + $0x1c0] sm:$0xf]
  %v4740 = vld [vmem:[%s4 + $0x1c4] sm:$0xf]
  %v4741 = vld [vmem:[%s4 + $0x1c8] sm:$0xf]
  %v4742 = vld [vmem:[%s4 + $0x1cc] sm:$0xf]
  %v4743 = vld [vmem:[%s4 + $0x1d0] sm:$0xf]
  %v4744 = vld [vmem:[%s4 + $0x1d4] sm:$0xf]
  %v4745 = vld [vmem:[%s4 + $0x1d8] sm:$0xf]
  %v4746 = vld [vmem:[%s4 + $0x1dc] sm:$0xf]
  %v4747 = vld [vmem:[%s4 + $0x1e0] sm:$0xf]
  %v4748 = vld [vmem:[%s4 + $0x1e4] sm:$0xf]
  %v4749 = vld [vmem:[%s4 + $0x1e8] sm:$0xf]
  %v4750 = vld [vmem:[%s4 + $0x1ec] sm:$0xf]
  %v4751 = vld [vmem:[%s4 + $0x1f0] sm:$0xf]
  %v4752 = vld [vmem:[%s4 + $0x1f4] sm:$0xf]
  %v4753 = vld [vmem:[%s4 + $0x1f8] sm:$0xf]
  %v4754 = vld [vmem:[%s4 + $0x1fc] sm:$0xf]
  %v4755 = vld [vmem:[%s4 + $0x200] sm:$0xf]
  %v4756 = vld [vmem:[%s4 + $0x204] sm:$0xf]
  %v4757 = vld [vmem:[%s4 + $0x208] sm:$0xf]
  %v4758 = vld [vmem:[%s4 + $0x20c] sm:$0xf]
  %v4759 = vld [vmem:[%s4 + $0x210] sm:$0xf]
  %v4760 = vld [vmem:[%s4 + $0x214] sm:$0xf]
  %v4761 = vld [vmem:[%s4 + $0x218] sm:$0xf]
  %v4762 = vld [vmem:[%s4 + $0x21c] sm:$0xf]
  %v4763 = vld [vmem:[%s4 + $0x220] sm:$0xf]
  %v4764 = vld [vmem:[%s4 + $0x224] sm:$0xf]
  %v4765 = vld [vmem:[%s4 + $0x228] sm:$0xf]
  %v4766 = vld [vmem:[%s4 + $0x22c] sm:$0xf]
  %v4767 = vld [vmem:[%s4 + $0x230] sm:$0xf]
  %v4768 = vld [vmem:[%s4 + $0x234] sm:$0xf]
  %v4769 = vld [vmem:[%s4 + $0x238] sm:$0xf]
  %v4770 = vld [vmem:[%s4 + $0x23c] sm:$0xf]
  %v4771 = vld [vmem:[%s4 + $0x240] sm:$0xf]
  %v4772 = vld [vmem:[%s4 + $0x244] sm:$0xf]
  %v4773 = vld [vmem:[%s4 + $0x248] sm:$0xf]
  %v4774 = vld [vmem:[%s4 + $0x24c] sm:$0xf]
  %v4775 = vld [vmem:[%s4 + $0x250] sm:$0xf]
  %v4776 = vld [vmem:[%s4 + $0x254] sm:$0xf]
  %v4777 = vld [vmem:[%s4 + $0x258] sm:$0xf]
  %v4778 = vld [vmem:[%s4 + $0x25c] sm:$0xf]
  %v4779 = vld [vmem:[%s4 + $0x260] sm:$0xf]
  %v4780 = vld [vmem:[%s4 + $0x264] sm:$0xf]
  %v4781 = vld [vmem:[%s4 + $0x268] sm:$0xf]
  %v4782 = vld [vmem:[%s4 + $0x26c] sm:$0xf]
  %v4783 = vld [vmem:[%s4 + $0x270] sm:$0xf]
  %v4784 = vld [vmem:[%s4 + $0x274] sm:$0xf]
  %v4785 = vld [vmem:[%s4 + $0x278] sm:$0xf]
  %v4786 = vld [vmem:[%s4 + $0x27c] sm:$0xf]
  %v4787 = vld [vmem:[%s4 + $0x280] sm:$0xf]
  %v4788 = vld [vmem:[%s4 + $0x284] sm:$0xf]
  %v4789 = vld [vmem:[%s4 + $0x288] sm:$0xf]
  %v4790 = vld [vmem:[%s4 + $0x28c] sm:$0xf]
  %v4791 = vld [vmem:[%s4 + $0x290] sm:$0xf]
  %v4792 = vld [vmem:[%s4 + $0x294] sm:$0xf]
  %v4793 = vld [vmem:[%s4 + $0x298] sm:$0xf]
  %v4794 = vld [vmem:[%s4 + $0x29c] sm:$0xf]
  %v4795 = vld [vmem:[%s4 + $0x2a0] sm:$0xf]
  %v4796 = vld [vmem:[%s4 + $0x2a4] sm:$0xf]
  %v4797 = vld [vmem:[%s4 + $0x2a8] sm:$0xf]
  %v4798 = vld [vmem:[%s4 + $0x2ac] sm:$0xf]
  %v4799 = vld [vmem:[%s4 + $0x2b0] sm:$0xf]
  %v4800 = vld [vmem:[%s4 + $0x2b4] sm:$0xf]
  %v4801 = vld [vmem:[%s4 + $0x2b8] sm:$0xf]
  %v4802 = vld [vmem:[%s4 + $0x2bc] sm:$0xf]
  %v4803 = vld [vmem:[%s4 + $0x2c0] sm:$0xf]
  %v4804 = vld [vmem:[%s4 + $0x2c4] sm:$0xf]
  %v4805 = vld [vmem:[%s4 + $0x2c8] sm:$0xf]
  %v4806 = vld [vmem:[%s4 + $0x2cc] sm:$0xf]
  %v4807 = vld [vmem:[%s4 + $0x2d0] sm:$0xf]
  %v4808 = vld [vmem:[%s4 + $0x2d4] sm:$0xf]
  %v4809 = vld [vmem:[%s4 + $0x2d8] sm:$0xf]
  %v4810 = vld [vmem:[%s4 + $0x2dc] sm:$0xf]
  %v4811 = vld [vmem:[%s4 + $0x2e0] sm:$0xf]
  %v4812 = vld [vmem:[%s4 + $0x2e4] sm:$0xf]
  %v4813 = vld [vmem:[%s4 + $0x2e8] sm:$0xf]
  %v4814 = vld [vmem:[%s4 + $0x2ec] sm:$0xf]
  %v4815 = vld [vmem:[%s4 + $0x2f0] sm:$0xf]
  %v4816 = vld [vmem:[%s4 + $0x2f4] sm:$0xf]
  %v4817 = vld [vmem:[%s4 + $0x2f8] sm:$0xf]
  %v4818 = vld [vmem:[%s4 + $0x2fc] sm:$0xf]
  %v4819 = vld [vmem:[%s4 + $0x300] sm:$0xf]
  %v4820 = vld [vmem:[%s4 + $0x304] sm:$0xf]
  %v4821 = vld [vmem:[%s4 + $0x308] sm:$0xf]
  %v4822 = vld [vmem:[%s4 + $0x30c] sm:$0xf]
  %v4823 = vld [vmem:[%s4 + $0x310] sm:$0xf]
  %v4824 = vld [vmem:[%s4 + $0x314] sm:$0xf]
  %v4825 = vld [vmem:[%s4 + $0x318] sm:$0xf]
  %v4826 = vld [vmem:[%s4 + $0x31c] sm:$0xf]
  %v4827 = vld [vmem:[%s4 + $0x320] sm:$0xf]
  %v4828 = vld [vmem:[%s4 + $0x324] sm:$0xf]
  %v4829 = vld [vmem:[%s4 + $0x328] sm:$0xf]
  %v4830 = vld [vmem:[%s4 + $0x32c] sm:$0xf]
  %v4831 = vld [vmem:[%s4 + $0x330] sm:$0xf]
  %v4832 = vld [vmem:[%s4 + $0x334] sm:$0xf]
  %v4833 = vld [vmem:[%s4 + $0x338] sm:$0xf]
  %v4834 = vld [vmem:[%s4 + $0x33c] sm:$0xf]
  %v4835 = vld [vmem:[%s4 + $0x340] sm:$0xf]
  %v4836 = vld [vmem:[%s4 + $0x344] sm:$0xf]
  %v4837 = vld [vmem:[%s4 + $0x348] sm:$0xf]
  %v4838 = vld [vmem:[%s4 + $0x34c] sm:$0xf]
  %v4839 = vld [vmem:[%s4 + $0x350] sm:$0xf]
  %v4840 = vld [vmem:[%s4 + $0x354] sm:$0xf]
  %v4841 = vld [vmem:[%s4 + $0x358] sm:$0xf]
  %v4842 = vld [vmem:[%s4 + $0x35c] sm:$0xf]
  %v4843 = vld [vmem:[%s4 + $0x360] sm:$0xf]
  %v4844 = vld [vmem:[%s4 + $0x364] sm:$0xf]
  %v4845 = vld [vmem:[%s4 + $0x368] sm:$0xf]
  %v4846 = vld [vmem:[%s4 + $0x36c] sm:$0xf]
  %v4847 = vld [vmem:[%s4 + $0x370] sm:$0xf]
  %v4848 = vld [vmem:[%s4 + $0x374] sm:$0xf]
  %v4849 = vld [vmem:[%s4 + $0x378] sm:$0xf]
  %v4850 = vld [vmem:[%s4 + $0x37c] sm:$0xf]
  %v4851 = vld [vmem:[%s4 + $0x380] sm:$0xf]
  %v4852 = vld [vmem:[%s4 + $0x384] sm:$0xf]
  %v4853 = vld [vmem:[%s4 + $0x388] sm:$0xf]
  %v4854 = vld [vmem:[%s4 + $0x38c] sm:$0xf]
  %v4855 = vld [vmem:[%s4 + $0x390] sm:$0xf]
  %v4856 = vld [vmem:[%s4 + $0x394] sm:$0xf]
  %v4857 = vld [vmem:[%s4 + $0x398] sm:$0xf]
  %v4858 = vld [vmem:[%s4 + $0x39c] sm:$0xf]
  %v4859 = vld [vmem:[%s4 + $0x3a0] sm:$0xf]
  %v4860 = vld [vmem:[%s4 + $0x3a4] sm:$0xf]
  %v4861 = vld [vmem:[%s4 + $0x3a8] sm:$0xf]
  %v4862 = vld [vmem:[%s4 + $0x3ac] sm:$0xf]
  %v4863 = vld [vmem:[%s4 + $0x3b0] sm:$0xf]
  %v4864 = vld [vmem:[%s4 + $0x3b4] sm:$0xf]
  %v4865 = vld [vmem:[%s4 + $0x3b8] sm:$0xf]
  %v4866 = vld [vmem:[%s4 + $0x3bc] sm:$0xf]
  %v4867 = vld [vmem:[%s5] sm:$0x1]
  %v4869 = vperm.slane %v4867, 0
  %v5111 = vunpack.c.l.b16 %v4627
  %v5112 = vunpack.c.l.b16 %v4628
  %v5113 = vunpack.c.l.b16 %v4629
  %v5114 = vunpack.c.l.b16 %v4630
  %v5115 = vunpack.c.l.b16 %v4631
  %v5116 = vunpack.c.l.b16 %v4632
  %v5117 = vunpack.c.l.b16 %v4633
  %v5118 = vunpack.c.l.b16 %v4634
  %v5119 = vunpack.c.l.b16 %v4635
  %v5120 = vunpack.c.l.b16 %v4636
  %v5121 = vunpack.c.l.b16 %v4637
  %v5122 = vunpack.c.l.b16 %v4638
  %v5123 = vunpack.c.l.b16 %v4639
  %v5124 = vunpack.c.l.b16 %v4640
  %v5125 = vunpack.c.l.b16 %v4641
  %v5126 = vunpack.c.l.b16 %v4642
  %v5127 = vunpack.c.l.b16 %v4643
  %v5128 = vunpack.c.l.b16 %v4644
  %v5129 = vunpack.c.l.b16 %v4645
  %v5130 = vunpack.c.l.b16 %v4646
  %v5131 = vunpack.c.l.b16 %v4647
  %v5132 = vunpack.c.l.b16 %v4648
  %v5133 = vunpack.c.l.b16 %v4649
  %v5134 = vunpack.c.l.b16 %v4650
  %v5135 = vunpack.c.l.b16 %v4651
  %v5136 = vunpack.c.l.b16 %v4652
  %v5137 = vunpack.c.l.b16 %v4653
  %v5138 = vunpack.c.l.b16 %v4654
  %v5139 = vunpack.c.l.b16 %v4655
  %v5140 = vunpack.c.l.b16 %v4656
  %v5141 = vunpack.c.l.b16 %v4657
  %v5142 = vunpack.c.l.b16 %v4658
  %v5143 = vunpack.c.l.b16 %v4659
  %v5144 = vunpack.c.l.b16 %v4660
  %v5145 = vunpack.c.l.b16 %v4661
  %v5146 = vunpack.c.l.b16 %v4662
  %v5147 = vunpack.c.l.b16 %v4663
  %v5148 = vunpack.c.l.b16 %v4664
  %v5149 = vunpack.c.l.b16 %v4665
  %v5150 = vunpack.c.l.b16 %v4666
  %v5151 = vunpack.c.l.b16 %v4667
  %v5152 = vunpack.c.l.b16 %v4668
  %v5153 = vunpack.c.l.b16 %v4669
  %v5154 = vunpack.c.l.b16 %v4670
  %v5155 = vunpack.c.l.b16 %v4671
  %v5156 = vunpack.c.l.b16 %v4672
  %v5157 = vunpack.c.l.b16 %v4673
  %v5158 = vunpack.c.l.b16 %v4674
  %v5159 = vunpack.c.l.b16 %v4675
  %v5160 = vunpack.c.l.b16 %v4676
  %v5161 = vunpack.c.l.b16 %v4677
  %v5162 = vunpack.c.l.b16 %v4678
  %v5163 = vunpack.c.l.b16 %v4679
  %v5164 = vunpack.c.l.b16 %v4680
  %v5165 = vunpack.c.l.b16 %v4681
  %v5166 = vunpack.c.l.b16 %v4682
  %v5167 = vunpack.c.l.b16 %v4683
  %v5168 = vunpack.c.l.b16 %v4684
  %v5169 = vunpack.c.l.b16 %v4685
  %v5170 = vunpack.c.l.b16 %v4686
  %v5171 = vunpack.c.l.b16 %v4687
  %v5172 = vunpack.c.l.b16 %v4688
  %v5173 = vunpack.c.l.b16 %v4689
  %v5174 = vunpack.c.l.b16 %v4690
  %v5175 = vunpack.c.l.b16 %v4691
  %v5176 = vunpack.c.l.b16 %v4692
  %v5177 = vunpack.c.l.b16 %v4693
  %v5178 = vunpack.c.l.b16 %v4694
  %v5179 = vunpack.c.l.b16 %v4695
  %v5180 = vunpack.c.l.b16 %v4696
  %v5181 = vunpack.c.l.b16 %v4697
  %v5182 = vunpack.c.l.b16 %v4698
  %v5183 = vunpack.c.l.b16 %v4699
  %v5184 = vunpack.c.l.b16 %v4700
  %v5185 = vunpack.c.l.b16 %v4701
  %v5186 = vunpack.c.l.b16 %v4702
  %v5187 = vunpack.c.l.b16 %v4703
  %v5188 = vunpack.c.l.b16 %v4704
  %v5189 = vunpack.c.l.b16 %v4705
  %v5190 = vunpack.c.l.b16 %v4706
  %v5191 = vunpack.c.l.b16 %v4707
  %v5192 = vunpack.c.l.b16 %v4708
  %v5193 = vunpack.c.l.b16 %v4709
  %v5194 = vunpack.c.l.b16 %v4710
  %v5195 = vunpack.c.l.b16 %v4711
  %v5196 = vunpack.c.l.b16 %v4712
  %v5197 = vunpack.c.l.b16 %v4713
  %v5198 = vunpack.c.l.b16 %v4714
  %v5199 = vunpack.c.l.b16 %v4715
  %v5200 = vunpack.c.l.b16 %v4716
  %v5201 = vunpack.c.l.b16 %v4717
  %v5202 = vunpack.c.l.b16 %v4718
  %v5203 = vunpack.c.l.b16 %v4719
  %v5204 = vunpack.c.l.b16 %v4720
  %v5205 = vunpack.c.l.b16 %v4721
  %v5206 = vunpack.c.l.b16 %v4722
  %v5207 = vunpack.c.l.b16 %v4723
  %v5208 = vunpack.c.l.b16 %v4724
  %v5209 = vunpack.c.l.b16 %v4725
  %v5210 = vunpack.c.l.b16 %v4726
  %v5211 = vunpack.c.l.b16 %v4727
  %v5212 = vunpack.c.l.b16 %v4728
  %v5213 = vunpack.c.l.b16 %v4729
  %v5214 = vunpack.c.l.b16 %v4730
  %v5215 = vunpack.c.l.b16 %v4731
  %v5216 = vunpack.c.l.b16 %v4732
  %v5217 = vunpack.c.l.b16 %v4733
  %v5218 = vunpack.c.l.b16 %v4734
  %v5219 = vunpack.c.l.b16 %v4735
  %v5220 = vunpack.c.l.b16 %v4736
  %v5221 = vunpack.c.l.b16 %v4737
  %v5222 = vunpack.c.l.b16 %v4738
  %v5223 = vunpack.c.l.b16 %v4739
  %v5224 = vunpack.c.l.b16 %v4740
  %v5225 = vunpack.c.l.b16 %v4741
  %v5226 = vunpack.c.l.b16 %v4742
  %v5227 = vunpack.c.l.b16 %v4743
  %v5228 = vunpack.c.l.b16 %v4744
  %v5229 = vunpack.c.l.b16 %v4745
  %v5230 = vunpack.c.l.b16 %v4746
  %v5231 = vunpack.c.l.b16 %v4747
  %v5232 = vunpack.c.l.b16 %v4748
  %v5233 = vunpack.c.l.b16 %v4749
  %v5234 = vunpack.c.l.b16 %v4750
  %v5235 = vunpack.c.l.b16 %v4751
  %v5236 = vunpack.c.l.b16 %v4752
  %v5237 = vunpack.c.l.b16 %v4753
  %v5238 = vunpack.c.l.b16 %v4754
  %v5239 = vunpack.c.l.b16 %v4755
  %v5240 = vunpack.c.l.b16 %v4756
  %v5241 = vunpack.c.l.b16 %v4757
  %v5242 = vunpack.c.l.b16 %v4758
  %v5243 = vunpack.c.l.b16 %v4759
  %v5244 = vunpack.c.l.b16 %v4760
  %v5245 = vunpack.c.l.b16 %v4761
  %v5246 = vunpack.c.l.b16 %v4762
  %v5247 = vunpack.c.l.b16 %v4763
  %v5248 = vunpack.c.l.b16 %v4764
  %v5249 = vunpack.c.l.b16 %v4765
  %v5250 = vunpack.c.l.b16 %v4766
  %v5251 = vunpack.c.l.b16 %v4767
  %v5252 = vunpack.c.l.b16 %v4768
  %v5253 = vunpack.c.l.b16 %v4769
  %v5254 = vunpack.c.l.b16 %v4770
  %v5255 = vunpack.c.l.b16 %v4771
  %v5256 = vunpack.c.l.b16 %v4772
  %v5257 = vunpack.c.l.b16 %v4773
  %v5258 = vunpack.c.l.b16 %v4774
  %v5259 = vunpack.c.l.b16 %v4775
  %v5260 = vunpack.c.l.b16 %v4776
  %v5261 = vunpack.c.l.b16 %v4777
  %v5262 = vunpack.c.l.b16 %v4778
  %v5263 = vunpack.c.l.b16 %v4779
  %v5264 = vunpack.c.l.b16 %v4780
  %v5265 = vunpack.c.l.b16 %v4781
  %v5266 = vunpack.c.l.b16 %v4782
  %v5267 = vunpack.c.l.b16 %v4783
  %v5268 = vunpack.c.l.b16 %v4784
  %v5269 = vunpack.c.l.b16 %v4785
  %v5270 = vunpack.c.l.b16 %v4786
  %v5271 = vunpack.c.l.b16 %v4787
  %v5272 = vunpack.c.l.b16 %v4788
  %v5273 = vunpack.c.l.b16 %v4789
  %v5274 = vunpack.c.l.b16 %v4790
  %v5275 = vunpack.c.l.b16 %v4791
  %v5276 = vunpack.c.l.b16 %v4792
  %v5277 = vunpack.c.l.b16 %v4793
  %v5278 = vunpack.c.l.b16 %v4794
  %v5279 = vunpack.c.l.b16 %v4795
  %v5280 = vunpack.c.l.b16 %v4796
  %v5281 = vunpack.c.l.b16 %v4797
  %v5282 = vunpack.c.l.b16 %v4798
  %v5283 = vunpack.c.l.b16 %v4799
  %v5284 = vunpack.c.l.b16 %v4800
  %v5285 = vunpack.c.l.b16 %v4801
  %v5286 = vunpack.c.l.b16 %v4802
  %v5287 = vunpack.c.l.b16 %v4803
  %v5288 = vunpack.c.l.b16 %v4804
  %v5289 = vunpack.c.l.b16 %v4805
  %v5290 = vunpack.c.l.b16 %v4806
  %v5291 = vunpack.c.l.b16 %v4807
  %v5292 = vunpack.c.l.b16 %v4808
  %v5293 = vunpack.c.l.b16 %v4809
  %v5294 = vunpack.c.l.b16 %v4810
  %v5295 = vunpack.c.l.b16 %v4811
  %v5296 = vunpack.c.l.b16 %v4812
  %v5297 = vunpack.c.l.b16 %v4813
  %v5298 = vunpack.c.l.b16 %v4814
  %v5299 = vunpack.c.l.b16 %v4815
  %v5300 = vunpack.c.l.b16 %v4816
  %v5301 = vunpack.c.l.b16 %v4817
  %v5302 = vunpack.c.l.b16 %v4818
  %v5303 = vunpack.c.l.b16 %v4819
  %v5304 = vunpack.c.l.b16 %v4820
  %v5305 = vunpack.c.l.b16 %v4821
  %v5306 = vunpack.c.l.b16 %v4822
  %v5307 = vunpack.c.l.b16 %v4823
  %v5308 = vunpack.c.l.b16 %v4824
  %v5309 = vunpack.c.l.b16 %v4825
  %v5310 = vunpack.c.l.b16 %v4826
  %v5311 = vunpack.c.l.b16 %v4827
  %v5312 = vunpack.c.l.b16 %v4828
  %v5313 = vunpack.c.l.b16 %v4829
  %v5314 = vunpack.c.l.b16 %v4830
  %v5315 = vunpack.c.l.b16 %v4831
  %v5316 = vunpack.c.l.b16 %v4832
  %v5317 = vunpack.c.l.b16 %v4833
  %v5318 = vunpack.c.l.b16 %v4834
  %v5319 = vunpack.c.l.b16 %v4835
  %v5320 = vunpack.c.l.b16 %v4836
  %v5321 = vunpack.c.l.b16 %v4837
  %v5322 = vunpack.c.l.b16 %v4838
  %v5323 = vunpack.c.l.b16 %v4839
  %v5324 = vunpack.c.l.b16 %v4840
  %v5325 = vunpack.c.l.b16 %v4841
  %v5326 = vunpack.c.l.b16 %v4842
  %v5327 = vunpack.c.l.b16 %v4843
  %v5328 = vunpack.c.l.b16 %v4844
  %v5329 = vunpack.c.l.b16 %v4845
  %v5330 = vunpack.c.l.b16 %v4846
  %v5331 = vunpack.c.l.b16 %v4847
  %v5332 = vunpack.c.l.b16 %v4848
  %v5333 = vunpack.c.l.b16 %v4849
  %v5334 = vunpack.c.l.b16 %v4850
  %v5335 = vunpack.c.l.b16 %v4851
  %v5336 = vunpack.c.l.b16 %v4852
  %v5337 = vunpack.c.l.b16 %v4853
  %v5338 = vunpack.c.l.b16 %v4854
  %v5339 = vunpack.c.l.b16 %v4855
  %v5340 = vunpack.c.l.b16 %v4856
  %v5341 = vunpack.c.l.b16 %v4857
  %v5342 = vunpack.c.l.b16 %v4858
  %v5343 = vunpack.c.l.b16 %v4859
  %v5344 = vunpack.c.l.b16 %v4860
  %v5345 = vunpack.c.l.b16 %v4861
  %v5346 = vunpack.c.l.b16 %v4862
  %v5347 = vunpack.c.l.b16 %v4863
  %v5348 = vunpack.c.l.b16 %v4864
  %v5349 = vunpack.c.l.b16 %v4865
  %v5350 = vunpack.c.l.b16 %v4866
  %v5351 = vpack.c.b16 %v5112, %v5111
  %v5352 = vpack.c.b16 %v5114, %v5113
  %v5353 = vpack.c.b16 %v5116, %v5115
  %v5354 = vpack.c.b16 %v5118, %v5117
  %v5355 = vpack.c.b16 %v5120, %v5119
  %v5356 = vpack.c.b16 %v5122, %v5121
  %v5357 = vpack.c.b16 %v5124, %v5123
  %v5358 = vpack.c.b16 %v5126, %v5125
  %v5359 = vpack.c.b16 %v5128, %v5127
  %v5360 = vpack.c.b16 %v5130, %v5129
  %v5361 = vpack.c.b16 %v5132, %v5131
  %v5362 = vpack.c.b16 %v5134, %v5133
  %v5363 = vpack.c.b16 %v5136, %v5135
  %v5364 = vpack.c.b16 %v5138, %v5137
  %v5365 = vpack.c.b16 %v5140, %v5139
  %v5366 = vpack.c.b16 %v5142, %v5141
  %v5367 = vpack.c.b16 %v5144, %v5143
  %v5368 = vpack.c.b16 %v5146, %v5145
  %v5369 = vpack.c.b16 %v5148, %v5147
  %v5370 = vpack.c.b16 %v5150, %v5149
  %v5371 = vpack.c.b16 %v5152, %v5151
  %v5372 = vpack.c.b16 %v5154, %v5153
  %v5373 = vpack.c.b16 %v5156, %v5155
  %v5374 = vpack.c.b16 %v5158, %v5157
  %v5375 = vpack.c.b16 %v5160, %v5159
  %v5376 = vpack.c.b16 %v5162, %v5161
  %v5377 = vpack.c.b16 %v5164, %v5163
  %v5378 = vpack.c.b16 %v5166, %v5165
  %v5379 = vpack.c.b16 %v5168, %v5167
  %v5380 = vpack.c.b16 %v5170, %v5169
  %v5381 = vpack.c.b16 %v5172, %v5171
  %v5382 = vpack.c.b16 %v5174, %v5173
  %v5383 = vpack.c.b16 %v5176, %v5175
  %v5384 = vpack.c.b16 %v5178, %v5177
  %v5385 = vpack.c.b16 %v5180, %v5179
  %v5386 = vpack.c.b16 %v5182, %v5181
  %v5387 = vpack.c.b16 %v5184, %v5183
  %v5388 = vpack.c.b16 %v5186, %v5185
  %v5389 = vpack.c.b16 %v5188, %v5187
  %v5390 = vpack.c.b16 %v5190, %v5189
  %v5391 = vpack.c.b16 %v5192, %v5191
  %v5392 = vpack.c.b16 %v5194, %v5193
  %v5393 = vpack.c.b16 %v5196, %v5195
  %v5394 = vpack.c.b16 %v5198, %v5197
  %v5395 = vpack.c.b16 %v5200, %v5199
  %v5396 = vpack.c.b16 %v5202, %v5201
  %v5397 = vpack.c.b16 %v5204, %v5203
  %v5398 = vpack.c.b16 %v5206, %v5205
  %v5399 = vpack.c.b16 %v5208, %v5207
  %v5400 = vpack.c.b16 %v5210, %v5209
  %v5401 = vpack.c.b16 %v5212, %v5211
  %v5402 = vpack.c.b16 %v5214, %v5213
  %v5403 = vpack.c.b16 %v5216, %v5215
  %v5404 = vpack.c.b16 %v5218, %v5217
  %v5405 = vpack.c.b16 %v5220, %v5219
  %v5406 = vpack.c.b16 %v5222, %v5221
  %v5407 = vpack.c.b16 %v5224, %v5223
  %v5408 = vpack.c.b16 %v5226, %v5225
  %v5409 = vpack.c.b16 %v5228, %v5227
  %v5410 = vpack.c.b16 %v5230, %v5229
  %v5411 = vpack.c.b16 %v5232, %v5231
  %v5412 = vpack.c.b16 %v5234, %v5233
  %v5413 = vpack.c.b16 %v5236, %v5235
  %v5414 = vpack.c.b16 %v5238, %v5237
  %v5415 = vpack.c.b16 %v5240, %v5239
  %v5416 = vpack.c.b16 %v5242, %v5241
  %v5417 = vpack.c.b16 %v5244, %v5243
  %v5418 = vpack.c.b16 %v5246, %v5245
  %v5419 = vpack.c.b16 %v5248, %v5247
  %v5420 = vpack.c.b16 %v5250, %v5249
  %v5421 = vpack.c.b16 %v5252, %v5251
  %v5422 = vpack.c.b16 %v5254, %v5253
  %v5423 = vpack.c.b16 %v5256, %v5255
  %v5424 = vpack.c.b16 %v5258, %v5257
  %v5425 = vpack.c.b16 %v5260, %v5259
  %v5426 = vpack.c.b16 %v5262, %v5261
  %v5427 = vpack.c.b16 %v5264, %v5263
  %v5428 = vpack.c.b16 %v5266, %v5265
  %v5429 = vpack.c.b16 %v5268, %v5267
  %v5430 = vpack.c.b16 %v5270, %v5269
  %v5431 = vpack.c.b16 %v5272, %v5271
  %v5432 = vpack.c.b16 %v5274, %v5273
  %v5433 = vpack.c.b16 %v5276, %v5275
  %v5434 = vpack.c.b16 %v5278, %v5277
  %v5435 = vpack.c.b16 %v5280, %v5279
  %v5436 = vpack.c.b16 %v5282, %v5281
  %v5437 = vpack.c.b16 %v5284, %v5283
  %v5438 = vpack.c.b16 %v5286, %v5285
  %v5439 = vpack.c.b16 %v5288, %v5287
  %v5440 = vpack.c.b16 %v5290, %v5289
  %v5441 = vpack.c.b16 %v5292, %v5291
  %v5442 = vpack.c.b16 %v5294, %v5293
  %v5443 = vpack.c.b16 %v5296, %v5295
  %v5444 = vpack.c.b16 %v5298, %v5297
  %v5445 = vpack.c.b16 %v5300, %v5299
  %v5446 = vpack.c.b16 %v5302, %v5301
  %v5447 = vpack.c.b16 %v5304, %v5303
  %v5448 = vpack.c.b16 %v5306, %v5305
  %v5449 = vpack.c.b16 %v5308, %v5307
  %v5450 = vpack.c.b16 %v5310, %v5309
  %v5451 = vpack.c.b16 %v5312, %v5311
  %v5452 = vpack.c.b16 %v5314, %v5313
  %v5453 = vpack.c.b16 %v5316, %v5315
  %v5454 = vpack.c.b16 %v5318, %v5317
  %v5455 = vpack.c.b16 %v5320, %v5319
  %v5456 = vpack.c.b16 %v5322, %v5321
  %v5457 = vpack.c.b16 %v5324, %v5323
  %v5458 = vpack.c.b16 %v5326, %v5325
  %v5459 = vpack.c.b16 %v5328, %v5327
  %v5460 = vpack.c.b16 %v5330, %v5329
  %v5461 = vpack.c.b16 %v5332, %v5331
  %v5462 = vpack.c.b16 %v5334, %v5333
  %v5463 = vpack.c.b16 %v5336, %v5335
  %v5464 = vpack.c.b16 %v5338, %v5337
  %v5465 = vpack.c.b16 %v5340, %v5339
  %v5466 = vpack.c.b16 %v5342, %v5341
  %v5467 = vpack.c.b16 %v5344, %v5343
  %v5468 = vpack.c.b16 %v5346, %v5345
  %v5469 = vpack.c.b16 %v5348, %v5347
  %v5470 = vpack.c.b16 %v5350, %v5349
  %5591 = vmatpush.bf16.msra.mxu0 %v5358
  %5592 = vmatpush.bf16.msra.mxu0 %v5357
  %5593 = vmatpush.bf16.msra.mxu0 %v5356
  %5594 = vmatpush.bf16.msra.mxu0 %v5355
  %5595 = vmatpush.bf16.msra.mxu0 %v5354
  %5596 = vmatpush.bf16.msra.mxu0 %v5353
  %5597 = vmatpush.bf16.msra.mxu0 %v5352
  %5598 = vmatpush.bf16.msra.mxu0 %v5351
  %5599 = vmatmul.bf16.gmra.mxu0 %v4612
  %v5600 = vpop.f32.mrf.mxu0
  %v5601 = vadd.f32 %v4869, %v5600
  %v5602 = vpop.f32.mrf.mxu0
  %5603 = vdwg.mxu0
  %5604 = vmatpush.bf16.msra.mxu0 %v5366
  %5605 = vmatpush.bf16.msra.mxu0 %v5365
  %5606 = vmatpush.bf16.msra.mxu0 %v5364
  %5607 = vmatpush.bf16.msra.mxu0 %v5363
  %5608 = vmatpush.bf16.msra.mxu0 %v5362
  %5609 = vmatpush.bf16.msra.mxu0 %v5361
  %5610 = vmatpush.bf16.msra.mxu0 %v5360
  %5611 = vmatpush.bf16.msra.mxu0 %v5359
  %5612 = vmatmul.bf16.gmra.mxu0 %v4613
  %v5613 = vpop.f32.mrf.mxu0
  %v5614 = vadd.f32 %v5601, %v5613
  %v5615 = vpop.f32.mrf.mxu0
  %5616 = vdwg.mxu0
  %5617 = vmatpush.bf16.msra.mxu0 %v5374
  %5618 = vmatpush.bf16.msra.mxu0 %v5373
  %5619 = vmatpush.bf16.msra.mxu0 %v5372
  %5620 = vmatpush.bf16.msra.mxu0 %v5371
  %5621 = vmatpush.bf16.msra.mxu0 %v5370
  %5622 = vmatpush.bf16.msra.mxu0 %v5369
  %5623 = vmatpush.bf16.msra.mxu0 %v5368
  %5624 = vmatpush.bf16.msra.mxu0 %v5367
  %5625 = vmatmul.bf16.gmra.mxu0 %v4614
  %v5626 = vpop.f32.mrf.mxu0
  %v5627 = vadd.f32 %v5614, %v5626
  %v5628 = vpop.f32.mrf.mxu0
  %5629 = vdwg.mxu0
  %5630 = vmatpush.bf16.msra.mxu0 %v5382
  %5631 = vmatpush.bf16.msra.mxu0 %v5381
  %5632 = vmatpush.bf16.msra.mxu0 %v5380
  %5633 = vmatpush.bf16.msra.mxu0 %v5379
  %5634 = vmatpush.bf16.msra.mxu0 %v5378
  %5635 = vmatpush.bf16.msra.mxu0 %v5377
  %5636 = vmatpush.bf16.msra.mxu0 %v5376
  %5637 = vmatpush.bf16.msra.mxu0 %v5375
  %5638 = vmatmul.bf16.gmra.mxu0 %v4615
  %v5639 = vpop.f32.mrf.mxu0
  %v5640 = vadd.f32 %v5627, %v5639
  %v5641 = vpop.f32.mrf.mxu0
  %5642 = vdwg.mxu0
  %5643 = vmatpush.bf16.msra.mxu0 %v5390
  %5644 = vmatpush.bf16.msra.mxu0 %v5389
  %5645 = vmatpush.bf16.msra.mxu0 %v5388
  %5646 = vmatpush.bf16.msra.mxu0 %v5387
  %5647 = vmatpush.bf16.msra.mxu0 %v5386
  %5648 = vmatpush.bf16.msra.mxu0 %v5385
  %5649 = vmatpush.bf16.msra.mxu0 %v5384
  %5650 = vmatpush.bf16.msra.mxu0 %v5383
  %5651 = vmatmul.bf16.gmra.mxu0 %v4616
  %v5652 = vpop.f32.mrf.mxu0
  %v5653 = vadd.f32 %v5640, %v5652
  %v5654 = vpop.f32.mrf.mxu0
  %5655 = vdwg.mxu0
  %5656 = vmatpush.bf16.msra.mxu0 %v5398
  %5657 = vmatpush.bf16.msra.mxu0 %v5397
  %5658 = vmatpush.bf16.msra.mxu0 %v5396
  %5659 = vmatpush.bf16.msra.mxu0 %v5395
  %5660 = vmatpush.bf16.msra.mxu0 %v5394
  %5661 = vmatpush.bf16.msra.mxu0 %v5393
  %5662 = vmatpush.bf16.msra.mxu0 %v5392
  %5663 = vmatpush.bf16.msra.mxu0 %v5391
  %5664 = vmatmul.bf16.gmra.mxu0 %v4617
  %v5665 = vpop.f32.mrf.mxu0
  %v5666 = vadd.f32 %v5653, %v5665
  %v5667 = vpop.f32.mrf.mxu0
  %5668 = vdwg.mxu0
  %5669 = vmatpush.bf16.msra.mxu0 %v5406
  %5670 = vmatpush.bf16.msra.mxu0 %v5405
  %5671 = vmatpush.bf16.msra.mxu0 %v5404
  %5672 = vmatpush.bf16.msra.mxu0 %v5403
  %5673 = vmatpush.bf16.msra.mxu0 %v5402
  %5674 = vmatpush.bf16.msra.mxu0 %v5401
  %5675 = vmatpush.bf16.msra.mxu0 %v5400
  %5676 = vmatpush.bf16.msra.mxu0 %v5399
  %5677 = vmatmul.bf16.gmra.mxu0 %v4618
  %v5678 = vpop.f32.mrf.mxu0
  %v5679 = vadd.f32 %v5666, %v5678
  %v5680 = vpop.f32.mrf.mxu0
  %5681 = vdwg.mxu0
  %5682 = vmatpush.bf16.msra.mxu0 %v5414
  %5683 = vmatpush.bf16.msra.mxu0 %v5413
  %5684 = vmatpush.bf16.msra.mxu0 %v5412
  %5685 = vmatpush.bf16.msra.mxu0 %v5411
  %5686 = vmatpush.bf16.msra.mxu0 %v5410
  %5687 = vmatpush.bf16.msra.mxu0 %v5409
  %5688 = vmatpush.bf16.msra.mxu0 %v5408
  %5689 = vmatpush.bf16.msra.mxu0 %v5407
  %5690 = vmatmul.bf16.gmra.mxu0 %v4619
  %v5691 = vpop.f32.mrf.mxu0
  %v5692 = vadd.f32 %v5679, %v5691
  %v5693 = vpop.f32.mrf.mxu0
  %5694 = vdwg.mxu0
  %5695 = vmatpush.bf16.msra.mxu0 %v5422
  %5696 = vmatpush.bf16.msra.mxu0 %v5421
  %5697 = vmatpush.bf16.msra.mxu0 %v5420
  %5698 = vmatpush.bf16.msra.mxu0 %v5419
  %5699 = vmatpush.bf16.msra.mxu0 %v5418
  %5700 = vmatpush.bf16.msra.mxu0 %v5417
  %5701 = vmatpush.bf16.msra.mxu0 %v5416
  %5702 = vmatpush.bf16.msra.mxu0 %v5415
  %5703 = vmatmul.bf16.gmra.mxu0 %v4620
  %v5704 = vpop.f32.mrf.mxu0
  %v5705 = vadd.f32 %v5692, %v5704
  %v5706 = vpop.f32.mrf.mxu0
  %5707 = vdwg.mxu0
  %5708 = vmatpush.bf16.msra.mxu0 %v5430
  %5709 = vmatpush.bf16.msra.mxu0 %v5429
  %5710 = vmatpush.bf16.msra.mxu0 %v5428
  %5711 = vmatpush.bf16.msra.mxu0 %v5427
  %5712 = vmatpush.bf16.msra.mxu0 %v5426
  %5713 = vmatpush.bf16.msra.mxu0 %v5425
  %5714 = vmatpush.bf16.msra.mxu0 %v5424
  %5715 = vmatpush.bf16.msra.mxu0 %v5423
  %5716 = vmatmul.bf16.gmra.mxu0 %v4621
  %v5717 = vpop.f32.mrf.mxu0
  %v5718 = vadd.f32 %v5705, %v5717
  %v5719 = vpop.f32.mrf.mxu0
  %5720 = vdwg.mxu0
  %5721 = vmatpush.bf16.msra.mxu0 %v5438
  %5722 = vmatpush.bf16.msra.mxu0 %v5437
  %5723 = vmatpush.bf16.msra.mxu0 %v5436
  %5724 = vmatpush.bf16.msra.mxu0 %v5435
  %5725 = vmatpush.bf16.msra.mxu0 %v5434
  %5726 = vmatpush.bf16.msra.mxu0 %v5433
  %5727 = vmatpush.bf16.msra.mxu0 %v5432
  %5728 = vmatpush.bf16.msra.mxu0 %v5431
  %5729 = vmatmul.bf16.gmra.mxu0 %v4622
  %v5730 = vpop.f32.mrf.mxu0
  %v5731 = vadd.f32 %v5718, %v5730
  %v5732 = vpop.f32.mrf.mxu0
  %5733 = vdwg.mxu0
  %5734 = vmatpush.bf16.msra.mxu0 %v5446
  %5735 = vmatpush.bf16.msra.mxu0 %v5445
  %5736 = vmatpush.bf16.msra.mxu0 %v5444
  %5737 = vmatpush.bf16.msra.mxu0 %v5443
  %5738 = vmatpush.bf16.msra.mxu0 %v5442
  %5739 = vmatpush.bf16.msra.mxu0 %v5441
  %5740 = vmatpush.bf16.msra.mxu0 %v5440
  %5741 = vmatpush.bf16.msra.mxu0 %v5439
  %5742 = vmatmul.bf16.gmra.mxu0 %v4623
  %v5743 = vpop.f32.mrf.mxu0
  %v5744 = vadd.f32 %v5731, %v5743
  %v5745 = vpop.f32.mrf.mxu0
  %5746 = vdwg.mxu0
  %5747 = vmatpush.bf16.msra.mxu0 %v5454
  %5748 = vmatpush.bf16.msra.mxu0 %v5453
  %5749 = vmatpush.bf16.msra.mxu0 %v5452
  %5750 = vmatpush.bf16.msra.mxu0 %v5451
  %5751 = vmatpush.bf16.msra.mxu0 %v5450
  %5752 = vmatpush.bf16.msra.mxu0 %v5449
  %5753 = vmatpush.bf16.msra.mxu0 %v5448
  %5754 = vmatpush.bf16.msra.mxu0 %v5447
  %5755 = vmatmul.bf16.gmra.mxu0 %v4624
  %v5756 = vpop.f32.mrf.mxu0
  %v5757 = vadd.f32 %v5744, %v5756
  %v5758 = vpop.f32.mrf.mxu0
  %5759 = vdwg.mxu0
  %5760 = vmatpush.bf16.msra.mxu0 %v5462
  %5761 = vmatpush.bf16.msra.mxu0 %v5461
  %5762 = vmatpush.bf16.msra.mxu0 %v5460
  %5763 = vmatpush.bf16.msra.mxu0 %v5459
  %5764 = vmatpush.bf16.msra.mxu0 %v5458
  %5765 = vmatpush.bf16.msra.mxu0 %v5457
  %5766 = vmatpush.bf16.msra.mxu0 %v5456
  %5767 = vmatpush.bf16.msra.mxu0 %v5455
  %5768 = vmatmul.bf16.gmra.mxu0 %v4625
  %v5769 = vpop.f32.mrf.mxu0
  %v5770 = vadd.f32 %v5757, %v5769
  %v5771 = vpop.f32.mrf.mxu0
  %5772 = vdwg.mxu0
  %5773 = vmatpush.bf16.msra.mxu0 %v5470
  %5774 = vmatpush.bf16.msra.mxu0 %v5469
  %5775 = vmatpush.bf16.msra.mxu0 %v5468
  %5776 = vmatpush.bf16.msra.mxu0 %v5467
  %5777 = vmatpush.bf16.msra.mxu0 %v5466
  %5778 = vmatpush.bf16.msra.mxu0 %v5465
  %5779 = vmatpush.bf16.msra.mxu0 %v5464
  %5780 = vmatpush.bf16.msra.mxu0 %v5463
  %5781 = vmatmul.bf16.gmra.mxu0 %v4626
  %v5782 = vpop.f32.mrf.mxu0
  %v5783 = vadd.f32 %v5770, %v5782
  %v5784 = vpop.f32.mrf.mxu0
  %5785 = vdwg.mxu0
  %5786 = vst [vmem:[%s6] sm:$0xff] %v5783
  // Predicated region
  $region26: #{modified_densenet201_forward.1} parent=0 // pred_check
    _
  $region27: #{modified_densenet201_forward.1} parent=0 // pred_check_branch
    %5788 = sbr.rel (0) target = $region29
  $region28: #{modified_densenet201_forward.1} parent=0 // pred_region
    _
  $region29: #{modified_densenet201_forward.1} parent=0 // pred_fallthru
    _
  // Predicated region
  $region30: #{modified_densenet201_forward.1} parent=0 // pred_check
    _
  $region31: #{modified_densenet201_forward.1} parent=0 // pred_check_branch
    %5790 = sbr.rel (0) target = $region33
  $region32: #{modified_densenet201_forward.1} parent=0 // pred_region
    _
  $region33: #{modified_densenet201_forward.1} parent=0 // pred_fallthru
    _

</llo_original>
